<compile_context>
chip_gen: v5e
topology: v5e:2x2
jax: 0.10.0
libtpu: 0.0.40
codegen_flags: <defaults>
</compile_context>

<pallas_src>
import jax
import jax.numpy as jnp
from jax.experimental import pallas as pl
from jax.experimental.pallas import tpu as pltpu

# ---------------- model config (small, consistent with the module) -----------
BATCH = 2
SEQ = 8
INPUT_SIZE = 16
HIDDEN = 32
NUM_LAYERS = 4
OUTPUT_SIZE = 1


# ------------------------------- Pallas kernel -------------------------------
def lstm_kernel(
    x_ref,      # (T*B, IN)            time-major flattened input rows
    state_ref,  # (2, L, B, H)         [0]=h0, [1]=c0
    wrec_ref,   # (L*H + 1, L*4H)      block-diag recurrent weights + bias row
    wmisc_ref,  # (IN + (L-1)*H + H + 1, 4H)  w0i | wih(1..L-1) | w1 | tail row
    out_ref,    # (B, 1)
):
    B, H, L, T, IN = BATCH, HIDDEN, NUM_LAYERS, SEQ, INPUT_SIZE
    G4 = 4 * H                      # 128 lanes = one vreg width
    f32 = jnp.float32
    W1_ROW = IN + (L - 1) * H       # 112
    TAIL_ROW = W1_ROW + H           # 144

    # ---- small static parameters, loaded once ------------------------------
    bias_all = wrec_ref[L * H:L * H + 1, :]                    # (1, L*4H)
    w0i = wmisc_ref[0:IN, :]                                   # (IN, 128)
    wih = [wmisc_ref[IN + k * H: IN + (k + 1) * H, :]          # 3 x (H, 128)
           for k in range(L - 1)]
    w1 = wmisc_ref[W1_ROW:W1_ROW + H, :][:, 0:H]               # (H, H)
    tail = wmisc_ref[TAIL_ROW:TAIL_ROW + 1, :]                 # (1, 128)
    b1 = tail[:, 0:H]                                          # (1, H)
    w2 = tail[:, H:2 * H]                                      # (1, H)
    b2 = tail[:, 2 * H:2 * H + 1]                              # (1, 1)

    # gate-select mask: lanes [2H, 3H) (gate g) get tanh, the rest sigmoid
    lane = jax.lax.broadcasted_iota(jnp.int32, (B, G4), 1)
    is_g = jnp.logical_and(lane >= 2 * H, lane < 3 * H)

    # ---- hoisted layer-0 input projection: one fused matmul ----------------
    xg = jnp.dot(x_ref[...], w0i, preferred_element_type=f32)  # (T*B, 128)

    # ---- initial state kept as live values ---------------------------------
    h = [state_ref[0, l] for l in range(L)]                    # (B, H) each
    c = [state_ref[1, l] for l in range(L)]

    # ---- recurrence, fully unrolled (gate order: i, f, g, o) ---------------
    for t in range(T):
        # One block-diagonal matmul produces every layer's recurrent gate
        # contribution for this step; all layer biases folded in via one add.
        h_all = jnp.concatenate(h, axis=-1)                    # (B, L*H=128)
        rec = (jnp.dot(h_all, wrec_ref[0:L * H, :],            # (B, L*4H=512)
                       preferred_element_type=f32)
               + bias_all)

        layer_in = None
        for l in range(L):
            if l == 0:
                pre = xg[t * B:(t + 1) * B] + rec[:, 0:G4]
            else:
                pre = (jnp.dot(layer_in, wih[l - 1],
                               preferred_element_type=f32)
                       + rec[:, l * G4:(l + 1) * G4])
            # full-width activations, then gate select / lane split
            sg = jax.nn.sigmoid(pre)
            th = jnp.tanh(pre)
            act = jnp.where(is_g, th, sg)                      # (B, 128)
            i_g = act[:, 0:H]
            f_g = act[:, H:2 * H]
            g_g = act[:, 2 * H:3 * H]
            o_g = act[:, 3 * H:4 * H]
            c_new = f_g * c[l] + i_g * g_g
            h_new = o_g * jnp.tanh(c_new)
            c[l] = c_new
            h[l] = h_new
            layer_in = h_new
        # TODO(synk): nn.LSTM's inter-layer dropout(p=0.2) is train-only and
        # is omitted in this inference forward pass.

    # ---- head: ReLU -> Linear(H,H) -> Tanh -> Linear(H,1) ------------------
    y = jnp.maximum(h[L - 1], 0.0)
    y = jnp.tanh(jnp.dot(y, w1, preferred_element_type=f32) + b1)
    out = jnp.sum(y * w2, axis=-1, keepdims=True) + b2          # VPU + lane reduce
    out_ref[...] = out.astype(out_ref.dtype)


# --------------------------- parameter packing --------------------------------
def pack_params(raw_params):
    """PyTorch-layout weights -> two fused slabs. Run ONCE, off the hot path."""
    lstm_raw, w1, b1, w2, b2 = raw_params
    H, IN, L = HIDDEN, INPUT_SIZE, NUM_LAYERS
    G4 = 4 * H

    # w_rec: block-diagonal recurrent weights (L*H, L*4H) + one bias row.
    w_rec = jnp.zeros((L * H + 1, L * G4), jnp.float32)
    for l, (_, w_hh, b_ih, b_hh) in enumerate(lstm_raw):
        w_rec = w_rec.at[l * H:(l + 1) * H, l * G4:(l + 1) * G4].set(w_hh.T)
        w_rec = w_rec.at[L * H, l * G4:(l + 1) * G4].set(b_ih + b_hh)

    # w_misc: gate-concatenated input weights, head weights, tail row.
    rows = [lstm_raw[0][0].T]                                  # (IN, 128)
    for l in range(1, L):
        rows.append(lstm_raw[l][0].T)                          # (H, 128) each
    w1_pad = jnp.zeros((H, G4), jnp.float32).at[:, 0:H].set(w1.T)
    rows.append(w1_pad)                                        # (H, 128)
    tail = jnp.zeros((1, G4), jnp.float32)
    tail = tail.at[0, 0:H].set(b1)
    tail = tail.at[0, H:2 * H].set(w2.reshape(H))
    tail = tail.at[0, 2 * H].set(b2[0])
    rows.append(tail)                                          # (1, 128)
    w_misc = jnp.concatenate(rows, axis=0)                     # (145, 128)
    return w_rec, w_misc


# --------------------------------- wrapper ------------------------------------
@jax.jit
def lstm_model_forward(x, state0, w_rec, w_misc):
    """x: (B, T, INPUT_SIZE) batch-first; state0: (2, L, B, H); slabs pre-packed."""
    B, T, IN = x.shape
    x2d = jnp.transpose(x, (1, 0, 2)).reshape(T * B, IN)       # time-major rows

    vmem = lambda: pl.BlockSpec(memory_space=pltpu.MemorySpace.VMEM)
    return pl.pallas_call(
        lstm_kernel,
        out_shape=jax.ShapeDtypeStruct((B, OUTPUT_SIZE), jnp.float32),
        in_specs=[vmem() for _ in range(4)],
        out_specs=vmem(),
    )(x2d, state0, w_rec, w_misc)


# ------------------------- pure-JAX reference (raw weights) -------------------
def reference_forward(x, state0, raw_params):
    lstm_raw, w1, b1, w2, b2 = raw_params
    hi = jax.lax.Precision.HIGHEST
    H = HIDDEN
    B, T, _ = x.shape
    h = [state0[0, l] for l in range(NUM_LAYERS)]
    c = [state0[1, l] for l in range(NUM_LAYERS)]
    for t in range(T):
        layer_in = x[:, t, :]
        for l, (w_ih, w_hh, b_ih, b_hh) in enumerate(lstm_raw):
            gates = (jnp.dot(layer_in, w_ih.T, precision=hi)
                     + jnp.dot(h[l], w_hh.T, precision=hi) + b_ih + b_hh)
            i_g = jax.nn.sigmoid(gates[:, 0 * H:1 * H])
            f_g = jax.nn.sigmoid(gates[:, 1 * H:2 * H])
            g_g = jnp.tanh(gates[:, 2 * H:3 * H])
            o_g = jax.nn.sigmoid(gates[:, 3 * H:4 * H])
            c[l] = f_g * c[l] + i_g * g_g
            h[l] = o_g * jnp.tanh(c[l])
            layer_in = h[l]
    y = jnp.maximum(h[-1], 0.0)
    y = jnp.tanh(jnp.dot(y, w1.T, precision=hi) + b1)
    return jnp.dot(y, w2.T, precision=hi) + b2


# ------------------------- deterministic parameter init -----------------------
def init_params(key):
    bound = 1.0 / (HIDDEN ** 0.5)
    keys = list(jax.random.split(key, 4 * NUM_LAYERS + 4))
    ki = iter(keys)

    def u(shape):
        return jax.random.uniform(next(ki), shape, jnp.float32, -bound, bound)

    lstm_raw = []
    for l in range(NUM_LAYERS):
        in_l = INPUT_SIZE if l == 0 else HIDDEN
        lstm_raw.append((u((4 * HIDDEN, in_l)),     # weight_ih_l  (4H, in_l)
                         u((4 * HIDDEN, HIDDEN)),   # weight_hh_l  (4H, H)
                         u((4 * HIDDEN,)),          # bias_ih_l
                         u((4 * HIDDEN,))))         # bias_hh_l
    w1 = u((HIDDEN, HIDDEN))
    b1 = u((HIDDEN,))
    w2 = u((OUTPUT_SIZE, HIDDEN))
    b2 = u((OUTPUT_SIZE,))
    return (lstm_raw, w1, b1, w2, b2)


# ----------------------------------- main --------------------------------------
if __name__ == "__main__":
    root = jax.random.PRNGKey(0)
    kx, ks, kp = jax.random.split(root, 3)

    x = jax.random.normal(kx, (BATCH, SEQ, INPUT_SIZE), jnp.float32)
    # matches `torch.rand(num_layers, batch, hidden)` for both h_0 and c_0
    state0 = jax.random.uniform(ks, (2, NUM_LAYERS, BATCH, HIDDEN), jnp.float32)
    params = init_params(kp)

    # one-time packing, hoisted out of the jitted per-call path
    w_rec, w_misc = pack_params(params)
    w_rec, w_misc = jax.block_until_ready((w_rec, w_misc))

    out = lstm_model_forward(x, state0, w_rec, w_misc)
    jax.block_until_ready(out)
    assert out.shape == (BATCH, OUTPUT_SIZE)

    ref = reference_forward(x, state0, params)
    assert jnp.allclose(out, ref, atol=2e-2, rtol=2e-2), (out, ref)

    print("KERNEL_OK")
</pallas_src>

<mosaic_0001>
module attributes {stable_mosaic.version = 11 : i64} {
  func.func @lstm_kernel(%arg0: memref<16x16xf32, #tpu.memory_space<vmem>>, %arg1: memref<2x4x2x32xf32, #tpu.memory_space<vmem>>, %arg2: memref<129x512xf32, #tpu.memory_space<vmem>>, %arg3: memref<145x128xf32, #tpu.memory_space<vmem>>, %arg4: memref<2x1xf32, #tpu.memory_space<vmem>>) attributes {dimension_semantics = [], scalar_prefetch = 0 : i64, scratch_operands = 0 : i64, tpu.core_type = #tpu.core_type<tc>} {
    %c128 = arith.constant 128 : index
    %c0 = arith.constant 0 : index
    %0 = vector.load %arg2[%c128, %c0] : memref<129x512xf32, #tpu.memory_space<vmem>>, vector<1x512xf32>
    %c0_0 = arith.constant 0 : index
    %c0_1 = arith.constant 0 : index
    %1 = vector.load %arg3[%c0_0, %c0_1] : memref<145x128xf32, #tpu.memory_space<vmem>>, vector<16x128xf32>
    %c16 = arith.constant 16 : index
    %c0_2 = arith.constant 0 : index
    %2 = vector.load %arg3[%c16, %c0_2] : memref<145x128xf32, #tpu.memory_space<vmem>>, vector<32x128xf32>
    %c48 = arith.constant 48 : index
    %c0_3 = arith.constant 0 : index
    %3 = vector.load %arg3[%c48, %c0_3] : memref<145x128xf32, #tpu.memory_space<vmem>>, vector<32x128xf32>
    %c80 = arith.constant 80 : index
    %c0_4 = arith.constant 0 : index
    %4 = vector.load %arg3[%c80, %c0_4] : memref<145x128xf32, #tpu.memory_space<vmem>>, vector<32x128xf32>
    %c112 = arith.constant 112 : index
    %c0_5 = arith.constant 0 : index
    %5 = vector.load %arg3[%c112, %c0_5] : memref<145x128xf32, #tpu.memory_space<vmem>>, vector<32x128xf32>
    %6 = vector.extract_strided_slice %5 {offsets = [0, 0], sizes = [32, 32], strides = [1, 1]} : vector<32x128xf32> to vector<32x32xf32>
    %c144 = arith.constant 144 : index
    %c0_6 = arith.constant 0 : index
    %7 = vector.load %arg3[%c144, %c0_6] : memref<145x128xf32, #tpu.memory_space<vmem>>, vector<1x128xf32>
    %8 = vector.extract_strided_slice %7 {offsets = [0, 0], sizes = [1, 32], strides = [1, 1]} : vector<1x128xf32> to vector<1x32xf32>
    %9 = vector.extract_strided_slice %7 {offsets = [0, 32], sizes = [1, 32], strides = [1, 1]} : vector<1x128xf32> to vector<1x32xf32>
    %10 = vector.extract_strided_slice %7 {offsets = [0, 64], sizes = [1, 1], strides = [1, 1]} : vector<1x128xf32> to vector<1x1xf32>
    %11 = tpu.iota {dimensions = array<i32: 1>} : vector<2x128xi32>
    %c64_i32 = arith.constant 64 : i32
    %12 = vector.broadcast %c64_i32 : i32 to vector<2x128xi32>
    %13 = arith.cmpi sge, %11, %12 : vector<2x128xi32>
    %c96_i32 = arith.constant 96 : i32
    %14 = vector.broadcast %c96_i32 : i32 to vector<2x128xi32>
    %15 = arith.cmpi slt, %11, %14 : vector<2x128xi32>
    %16 = arith.andi %13, %15 : vector<2x128xi1>
    %c0_7 = arith.constant 0 : index
    %c0_8 = arith.constant 0 : index
    %17 = vector.load %arg0[%c0_7, %c0_8] : memref<16x16xf32, #tpu.memory_space<vmem>>, vector<16x16xf32>
    %cst = arith.constant dense<0.000000e+00> : vector<16x128xf32>
    %18 = tpu.matmul %17, %1, %cst {dimension_numbers = #tpu.dot_dimension_numbers<[1], [0], [0], [1], [0, 0, 1, 1], [], []>} : vector<16x16xf32>, vector<16x128xf32>, vector<16x128xf32> -> vector<16x128xf32>
    %c0_9 = arith.constant 0 : index
    %c0_10 = arith.constant 0 : index
    %c0_11 = arith.constant 0 : index
    %c0_12 = arith.constant 0 : index
    %19 = vector.load %arg1[%c0_9, %c0_10, %c0_11, %c0_12] : memref<2x4x2x32xf32, #tpu.memory_space<vmem>>, vector<1x1x2x32xf32>
    %20 = vector.shape_cast %19 : vector<1x1x2x32xf32> to vector<2x32xf32>
    %c0_13 = arith.constant 0 : index
    %c1 = arith.constant 1 : index
    %c0_14 = arith.constant 0 : index
    %c0_15 = arith.constant 0 : index
    %21 = vector.load %arg1[%c0_13, %c1, %c0_14, %c0_15] : memref<2x4x2x32xf32, #tpu.memory_space<vmem>>, vector<1x1x2x32xf32>
    %22 = vector.shape_cast %21 : vector<1x1x2x32xf32> to vector<2x32xf32>
    %c0_16 = arith.constant 0 : index
    %c2 = arith.constant 2 : index
    %c0_17 = arith.constant 0 : index
    %c0_18 = arith.constant 0 : index
    %23 = vector.load %arg1[%c0_16, %c2, %c0_17, %c0_18] : memref<2x4x2x32xf32, #tpu.memory_space<vmem>>, vector<1x1x2x32xf32>
    %24 = vector.shape_cast %23 : vector<1x1x2x32xf32> to vector<2x32xf32>
    %c0_19 = arith.constant 0 : index
    %c3 = arith.constant 3 : index
    %c0_20 = arith.constant 0 : index
    %c0_21 = arith.constant 0 : index
    %25 = vector.load %arg1[%c0_19, %c3, %c0_20, %c0_21] : memref<2x4x2x32xf32, #tpu.memory_space<vmem>>, vector<1x1x2x32xf32>
    %26 = vector.shape_cast %25 : vector<1x1x2x32xf32> to vector<2x32xf32>
    %c1_22 = arith.constant 1 : index
    %c0_23 = arith.constant 0 : index
    %c0_24 = arith.constant 0 : index
    %c0_25 = arith.constant 0 : index
    %27 = vector.load %arg1[%c1_22, %c0_23, %c0_24, %c0_25] : memref<2x4x2x32xf32, #tpu.memory_space<vmem>>, vector<1x1x2x32xf32>
    %28 = vector.shape_cast %27 : vector<1x1x2x32xf32> to vector<2x32xf32>
    %c1_26 = arith.constant 1 : index
    %c1_27 = arith.constant 1 : index
    %c0_28 = arith.constant 0 : index
    %c0_29 = arith.constant 0 : index
    %29 = vector.load %arg1[%c1_26, %c1_27, %c0_28, %c0_29] : memref<2x4x2x32xf32, #tpu.memory_space<vmem>>, vector<1x1x2x32xf32>
    %30 = vector.shape_cast %29 : vector<1x1x2x32xf32> to vector<2x32xf32>
    %c1_30 = arith.constant 1 : index
    %c2_31 = arith.constant 2 : index
    %c0_32 = arith.constant 0 : index
    %c0_33 = arith.constant 0 : index
    %31 = vector.load %arg1[%c1_30, %c2_31, %c0_32, %c0_33] : memref<2x4x2x32xf32, #tpu.memory_space<vmem>>, vector<1x1x2x32xf32>
    %32 = vector.shape_cast %31 : vector<1x1x2x32xf32> to vector<2x32xf32>
    %c1_34 = arith.constant 1 : index
    %c3_35 = arith.constant 3 : index
    %c0_36 = arith.constant 0 : index
    %c0_37 = arith.constant 0 : index
    %33 = vector.load %arg1[%c1_34, %c3_35, %c0_36, %c0_37] : memref<2x4x2x32xf32, #tpu.memory_space<vmem>>, vector<1x1x2x32xf32>
    %34 = vector.shape_cast %33 : vector<1x1x2x32xf32> to vector<2x32xf32>
    %35 = tpu.concatenate %20, %22, %24, %26 in 1 : vector<2x32xf32>, vector<2x32xf32>, vector<2x32xf32>, vector<2x32xf32> -> vector<2x128xf32>
    %c0_38 = arith.constant 0 : index
    %c0_39 = arith.constant 0 : index
    %36 = vector.load %arg2[%c0_38, %c0_39] : memref<129x512xf32, #tpu.memory_space<vmem>>, vector<128x512xf32>
    %cst_40 = arith.constant dense<0.000000e+00> : vector<2x512xf32>
    %37 = tpu.matmul %35, %36, %cst_40 {dimension_numbers = #tpu.dot_dimension_numbers<[1], [0], [0], [1], [0, 0, 1, 1], [], []>} : vector<2x128xf32>, vector<128x512xf32>, vector<2x512xf32> -> vector<2x512xf32>
    %38 = vector.broadcast %0 : vector<1x512xf32> to vector<2x512xf32>
    %39 = arith.addf %37, %38 : vector<2x512xf32>
    %40 = vector.extract_strided_slice %18 {offsets = [0, 0], sizes = [2, 128], strides = [1, 1]} : vector<16x128xf32> to vector<2x128xf32>
    %41 = vector.extract_strided_slice %39 {offsets = [0, 0], sizes = [2, 128], strides = [1, 1]} : vector<2x512xf32> to vector<2x128xf32>
    %42 = arith.addf %40, %41 : vector<2x128xf32>
    %43 = arith.negf %42 : vector<2x128xf32>
    %44 = math.exp %43 : vector<2x128xf32>
    %cst_41 = arith.constant 1.000000e+00 : f32
    %45 = vector.broadcast %cst_41 : f32 to vector<2x128xf32>
    %46 = arith.addf %45, %44 : vector<2x128xf32>
    %47 = arith.divf %45, %46 : vector<2x128xf32>
    %48 = math.tanh %42 : vector<2x128xf32>
    %49 = arith.select %16, %48, %47 : vector<2x128xi1>, vector<2x128xf32>
    %50 = vector.extract_strided_slice %49 {offsets = [0, 0], sizes = [2, 32], strides = [1, 1]} : vector<2x128xf32> to vector<2x32xf32>
    %51 = vector.extract_strided_slice %49 {offsets = [0, 32], sizes = [2, 32], strides = [1, 1]} : vector<2x128xf32> to vector<2x32xf32>
    %52 = vector.extract_strided_slice %49 {offsets = [0, 64], sizes = [2, 32], strides = [1, 1]} : vector<2x128xf32> to vector<2x32xf32>
    %53 = vector.extract_strided_slice %49 {offsets = [0, 96], sizes = [2, 32], strides = [1, 1]} : vector<2x128xf32> to vector<2x32xf32>
    %54 = arith.mulf %51, %28 : vector<2x32xf32>
    %55 = arith.mulf %50, %52 : vector<2x32xf32>
    %56 = arith.addf %54, %55 : vector<2x32xf32>
    %57 = math.tanh %56 : vector<2x32xf32>
    %58 = arith.mulf %53, %57 : vector<2x32xf32>
    %cst_42 = arith.constant dense<0.000000e+00> : vector<2x128xf32>
    %59 = tpu.matmul %58, %2, %cst_42 {dimension_numbers = #tpu.dot_dimension_numbers<[1], [0], [0], [1], [0, 0, 1, 1], [], []>} : vector<2x32xf32>, vector<32x128xf32>, vector<2x128xf32> -> vector<2x128xf32>
    %60 = vector.extract_strided_slice %39 {offsets = [0, 128], sizes = [2, 128], strides = [1, 1]} : vector<2x512xf32> to vector<2x128xf32>
    %61 = arith.addf %59, %60 : vector<2x128xf32>
    %62 = arith.negf %61 : vector<2x128xf32>
    %63 = math.exp %62 : vector<2x128xf32>
    %cst_43 = arith.constant 1.000000e+00 : f32
    %64 = vector.broadcast %cst_43 : f32 to vector<2x128xf32>
    %65 = arith.addf %64, %63 : vector<2x128xf32>
    %66 = arith.divf %64, %65 : vector<2x128xf32>
    %67 = math.tanh %61 : vector<2x128xf32>
    %68 = arith.select %16, %67, %66 : vector<2x128xi1>, vector<2x128xf32>
    %69 = vector.extract_strided_slice %68 {offsets = [0, 0], sizes = [2, 32], strides = [1, 1]} : vector<2x128xf32> to vector<2x32xf32>
    %70 = vector.extract_strided_slice %68 {offsets = [0, 32], sizes = [2, 32], strides = [1, 1]} : vector<2x128xf32> to vector<2x32xf32>
    %71 = vector.extract_strided_slice %68 {offsets = [0, 64], sizes = [2, 32], strides = [1, 1]} : vector<2x128xf32> to vector<2x32xf32>
    %72 = vector.extract_strided_slice %68 {offsets = [0, 96], sizes = [2, 32], strides = [1, 1]} : vector<2x128xf32> to vector<2x32xf32>
    %73 = arith.mulf %70, %30 : vector<2x32xf32>
    %74 = arith.mulf %69, %71 : vector<2x32xf32>
    %75 = arith.addf %73, %74 : vector<2x32xf32>
    %76 = math.tanh %75 : vector<2x32xf32>
    %77 = arith.mulf %72, %76 : vector<2x32xf32>
    %cst_44 = arith.constant dense<0.000000e+00> : vector<2x128xf32>
    %78 = tpu.matmul %77, %3, %cst_44 {dimension_numbers = #tpu.dot_dimension_numbers<[1], [0], [0], [1], [0, 0, 1, 1], [], []>} : vector<2x32xf32>, vector<32x128xf32>, vector<2x128xf32> -> vector<2x128xf32>
    %79 = vector.extract_strided_slice %39 {offsets = [0, 256], sizes = [2, 128], strides = [1, 1]} : vector<2x512xf32> to vector<2x128xf32>
    %80 = arith.addf %78, %79 : vector<2x128xf32>
    %81 = arith.negf %80 : vector<2x128xf32>
    %82 = math.exp %81 : vector<2x128xf32>
    %cst_45 = arith.constant 1.000000e+00 : f32
    %83 = vector.broadcast %cst_45 : f32 to vector<2x128xf32>
    %84 = arith.addf %83, %82 : vector<2x128xf32>
    %85 = arith.divf %83, %84 : vector<2x128xf32>
    %86 = math.tanh %80 : vector<2x128xf32>
    %87 = arith.select %16, %86, %85 : vector<2x128xi1>, vector<2x128xf32>
    %88 = vector.extract_strided_slice %87 {offsets = [0, 0], sizes = [2, 32], strides = [1, 1]} : vector<2x128xf32> to vector<2x32xf32>
    %89 = vector.extract_strided_slice %87 {offsets = [0, 32], sizes = [2, 32], strides = [1, 1]} : vector<2x128xf32> to vector<2x32xf32>
    %90 = vector.extract_strided_slice %87 {offsets = [0, 64], sizes = [2, 32], strides = [1, 1]} : vector<2x128xf32> to vector<2x32xf32>
    %91 = vector.extract_strided_slice %87 {offsets = [0, 96], sizes = [2, 32], strides = [1, 1]} : vector<2x128xf32> to vector<2x32xf32>
    %92 = arith.mulf %89, %32 : vector<2x32xf32>
    %93 = arith.mulf %88, %90 : vector<2x32xf32>
    %94 = arith.addf %92, %93 : vector<2x32xf32>
    %95 = math.tanh %94 : vector<2x32xf32>
    %96 = arith.mulf %91, %95 : vector<2x32xf32>
    %cst_46 = arith.constant dense<0.000000e+00> : vector<2x128xf32>
    %97 = tpu.matmul %96, %4, %cst_46 {dimension_numbers = #tpu.dot_dimension_numbers<[1], [0], [0], [1], [0, 0, 1, 1], [], []>} : vector<2x32xf32>, vector<32x128xf32>, vector<2x128xf32> -> vector<2x128xf32>
    %98 = vector.extract_strided_slice %39 {offsets = [0, 384], sizes = [2, 128], strides = [1, 1]} : vector<2x512xf32> to vector<2x128xf32>
    %99 = arith.addf %97, %98 : vector<2x128xf32>
    %100 = arith.negf %99 : vector<2x128xf32>
    %101 = math.exp %100 : vector<2x128xf32>
    %cst_47 = arith.constant 1.000000e+00 : f32
    %102 = vector.broadcast %cst_47 : f32 to vector<2x128xf32>
    %103 = arith.addf %102, %101 : vector<2x128xf32>
    %104 = arith.divf %102, %103 : vector<2x128xf32>
    %105 = math.tanh %99 : vector<2x128xf32>
    %106 = arith.select %16, %105, %104 : vector<2x128xi1>, vector<2x128xf32>
    %107 = vector.extract_strided_slice %106 {offsets = [0, 0], sizes = [2, 32], strides = [1, 1]} : vector<2x128xf32> to vector<2x32xf32>
    %108 = vector.extract_strided_slice %106 {offsets = [0, 32], sizes = [2, 32], strides = [1, 1]} : vector<2x128xf32> to vector<2x32xf32>
    %109 = vector.extract_strided_slice %106 {offsets = [0, 64], sizes = [2, 32], strides = [1, 1]} : vector<2x128xf32> to vector<2x32xf32>
    %110 = vector.extract_strided_slice %106 {offsets = [0, 96], sizes = [2, 32], strides = [1, 1]} : vector<2x128xf32> to vector<2x32xf32>
    %111 = arith.mulf %108, %34 : vector<2x32xf32>
    %112 = arith.mulf %107, %109 : vector<2x32xf32>
    %113 = arith.addf %111, %112 : vector<2x32xf32>
    %114 = math.tanh %113 : vector<2x32xf32>
    %115 = arith.mulf %110, %114 : vector<2x32xf32>
    %116 = tpu.concatenate %58, %77, %96, %115 in 1 : vector<2x32xf32>, vector<2x32xf32>, vector<2x32xf32>, vector<2x32xf32> -> vector<2x128xf32>
    %c0_48 = arith.constant 0 : index
    %c0_49 = arith.constant 0 : index
    %117 = vector.load %arg2[%c0_48, %c0_49] : memref<129x512xf32, #tpu.memory_space<vmem>>, vector<128x512xf32>
    %cst_50 = arith.constant dense<0.000000e+00> : vector<2x512xf32>
    %118 = tpu.matmul %116, %117, %cst_50 {dimension_numbers = #tpu.dot_dimension_numbers<[1], [0], [0], [1], [0, 0, 1, 1], [], []>} : vector<2x128xf32>, vector<128x512xf32>, vector<2x512xf32> -> vector<2x512xf32>
    %119 = vector.broadcast %0 : vector<1x512xf32> to vector<2x512xf32>
    %120 = arith.addf %118, %119 : vector<2x512xf32>
    %121 = vector.extract_strided_slice %18 {offsets = [2, 0], sizes = [2, 128], strides = [1, 1]} : vector<16x128xf32> to vector<2x128xf32>
    %122 = vector.extract_strided_slice %120 {offsets = [0, 0], sizes = [2, 128], strides = [1, 1]} : vector<2x512xf32> to vector<2x128xf32>
    %123 = arith.addf %121, %122 : vector<2x128xf32>
    %124 = arith.negf %123 : vector<2x128xf32>
    %125 = math.exp %124 : vector<2x128xf32>
    %cst_51 = arith.constant 1.000000e+00 : f32
    %126 = vector.broadcast %cst_51 : f32 to vector<2x128xf32>
    %127 = arith.addf %126, %125 : vector<2x128xf32>
    %128 = arith.divf %126, %127 : vector<2x128xf32>
    %129 = math.tanh %123 : vector<2x128xf32>
    %130 = arith.select %16, %129, %128 : vector<2x128xi1>, vector<2x128xf32>
    %131 = vector.extract_strided_slice %130 {offsets = [0, 0], sizes = [2, 32], strides = [1, 1]} : vector<2x128xf32> to vector<2x32xf32>
    %132 = vector.extract_strided_slice %130 {offsets = [0, 32], sizes = [2, 32], strides = [1, 1]} : vector<2x128xf32> to vector<2x32xf32>
    %133 = vector.extract_strided_slice %130 {offsets = [0, 64], sizes = [2, 32], strides = [1, 1]} : vector<2x128xf32> to vector<2x32xf32>
    %134 = vector.extract_strided_slice %130 {offsets = [0, 96], sizes = [2, 32], strides = [1, 1]} : vector<2x128xf32> to vector<2x32xf32>
    %135 = arith.mulf %132, %56 : vector<2x32xf32>
    %136 = arith.mulf %131, %133 : vector<2x32xf32>
    %137 = arith.addf %135, %136 : vector<2x32xf32>
    %138 = math.tanh %137 : vector<2x32xf32>
    %139 = arith.mulf %134, %138 : vector<2x32xf32>
    %cst_52 = arith.constant dense<0.000000e+00> : vector<2x128xf32>
    %140 = tpu.matmul %139, %2, %cst_52 {dimension_numbers = #tpu.dot_dimension_numbers<[1], [0], [0], [1], [0, 0, 1, 1], [], []>} : vector<2x32xf32>, vector<32x128xf32>, vector<2x128xf32> -> vector<2x128xf32>
    %141 = vector.extract_strided_slice %120 {offsets = [0, 128], sizes = [2, 128], strides = [1, 1]} : vector<2x512xf32> to vector<2x128xf32>
    %142 = arith.addf %140, %141 : vector<2x128xf32>
    %143 = arith.negf %142 : vector<2x128xf32>
    %144 = math.exp %143 : vector<2x128xf32>
    %cst_53 = arith.constant 1.000000e+00 : f32
    %145 = vector.broadcast %cst_53 : f32 to vector<2x128xf32>
    %146 = arith.addf %145, %144 : vector<2x128xf32>
    %147 = arith.divf %145, %146 : vector<2x128xf32>
    %148 = math.tanh %142 : vector<2x128xf32>
    %149 = arith.select %16, %148, %147 : vector<2x128xi1>, vector<2x128xf32>
    %150 = vector.extract_strided_slice %149 {offsets = [0, 0], sizes = [2, 32], strides = [1, 1]} : vector<2x128xf32> to vector<2x32xf32>
    %151 = vector.extract_strided_slice %149 {offsets = [0, 32], sizes = [2, 32], strides = [1, 1]} : vector<2x128xf32> to vector<2x32xf32>
    %152 = vector.extract_strided_slice %149 {offsets = [0, 64], sizes = [2, 32], strides = [1, 1]} : vector<2x128xf32> to vector<2x32xf32>
    %153 = vector.extract_strided_slice %149 {offsets = [0, 96], sizes = [2, 32], strides = [1, 1]} : vector<2x128xf32> to vector<2x32xf32>
    %154 = arith.mulf %151, %75 : vector<2x32xf32>
    %155 = arith.mulf %150, %152 : vector<2x32xf32>
    %156 = arith.addf %154, %155 : vector<2x32xf32>
    %157 = math.tanh %156 : vector<2x32xf32>
    %158 = arith.mulf %153, %157 : vector<2x32xf32>
    %cst_54 = arith.constant dense<0.000000e+00> : vector<2x128xf32>
    %159 = tpu.matmul %158, %3, %cst_54 {dimension_numbers = #tpu.dot_dimension_numbers<[1], [0], [0], [1], [0, 0, 1, 1], [], []>} : vector<2x32xf32>, vector<32x128xf32>, vector<2x128xf32> -> vector<2x128xf32>
    %160 = vector.extract_strided_slice %120 {offsets = [0, 256], sizes = [2, 128], strides = [1, 1]} : vector<2x512xf32> to vector<2x128xf32>
    %161 = arith.addf %159, %160 : vector<2x128xf32>
    %162 = arith.negf %161 : vector<2x128xf32>
    %163 = math.exp %162 : vector<2x128xf32>
    %cst_55 = arith.constant 1.000000e+00 : f32
    %164 = vector.broadcast %cst_55 : f32 to vector<2x128xf32>
    %165 = arith.addf %164, %163 : vector<2x128xf32>
    %166 = arith.divf %164, %165 : vector<2x128xf32>
    %167 = math.tanh %161 : vector<2x128xf32>
    %168 = arith.select %16, %167, %166 : vector<2x128xi1>, vector<2x128xf32>
    %169 = vector.extract_strided_slice %168 {offsets = [0, 0], sizes = [2, 32], strides = [1, 1]} : vector<2x128xf32> to vector<2x32xf32>
    %170 = vector.extract_strided_slice %168 {offsets = [0, 32], sizes = [2, 32], strides = [1, 1]} : vector<2x128xf32> to vector<2x32xf32>
    %171 = vector.extract_strided_slice %168 {offsets = [0, 64], sizes = [2, 32], strides = [1, 1]} : vector<2x128xf32> to vector<2x32xf32>
    %172 = vector.extract_strided_slice %168 {offsets = [0, 96], sizes = [2, 32], strides = [1, 1]} : vector<2x128xf32> to vector<2x32xf32>
    %173 = arith.mulf %170, %94 : vector<2x32xf32>
    %174 = arith.mulf %169, %171 : vector<2x32xf32>
    %175 = arith.addf %173, %174 : vector<2x32xf32>
    %176 = math.tanh %175 : vector<2x32xf32>
    %177 = arith.mulf %172, %176 : vector<2x32xf32>
    %cst_56 = arith.constant dense<0.000000e+00> : vector<2x128xf32>
    %178 = tpu.matmul %177, %4, %cst_56 {dimension_numbers = #tpu.dot_dimension_numbers<[1], [0], [0], [1], [0, 0, 1, 1], [], []>} : vector<2x32xf32>, vector<32x128xf32>, vector<2x128xf32> -> vector<2x128xf32>
    %179 = vector.extract_strided_slice %120 {offsets = [0, 384], sizes = [2, 128], strides = [1, 1]} : vector<2x512xf32> to vector<2x128xf32>
    %180 = arith.addf %178, %179 : vector<2x128xf32>
    %181 = arith.negf %180 : vector<2x128xf32>
    %182 = math.exp %181 : vector<2x128xf32>
    %cst_57 = arith.constant 1.000000e+00 : f32
    %183 = vector.broadcast %cst_57 : f32 to vector<2x128xf32>
    %184 = arith.addf %183, %182 : vector<2x128xf32>
    %185 = arith.divf %183, %184 : vector<2x128xf32>
    %186 = math.tanh %180 : vector<2x128xf32>
    %187 = arith.select %16, %186, %185 : vector<2x128xi1>, vector<2x128xf32>
    %188 = vector.extract_strided_slice %187 {offsets = [0, 0], sizes = [2, 32], strides = [1, 1]} : vector<2x128xf32> to vector<2x32xf32>
    %189 = vector.extract_strided_slice %187 {offsets = [0, 32], sizes = [2, 32], strides = [1, 1]} : vector<2x128xf32> to vector<2x32xf32>
    %190 = vector.extract_strided_slice %187 {offsets = [0, 64], sizes = [2, 32], strides = [1, 1]} : vector<2x128xf32> to vector<2x32xf32>
    %191 = vector.extract_strided_slice %187 {offsets = [0, 96], sizes = [2, 32], strides = [1, 1]} : vector<2x128xf32> to vector<2x32xf32>
    %192 = arith.mulf %189, %113 : vector<2x32xf32>
    %193 = arith.mulf %188, %190 : vector<2x32xf32>
    %194 = arith.addf %192, %193 : vector<2x32xf32>
    %195 = math.tanh %194 : vector<2x32xf32>
    %196 = arith.mulf %191, %195 : vector<2x32xf32>
    %197 = tpu.concatenate %139, %158, %177, %196 in 1 : vector<2x32xf32>, vector<2x32xf32>, vector<2x32xf32>, vector<2x32xf32> -> vector<2x128xf32>
    %c0_58 = arith.constant 0 : index
    %c0_59 = arith.constant 0 : index
    %198 = vector.load %arg2[%c0_58, %c0_59] : memref<129x512xf32, #tpu.memory_space<vmem>>, vector<128x512xf32>
    %cst_60 = arith.constant dense<0.000000e+00> : vector<2x512xf32>
    %199 = tpu.matmul %197, %198, %cst_60 {dimension_numbers = #tpu.dot_dimension_numbers<[1], [0], [0], [1], [0, 0, 1, 1], [], []>} : vector<2x128xf32>, vector<128x512xf32>, vector<2x512xf32> -> vector<2x512xf32>
    %200 = vector.broadcast %0 : vector<1x512xf32> to vector<2x512xf32>
    %201 = arith.addf %199, %200 : vector<2x512xf32>
    %202 = vector.extract_strided_slice %18 {offsets = [4, 0], sizes = [2, 128], strides = [1, 1]} : vector<16x128xf32> to vector<2x128xf32>
    %203 = vector.extract_strided_slice %201 {offsets = [0, 0], sizes = [2, 128], strides = [1, 1]} : vector<2x512xf32> to vector<2x128xf32>
    %204 = arith.addf %202, %203 : vector<2x128xf32>
    %205 = arith.negf %204 : vector<2x128xf32>
    %206 = math.exp %205 : vector<2x128xf32>
    %cst_61 = arith.constant 1.000000e+00 : f32
    %207 = vector.broadcast %cst_61 : f32 to vector<2x128xf32>
    %208 = arith.addf %207, %206 : vector<2x128xf32>
    %209 = arith.divf %207, %208 : vector<2x128xf32>
    %210 = math.tanh %204 : vector<2x128xf32>
    %211 = arith.select %16, %210, %209 : vector<2x128xi1>, vector<2x128xf32>
    %212 = vector.extract_strided_slice %211 {offsets = [0, 0], sizes = [2, 32], strides = [1, 1]} : vector<2x128xf32> to vector<2x32xf32>
    %213 = vector.extract_strided_slice %211 {offsets = [0, 32], sizes = [2, 32], strides = [1, 1]} : vector<2x128xf32> to vector<2x32xf32>
    %214 = vector.extract_strided_slice %211 {offsets = [0, 64], sizes = [2, 32], strides = [1, 1]} : vector<2x128xf32> to vector<2x32xf32>
    %215 = vector.extract_strided_slice %211 {offsets = [0, 96], sizes = [2, 32], strides = [1, 1]} : vector<2x128xf32> to vector<2x32xf32>
    %216 = arith.mulf %213, %137 : vector<2x32xf32>
    %217 = arith.mulf %212, %214 : vector<2x32xf32>
    %218 = arith.addf %216, %217 : vector<2x32xf32>
    %219 = math.tanh %218 : vector<2x32xf32>
    %220 = arith.mulf %215, %219 : vector<2x32xf32>
    %cst_62 = arith.constant dense<0.000000e+00> : vector<2x128xf32>
    %221 = tpu.matmul %220, %2, %cst_62 {dimension_numbers = #tpu.dot_dimension_numbers<[1], [0], [0], [1], [0, 0, 1, 1], [], []>} : vector<2x32xf32>, vector<32x128xf32>, vector<2x128xf32> -> vector<2x128xf32>
    %222 = vector.extract_strided_slice %201 {offsets = [0, 128], sizes = [2, 128], strides = [1, 1]} : vector<2x512xf32> to vector<2x128xf32>
    %223 = arith.addf %221, %222 : vector<2x128xf32>
    %224 = arith.negf %223 : vector<2x128xf32>
    %225 = math.exp %224 : vector<2x128xf32>
    %cst_63 = arith.constant 1.000000e+00 : f32
    %226 = vector.broadcast %cst_63 : f32 to vector<2x128xf32>
    %227 = arith.addf %226, %225 : vector<2x128xf32>
    %228 = arith.divf %226, %227 : vector<2x128xf32>
    %229 = math.tanh %223 : vector<2x128xf32>
    %230 = arith.select %16, %229, %228 : vector<2x128xi1>, vector<2x128xf32>
    %231 = vector.extract_strided_slice %230 {offsets = [0, 0], sizes = [2, 32], strides = [1, 1]} : vector<2x128xf32> to vector<2x32xf32>
    %232 = vector.extract_strided_slice %230 {offsets = [0, 32], sizes = [2, 32], strides = [1, 1]} : vector<2x128xf32> to vector<2x32xf32>
    %233 = vector.extract_strided_slice %230 {offsets = [0, 64], sizes = [2, 32], strides = [1, 1]} : vector<2x128xf32> to vector<2x32xf32>
    %234 = vector.extract_strided_slice %230 {offsets = [0, 96], sizes = [2, 32], strides = [1, 1]} : vector<2x128xf32> to vector<2x32xf32>
    %235 = arith.mulf %232, %156 : vector<2x32xf32>
    %236 = arith.mulf %231, %233 : vector<2x32xf32>
    %237 = arith.addf %235, %236 : vector<2x32xf32>
    %238 = math.tanh %237 : vector<2x32xf32>
    %239 = arith.mulf %234, %238 : vector<2x32xf32>
    %cst_64 = arith.constant dense<0.000000e+00> : vector<2x128xf32>
    %240 = tpu.matmul %239, %3, %cst_64 {dimension_numbers = #tpu.dot_dimension_numbers<[1], [0], [0], [1], [0, 0, 1, 1], [], []>} : vector<2x32xf32>, vector<32x128xf32>, vector<2x128xf32> -> vector<2x128xf32>
    %241 = vector.extract_strided_slice %201 {offsets = [0, 256], sizes = [2, 128], strides = [1, 1]} : vector<2x512xf32> to vector<2x128xf32>
    %242 = arith.addf %240, %241 : vector<2x128xf32>
    %243 = arith.negf %242 : vector<2x128xf32>
    %244 = math.exp %243 : vector<2x128xf32>
    %cst_65 = arith.constant 1.000000e+00 : f32
    %245 = vector.broadcast %cst_65 : f32 to vector<2x128xf32>
    %246 = arith.addf %245, %244 : vector<2x128xf32>
    %247 = arith.divf %245, %246 : vector<2x128xf32>
    %248 = math.tanh %242 : vector<2x128xf32>
    %249 = arith.select %16, %248, %247 : vector<2x128xi1>, vector<2x128xf32>
    %250 = vector.extract_strided_slice %249 {offsets = [0, 0], sizes = [2, 32], strides = [1, 1]} : vector<2x128xf32> to vector<2x32xf32>
    %251 = vector.extract_strided_slice %249 {offsets = [0, 32], sizes = [2, 32], strides = [1, 1]} : vector<2x128xf32> to vector<2x32xf32>
    %252 = vector.extract_strided_slice %249 {offsets = [0, 64], sizes = [2, 32], strides = [1, 1]} : vector<2x128xf32> to vector<2x32xf32>
    %253 = vector.extract_strided_slice %249 {offsets = [0, 96], sizes = [2, 32], strides = [1, 1]} : vector<2x128xf32> to vector<2x32xf32>
    %254 = arith.mulf %251, %175 : vector<2x32xf32>
    %255 = arith.mulf %250, %252 : vector<2x32xf32>
    %256 = arith.addf %254, %255 : vector<2x32xf32>
    %257 = math.tanh %256 : vector<2x32xf32>
    %258 = arith.mulf %253, %257 : vector<2x32xf32>
    %cst_66 = arith.constant dense<0.000000e+00> : vector<2x128xf32>
    %259 = tpu.matmul %258, %4, %cst_66 {dimension_numbers = #tpu.dot_dimension_numbers<[1], [0], [0], [1], [0, 0, 1, 1], [], []>} : vector<2x32xf32>, vector<32x128xf32>, vector<2x128xf32> -> vector<2x128xf32>
    %260 = vector.extract_strided_slice %201 {offsets = [0, 384], sizes = [2, 128], strides = [1, 1]} : vector<2x512xf32> to vector<2x128xf32>
    %261 = arith.addf %259, %260 : vector<2x128xf32>
    %262 = arith.negf %261 : vector<2x128xf32>
    %263 = math.exp %262 : vector<2x128xf32>
    %cst_67 = arith.constant 1.000000e+00 : f32
    %264 = vector.broadcast %cst_67 : f32 to vector<2x128xf32>
    %265 = arith.addf %264, %263 : vector<2x128xf32>
    %266 = arith.divf %264, %265 : vector<2x128xf32>
    %267 = math.tanh %261 : vector<2x128xf32>
    %268 = arith.select %16, %267, %266 : vector<2x128xi1>, vector<2x128xf32>
    %269 = vector.extract_strided_slice %268 {offsets = [0, 0], sizes = [2, 32], strides = [1, 1]} : vector<2x128xf32> to vector<2x32xf32>
    %270 = vector.extract_strided_slice %268 {offsets = [0, 32], sizes = [2, 32], strides = [1, 1]} : vector<2x128xf32> to vector<2x32xf32>
    %271 = vector.extract_strided_slice %268 {offsets = [0, 64], sizes = [2, 32], strides = [1, 1]} : vector<2x128xf32> to vector<2x32xf32>
    %272 = vector.extract_strided_slice %268 {offsets = [0, 96], sizes = [2, 32], strides = [1, 1]} : vector<2x128xf32> to vector<2x32xf32>
    %273 = arith.mulf %270, %194 : vector<2x32xf32>
    %274 = arith.mulf %269, %271 : vector<2x32xf32>
    %275 = arith.addf %273, %274 : vector<2x32xf32>
    %276 = math.tanh %275 : vector<2x32xf32>
    %277 = arith.mulf %272, %276 : vector<2x32xf32>
    %278 = tpu.concatenate %220, %239, %258, %277 in 1 : vector<2x32xf32>, vector<2x32xf32>, vector<2x32xf32>, vector<2x32xf32> -> vector<2x128xf32>
    %c0_68 = arith.constant 0 : index
    %c0_69 = arith.constant 0 : index
    %279 = vector.load %arg2[%c0_68, %c0_69] : memref<129x512xf32, #tpu.memory_space<vmem>>, vector<128x512xf32>
    %cst_70 = arith.constant dense<0.000000e+00> : vector<2x512xf32>
    %280 = tpu.matmul %278, %279, %cst_70 {dimension_numbers = #tpu.dot_dimension_numbers<[1], [0], [0], [1], [0, 0, 1, 1], [], []>} : vector<2x128xf32>, vector<128x512xf32>, vector<2x512xf32> -> vector<2x512xf32>
    %281 = vector.broadcast %0 : vector<1x512xf32> to vector<2x512xf32>
    %282 = arith.addf %280, %281 : vector<2x512xf32>
    %283 = vector.extract_strided_slice %18 {offsets = [6, 0], sizes = [2, 128], strides = [1, 1]} : vector<16x128xf32> to vector<2x128xf32>
    %284 = vector.extract_strided_slice %282 {offsets = [0, 0], sizes = [2, 128], strides = [1, 1]} : vector<2x512xf32> to vector<2x128xf32>
    %285 = arith.addf %283, %284 : vector<2x128xf32>
    %286 = arith.negf %285 : vector<2x128xf32>
    %287 = math.exp %286 : vector<2x128xf32>
    %cst_71 = arith.constant 1.000000e+00 : f32
    %288 = vector.broadcast %cst_71 : f32 to vector<2x128xf32>
    %289 = arith.addf %288, %287 : vector<2x128xf32>
    %290 = arith.divf %288, %289 : vector<2x128xf32>
    %291 = math.tanh %285 : vector<2x128xf32>
    %292 = arith.select %16, %291, %290 : vector<2x128xi1>, vector<2x128xf32>
    %293 = vector.extract_strided_slice %292 {offsets = [0, 0], sizes = [2, 32], strides = [1, 1]} : vector<2x128xf32> to vector<2x32xf32>
    %294 = vector.extract_strided_slice %292 {offsets = [0, 32], sizes = [2, 32], strides = [1, 1]} : vector<2x128xf32> to vector<2x32xf32>
    %295 = vector.extract_strided_slice %292 {offsets = [0, 64], sizes = [2, 32], strides = [1, 1]} : vector<2x128xf32> to vector<2x32xf32>
    %296 = vector.extract_strided_slice %292 {offsets = [0, 96], sizes = [2, 32], strides = [1, 1]} : vector<2x128xf32> to vector<2x32xf32>
    %297 = arith.mulf %294, %218 : vector<2x32xf32>
    %298 = arith.mulf %293, %295 : vector<2x32xf32>
    %299 = arith.addf %297, %298 : vector<2x32xf32>
    %300 = math.tanh %299 : vector<2x32xf32>
    %301 = arith.mulf %296, %300 : vector<2x32xf32>
    %cst_72 = arith.constant dense<0.000000e+00> : vector<2x128xf32>
    %302 = tpu.matmul %301, %2, %cst_72 {dimension_numbers = #tpu.dot_dimension_numbers<[1], [0], [0], [1], [0, 0, 1, 1], [], []>} : vector<2x32xf32>, vector<32x128xf32>, vector<2x128xf32> -> vector<2x128xf32>
    %303 = vector.extract_strided_slice %282 {offsets = [0, 128], sizes = [2, 128], strides = [1, 1]} : vector<2x512xf32> to vector<2x128xf32>
    %304 = arith.addf %302, %303 : vector<2x128xf32>
    %305 = arith.negf %304 : vector<2x128xf32>
    %306 = math.exp %305 : vector<2x128xf32>
    %cst_73 = arith.constant 1.000000e+00 : f32
    %307 = vector.broadcast %cst_73 : f32 to vector<2x128xf32>
    %308 = arith.addf %307, %306 : vector<2x128xf32>
    %309 = arith.divf %307, %308 : vector<2x128xf32>
    %310 = math.tanh %304 : vector<2x128xf32>
    %311 = arith.select %16, %310, %309 : vector<2x128xi1>, vector<2x128xf32>
    %312 = vector.extract_strided_slice %311 {offsets = [0, 0], sizes = [2, 32], strides = [1, 1]} : vector<2x128xf32> to vector<2x32xf32>
    %313 = vector.extract_strided_slice %311 {offsets = [0, 32], sizes = [2, 32], strides = [1, 1]} : vector<2x128xf32> to vector<2x32xf32>
    %314 = vector.extract_strided_slice %311 {offsets = [0, 64], sizes = [2, 32], strides = [1, 1]} : vector<2x128xf32> to vector<2x32xf32>
    %315 = vector.extract_strided_slice %311 {offsets = [0, 96], sizes = [2, 32], strides = [1, 1]} : vector<2x128xf32> to vector<2x32xf32>
    %316 = arith.mulf %313, %237 : vector<2x32xf32>
    %317 = arith.mulf %312, %314 : vector<2x32xf32>
    %318 = arith.addf %316, %317 : vector<2x32xf32>
    %319 = math.tanh %318 : vector<2x32xf32>
    %320 = arith.mulf %315, %319 : vector<2x32xf32>
    %cst_74 = arith.constant dense<0.000000e+00> : vector<2x128xf32>
    %321 = tpu.matmul %320, %3, %cst_74 {dimension_numbers = #tpu.dot_dimension_numbers<[1], [0], [0], [1], [0, 0, 1, 1], [], []>} : vector<2x32xf32>, vector<32x128xf32>, vector<2x128xf32> -> vector<2x128xf32>
    %322 = vector.extract_strided_slice %282 {offsets = [0, 256], sizes = [2, 128], strides = [1, 1]} : vector<2x512xf32> to vector<2x128xf32>
    %323 = arith.addf %321, %322 : vector<2x128xf32>
    %324 = arith.negf %323 : vector<2x128xf32>
    %325 = math.exp %324 : vector<2x128xf32>
    %cst_75 = arith.constant 1.000000e+00 : f32
    %326 = vector.broadcast %cst_75 : f32 to vector<2x128xf32>
    %327 = arith.addf %326, %325 : vector<2x128xf32>
    %328 = arith.divf %326, %327 : vector<2x128xf32>
    %329 = math.tanh %323 : vector<2x128xf32>
    %330 = arith.select %16, %329, %328 : vector<2x128xi1>, vector<2x128xf32>
    %331 = vector.extract_strided_slice %330 {offsets = [0, 0], sizes = [2, 32], strides = [1, 1]} : vector<2x128xf32> to vector<2x32xf32>
    %332 = vector.extract_strided_slice %330 {offsets = [0, 32], sizes = [2, 32], strides = [1, 1]} : vector<2x128xf32> to vector<2x32xf32>
    %333 = vector.extract_strided_slice %330 {offsets = [0, 64], sizes = [2, 32], strides = [1, 1]} : vector<2x128xf32> to vector<2x32xf32>
    %334 = vector.extract_strided_slice %330 {offsets = [0, 96], sizes = [2, 32], strides = [1, 1]} : vector<2x128xf32> to vector<2x32xf32>
    %335 = arith.mulf %332, %256 : vector<2x32xf32>
    %336 = arith.mulf %331, %333 : vector<2x32xf32>
    %337 = arith.addf %335, %336 : vector<2x32xf32>
    %338 = math.tanh %337 : vector<2x32xf32>
    %339 = arith.mulf %334, %338 : vector<2x32xf32>
    %cst_76 = arith.constant dense<0.000000e+00> : vector<2x128xf32>
    %340 = tpu.matmul %339, %4, %cst_76 {dimension_numbers = #tpu.dot_dimension_numbers<[1], [0], [0], [1], [0, 0, 1, 1], [], []>} : vector<2x32xf32>, vector<32x128xf32>, vector<2x128xf32> -> vector<2x128xf32>
    %341 = vector.extract_strided_slice %282 {offsets = [0, 384], sizes = [2, 128], strides = [1, 1]} : vector<2x512xf32> to vector<2x128xf32>
    %342 = arith.addf %340, %341 : vector<2x128xf32>
    %343 = arith.negf %342 : vector<2x128xf32>
    %344 = math.exp %343 : vector<2x128xf32>
    %cst_77 = arith.constant 1.000000e+00 : f32
    %345 = vector.broadcast %cst_77 : f32 to vector<2x128xf32>
    %346 = arith.addf %345, %344 : vector<2x128xf32>
    %347 = arith.divf %345, %346 : vector<2x128xf32>
    %348 = math.tanh %342 : vector<2x128xf32>
    %349 = arith.select %16, %348, %347 : vector<2x128xi1>, vector<2x128xf32>
    %350 = vector.extract_strided_slice %349 {offsets = [0, 0], sizes = [2, 32], strides = [1, 1]} : vector<2x128xf32> to vector<2x32xf32>
    %351 = vector.extract_strided_slice %349 {offsets = [0, 32], sizes = [2, 32], strides = [1, 1]} : vector<2x128xf32> to vector<2x32xf32>
    %352 = vector.extract_strided_slice %349 {offsets = [0, 64], sizes = [2, 32], strides = [1, 1]} : vector<2x128xf32> to vector<2x32xf32>
    %353 = vector.extract_strided_slice %349 {offsets = [0, 96], sizes = [2, 32], strides = [1, 1]} : vector<2x128xf32> to vector<2x32xf32>
    %354 = arith.mulf %351, %275 : vector<2x32xf32>
    %355 = arith.mulf %350, %352 : vector<2x32xf32>
    %356 = arith.addf %354, %355 : vector<2x32xf32>
    %357 = math.tanh %356 : vector<2x32xf32>
    %358 = arith.mulf %353, %357 : vector<2x32xf32>
    %359 = tpu.concatenate %301, %320, %339, %358 in 1 : vector<2x32xf32>, vector<2x32xf32>, vector<2x32xf32>, vector<2x32xf32> -> vector<2x128xf32>
    %c0_78 = arith.constant 0 : index
    %c0_79 = arith.constant 0 : index
    %360 = vector.load %arg2[%c0_78, %c0_79] : memref<129x512xf32, #tpu.memory_space<vmem>>, vector<128x512xf32>
    %cst_80 = arith.constant dense<0.000000e+00> : vector<2x512xf32>
    %361 = tpu.matmul %359, %360, %cst_80 {dimension_numbers = #tpu.dot_dimension_numbers<[1], [0], [0], [1], [0, 0, 1, 1], [], []>} : vector<2x128xf32>, vector<128x512xf32>, vector<2x512xf32> -> vector<2x512xf32>
    %362 = vector.broadcast %0 : vector<1x512xf32> to vector<2x512xf32>
    %363 = arith.addf %361, %362 : vector<2x512xf32>
    %364 = vector.extract_strided_slice %18 {offsets = [8, 0], sizes = [2, 128], strides = [1, 1]} : vector<16x128xf32> to vector<2x128xf32>
    %365 = vector.extract_strided_slice %363 {offsets = [0, 0], sizes = [2, 128], strides = [1, 1]} : vector<2x512xf32> to vector<2x128xf32>
    %366 = arith.addf %364, %365 : vector<2x128xf32>
    %367 = arith.negf %366 : vector<2x128xf32>
    %368 = math.exp %367 : vector<2x128xf32>
    %cst_81 = arith.constant 1.000000e+00 : f32
    %369 = vector.broadcast %cst_81 : f32 to vector<2x128xf32>
    %370 = arith.addf %369, %368 : vector<2x128xf32>
    %371 = arith.divf %369, %370 : vector<2x128xf32>
    %372 = math.tanh %366 : vector<2x128xf32>
    %373 = arith.select %16, %372, %371 : vector<2x128xi1>, vector<2x128xf32>
    %374 = vector.extract_strided_slice %373 {offsets = [0, 0], sizes = [2, 32], strides = [1, 1]} : vector<2x128xf32> to vector<2x32xf32>
    %375 = vector.extract_strided_slice %373 {offsets = [0, 32], sizes = [2, 32], strides = [1, 1]} : vector<2x128xf32> to vector<2x32xf32>
    %376 = vector.extract_strided_slice %373 {offsets = [0, 64], sizes = [2, 32], strides = [1, 1]} : vector<2x128xf32> to vector<2x32xf32>
    %377 = vector.extract_strided_slice %373 {offsets = [0, 96], sizes = [2, 32], strides = [1, 1]} : vector<2x128xf32> to vector<2x32xf32>
    %378 = arith.mulf %375, %299 : vector<2x32xf32>
    %379 = arith.mulf %374, %376 : vector<2x32xf32>
    %380 = arith.addf %378, %379 : vector<2x32xf32>
    %381 = math.tanh %380 : vector<2x32xf32>
    %382 = arith.mulf %377, %381 : vector<2x32xf32>
    %cst_82 = arith.constant dense<0.000000e+00> : vector<2x128xf32>
    %383 = tpu.matmul %382, %2, %cst_82 {dimension_numbers = #tpu.dot_dimension_numbers<[1], [0], [0], [1], [0, 0, 1, 1], [], []>} : vector<2x32xf32>, vector<32x128xf32>, vector<2x128xf32> -> vector<2x128xf32>
    %384 = vector.extract_strided_slice %363 {offsets = [0, 128], sizes = [2, 128], strides = [1, 1]} : vector<2x512xf32> to vector<2x128xf32>
    %385 = arith.addf %383, %384 : vector<2x128xf32>
    %386 = arith.negf %385 : vector<2x128xf32>
    %387 = math.exp %386 : vector<2x128xf32>
    %cst_83 = arith.constant 1.000000e+00 : f32
    %388 = vector.broadcast %cst_83 : f32 to vector<2x128xf32>
    %389 = arith.addf %388, %387 : vector<2x128xf32>
    %390 = arith.divf %388, %389 : vector<2x128xf32>
    %391 = math.tanh %385 : vector<2x128xf32>
    %392 = arith.select %16, %391, %390 : vector<2x128xi1>, vector<2x128xf32>
    %393 = vector.extract_strided_slice %392 {offsets = [0, 0], sizes = [2, 32], strides = [1, 1]} : vector<2x128xf32> to vector<2x32xf32>
    %394 = vector.extract_strided_slice %392 {offsets = [0, 32], sizes = [2, 32], strides = [1, 1]} : vector<2x128xf32> to vector<2x32xf32>
    %395 = vector.extract_strided_slice %392 {offsets = [0, 64], sizes = [2, 32], strides = [1, 1]} : vector<2x128xf32> to vector<2x32xf32>
    %396 = vector.extract_strided_slice %392 {offsets = [0, 96], sizes = [2, 32], strides = [1, 1]} : vector<2x128xf32> to vector<2x32xf32>
    %397 = arith.mulf %394, %318 : vector<2x32xf32>
    %398 = arith.mulf %393, %395 : vector<2x32xf32>
    %399 = arith.addf %397, %398 : vector<2x32xf32>
    %400 = math.tanh %399 : vector<2x32xf32>
    %401 = arith.mulf %396, %400 : vector<2x32xf32>
    %cst_84 = arith.constant dense<0.000000e+00> : vector<2x128xf32>
    %402 = tpu.matmul %401, %3, %cst_84 {dimension_numbers = #tpu.dot_dimension_numbers<[1], [0], [0], [1], [0, 0, 1, 1], [], []>} : vector<2x32xf32>, vector<32x128xf32>, vector<2x128xf32> -> vector<2x128xf32>
    %403 = vector.extract_strided_slice %363 {offsets = [0, 256], sizes = [2, 128], strides = [1, 1]} : vector<2x512xf32> to vector<2x128xf32>
    %404 = arith.addf %402, %403 : vector<2x128xf32>
    %405 = arith.negf %404 : vector<2x128xf32>
    %406 = math.exp %405 : vector<2x128xf32>
    %cst_85 = arith.constant 1.000000e+00 : f32
    %407 = vector.broadcast %cst_85 : f32 to vector<2x128xf32>
    %408 = arith.addf %407, %406 : vector<2x128xf32>
    %409 = arith.divf %407, %408 : vector<2x128xf32>
    %410 = math.tanh %404 : vector<2x128xf32>
    %411 = arith.select %16, %410, %409 : vector<2x128xi1>, vector<2x128xf32>
    %412 = vector.extract_strided_slice %411 {offsets = [0, 0], sizes = [2, 32], strides = [1, 1]} : vector<2x128xf32> to vector<2x32xf32>
    %413 = vector.extract_strided_slice %411 {offsets = [0, 32], sizes = [2, 32], strides = [1, 1]} : vector<2x128xf32> to vector<2x32xf32>
    %414 = vector.extract_strided_slice %411 {offsets = [0, 64], sizes = [2, 32], strides = [1, 1]} : vector<2x128xf32> to vector<2x32xf32>
    %415 = vector.extract_strided_slice %411 {offsets = [0, 96], sizes = [2, 32], strides = [1, 1]} : vector<2x128xf32> to vector<2x32xf32>
    %416 = arith.mulf %413, %337 : vector<2x32xf32>
    %417 = arith.mulf %412, %414 : vector<2x32xf32>
    %418 = arith.addf %416, %417 : vector<2x32xf32>
    %419 = math.tanh %418 : vector<2x32xf32>
    %420 = arith.mulf %415, %419 : vector<2x32xf32>
    %cst_86 = arith.constant dense<0.000000e+00> : vector<2x128xf32>
    %421 = tpu.matmul %420, %4, %cst_86 {dimension_numbers = #tpu.dot_dimension_numbers<[1], [0], [0], [1], [0, 0, 1, 1], [], []>} : vector<2x32xf32>, vector<32x128xf32>, vector<2x128xf32> -> vector<2x128xf32>
    %422 = vector.extract_strided_slice %363 {offsets = [0, 384], sizes = [2, 128], strides = [1, 1]} : vector<2x512xf32> to vector<2x128xf32>
    %423 = arith.addf %421, %422 : vector<2x128xf32>
    %424 = arith.negf %423 : vector<2x128xf32>
    %425 = math.exp %424 : vector<2x128xf32>
    %cst_87 = arith.constant 1.000000e+00 : f32
    %426 = vector.broadcast %cst_87 : f32 to vector<2x128xf32>
    %427 = arith.addf %426, %425 : vector<2x128xf32>
    %428 = arith.divf %426, %427 : vector<2x128xf32>
    %429 = math.tanh %423 : vector<2x128xf32>
    %430 = arith.select %16, %429, %428 : vector<2x128xi1>, vector<2x128xf32>
    %431 = vector.extract_strided_slice %430 {offsets = [0, 0], sizes = [2, 32], strides = [1, 1]} : vector<2x128xf32> to vector<2x32xf32>
    %432 = vector.extract_strided_slice %430 {offsets = [0, 32], sizes = [2, 32], strides = [1, 1]} : vector<2x128xf32> to vector<2x32xf32>
    %433 = vector.extract_strided_slice %430 {offsets = [0, 64], sizes = [2, 32], strides = [1, 1]} : vector<2x128xf32> to vector<2x32xf32>
    %434 = vector.extract_strided_slice %430 {offsets = [0, 96], sizes = [2, 32], strides = [1, 1]} : vector<2x128xf32> to vector<2x32xf32>
    %435 = arith.mulf %432, %356 : vector<2x32xf32>
    %436 = arith.mulf %431, %433 : vector<2x32xf32>
    %437 = arith.addf %435, %436 : vector<2x32xf32>
    %438 = math.tanh %437 : vector<2x32xf32>
    %439 = arith.mulf %434, %438 : vector<2x32xf32>
    %440 = tpu.concatenate %382, %401, %420, %439 in 1 : vector<2x32xf32>, vector<2x32xf32>, vector<2x32xf32>, vector<2x32xf32> -> vector<2x128xf32>
    %c0_88 = arith.constant 0 : index
    %c0_89 = arith.constant 0 : index
    %441 = vector.load %arg2[%c0_88, %c0_89] : memref<129x512xf32, #tpu.memory_space<vmem>>, vector<128x512xf32>
    %cst_90 = arith.constant dense<0.000000e+00> : vector<2x512xf32>
    %442 = tpu.matmul %440, %441, %cst_90 {dimension_numbers = #tpu.dot_dimension_numbers<[1], [0], [0], [1], [0, 0, 1, 1], [], []>} : vector<2x128xf32>, vector<128x512xf32>, vector<2x512xf32> -> vector<2x512xf32>
    %443 = vector.broadcast %0 : vector<1x512xf32> to vector<2x512xf32>
    %444 = arith.addf %442, %443 : vector<2x512xf32>
    %445 = vector.extract_strided_slice %18 {offsets = [10, 0], sizes = [2, 128], strides = [1, 1]} : vector<16x128xf32> to vector<2x128xf32>
    %446 = vector.extract_strided_slice %444 {offsets = [0, 0], sizes = [2, 128], strides = [1, 1]} : vector<2x512xf32> to vector<2x128xf32>
    %447 = arith.addf %445, %446 : vector<2x128xf32>
    %448 = arith.negf %447 : vector<2x128xf32>
    %449 = math.exp %448 : vector<2x128xf32>
    %cst_91 = arith.constant 1.000000e+00 : f32
    %450 = vector.broadcast %cst_91 : f32 to vector<2x128xf32>
    %451 = arith.addf %450, %449 : vector<2x128xf32>
    %452 = arith.divf %450, %451 : vector<2x128xf32>
    %453 = math.tanh %447 : vector<2x128xf32>
    %454 = arith.select %16, %453, %452 : vector<2x128xi1>, vector<2x128xf32>
    %455 = vector.extract_strided_slice %454 {offsets = [0, 0], sizes = [2, 32], strides = [1, 1]} : vector<2x128xf32> to vector<2x32xf32>
    %456 = vector.extract_strided_slice %454 {offsets = [0, 32], sizes = [2, 32], strides = [1, 1]} : vector<2x128xf32> to vector<2x32xf32>
    %457 = vector.extract_strided_slice %454 {offsets = [0, 64], sizes = [2, 32], strides = [1, 1]} : vector<2x128xf32> to vector<2x32xf32>
    %458 = vector.extract_strided_slice %454 {offsets = [0, 96], sizes = [2, 32], strides = [1, 1]} : vector<2x128xf32> to vector<2x32xf32>
    %459 = arith.mulf %456, %380 : vector<2x32xf32>
    %460 = arith.mulf %455, %457 : vector<2x32xf32>
    %461 = arith.addf %459, %460 : vector<2x32xf32>
    %462 = math.tanh %461 : vector<2x32xf32>
    %463 = arith.mulf %458, %462 : vector<2x32xf32>
    %cst_92 = arith.constant dense<0.000000e+00> : vector<2x128xf32>
    %464 = tpu.matmul %463, %2, %cst_92 {dimension_numbers = #tpu.dot_dimension_numbers<[1], [0], [0], [1], [0, 0, 1, 1], [], []>} : vector<2x32xf32>, vector<32x128xf32>, vector<2x128xf32> -> vector<2x128xf32>
    %465 = vector.extract_strided_slice %444 {offsets = [0, 128], sizes = [2, 128], strides = [1, 1]} : vector<2x512xf32> to vector<2x128xf32>
    %466 = arith.addf %464, %465 : vector<2x128xf32>
    %467 = arith.negf %466 : vector<2x128xf32>
    %468 = math.exp %467 : vector<2x128xf32>
    %cst_93 = arith.constant 1.000000e+00 : f32
    %469 = vector.broadcast %cst_93 : f32 to vector<2x128xf32>
    %470 = arith.addf %469, %468 : vector<2x128xf32>
    %471 = arith.divf %469, %470 : vector<2x128xf32>
    %472 = math.tanh %466 : vector<2x128xf32>
    %473 = arith.select %16, %472, %471 : vector<2x128xi1>, vector<2x128xf32>
    %474 = vector.extract_strided_slice %473 {offsets = [0, 0], sizes = [2, 32], strides = [1, 1]} : vector<2x128xf32> to vector<2x32xf32>
    %475 = vector.extract_strided_slice %473 {offsets = [0, 32], sizes = [2, 32], strides = [1, 1]} : vector<2x128xf32> to vector<2x32xf32>
    %476 = vector.extract_strided_slice %473 {offsets = [0, 64], sizes = [2, 32], strides = [1, 1]} : vector<2x128xf32> to vector<2x32xf32>
    %477 = vector.extract_strided_slice %473 {offsets = [0, 96], sizes = [2, 32], strides = [1, 1]} : vector<2x128xf32> to vector<2x32xf32>
    %478 = arith.mulf %475, %399 : vector<2x32xf32>
    %479 = arith.mulf %474, %476 : vector<2x32xf32>
    %480 = arith.addf %478, %479 : vector<2x32xf32>
    %481 = math.tanh %480 : vector<2x32xf32>
    %482 = arith.mulf %477, %481 : vector<2x32xf32>
    %cst_94 = arith.constant dense<0.000000e+00> : vector<2x128xf32>
    %483 = tpu.matmul %482, %3, %cst_94 {dimension_numbers = #tpu.dot_dimension_numbers<[1], [0], [0], [1], [0, 0, 1, 1], [], []>} : vector<2x32xf32>, vector<32x128xf32>, vector<2x128xf32> -> vector<2x128xf32>
    %484 = vector.extract_strided_slice %444 {offsets = [0, 256], sizes = [2, 128], strides = [1, 1]} : vector<2x512xf32> to vector<2x128xf32>
    %485 = arith.addf %483, %484 : vector<2x128xf32>
    %486 = arith.negf %485 : vector<2x128xf32>
    %487 = math.exp %486 : vector<2x128xf32>
    %cst_95 = arith.constant 1.000000e+00 : f32
    %488 = vector.broadcast %cst_95 : f32 to vector<2x128xf32>
    %489 = arith.addf %488, %487 : vector<2x128xf32>
    %490 = arith.divf %488, %489 : vector<2x128xf32>
    %491 = math.tanh %485 : vector<2x128xf32>
    %492 = arith.select %16, %491, %490 : vector<2x128xi1>, vector<2x128xf32>
    %493 = vector.extract_strided_slice %492 {offsets = [0, 0], sizes = [2, 32], strides = [1, 1]} : vector<2x128xf32> to vector<2x32xf32>
    %494 = vector.extract_strided_slice %492 {offsets = [0, 32], sizes = [2, 32], strides = [1, 1]} : vector<2x128xf32> to vector<2x32xf32>
    %495 = vector.extract_strided_slice %492 {offsets = [0, 64], sizes = [2, 32], strides = [1, 1]} : vector<2x128xf32> to vector<2x32xf32>
    %496 = vector.extract_strided_slice %492 {offsets = [0, 96], sizes = [2, 32], strides = [1, 1]} : vector<2x128xf32> to vector<2x32xf32>
    %497 = arith.mulf %494, %418 : vector<2x32xf32>
    %498 = arith.mulf %493, %495 : vector<2x32xf32>
    %499 = arith.addf %497, %498 : vector<2x32xf32>
    %500 = math.tanh %499 : vector<2x32xf32>
    %501 = arith.mulf %496, %500 : vector<2x32xf32>
    %cst_96 = arith.constant dense<0.000000e+00> : vector<2x128xf32>
    %502 = tpu.matmul %501, %4, %cst_96 {dimension_numbers = #tpu.dot_dimension_numbers<[1], [0], [0], [1], [0, 0, 1, 1], [], []>} : vector<2x32xf32>, vector<32x128xf32>, vector<2x128xf32> -> vector<2x128xf32>
    %503 = vector.extract_strided_slice %444 {offsets = [0, 384], sizes = [2, 128], strides = [1, 1]} : vector<2x512xf32> to vector<2x128xf32>
    %504 = arith.addf %502, %503 : vector<2x128xf32>
    %505 = arith.negf %504 : vector<2x128xf32>
    %506 = math.exp %505 : vector<2x128xf32>
    %cst_97 = arith.constant 1.000000e+00 : f32
    %507 = vector.broadcast %cst_97 : f32 to vector<2x128xf32>
    %508 = arith.addf %507, %506 : vector<2x128xf32>
    %509 = arith.divf %507, %508 : vector<2x128xf32>
    %510 = math.tanh %504 : vector<2x128xf32>
    %511 = arith.select %16, %510, %509 : vector<2x128xi1>, vector<2x128xf32>
    %512 = vector.extract_strided_slice %511 {offsets = [0, 0], sizes = [2, 32], strides = [1, 1]} : vector<2x128xf32> to vector<2x32xf32>
    %513 = vector.extract_strided_slice %511 {offsets = [0, 32], sizes = [2, 32], strides = [1, 1]} : vector<2x128xf32> to vector<2x32xf32>
    %514 = vector.extract_strided_slice %511 {offsets = [0, 64], sizes = [2, 32], strides = [1, 1]} : vector<2x128xf32> to vector<2x32xf32>
    %515 = vector.extract_strided_slice %511 {offsets = [0, 96], sizes = [2, 32], strides = [1, 1]} : vector<2x128xf32> to vector<2x32xf32>
    %516 = arith.mulf %513, %437 : vector<2x32xf32>
    %517 = arith.mulf %512, %514 : vector<2x32xf32>
    %518 = arith.addf %516, %517 : vector<2x32xf32>
    %519 = math.tanh %518 : vector<2x32xf32>
    %520 = arith.mulf %515, %519 : vector<2x32xf32>
    %521 = tpu.concatenate %463, %482, %501, %520 in 1 : vector<2x32xf32>, vector<2x32xf32>, vector<2x32xf32>, vector<2x32xf32> -> vector<2x128xf32>
    %c0_98 = arith.constant 0 : index
    %c0_99 = arith.constant 0 : index
    %522 = vector.load %arg2[%c0_98, %c0_99] : memref<129x512xf32, #tpu.memory_space<vmem>>, vector<128x512xf32>
    %cst_100 = arith.constant dense<0.000000e+00> : vector<2x512xf32>
    %523 = tpu.matmul %521, %522, %cst_100 {dimension_numbers = #tpu.dot_dimension_numbers<[1], [0], [0], [1], [0, 0, 1, 1], [], []>} : vector<2x128xf32>, vector<128x512xf32>, vector<2x512xf32> -> vector<2x512xf32>
    %524 = vector.broadcast %0 : vector<1x512xf32> to vector<2x512xf32>
    %525 = arith.addf %523, %524 : vector<2x512xf32>
    %526 = vector.extract_strided_slice %18 {offsets = [12, 0], sizes = [2, 128], strides = [1, 1]} : vector<16x128xf32> to vector<2x128xf32>
    %527 = vector.extract_strided_slice %525 {offsets = [0, 0], sizes = [2, 128], strides = [1, 1]} : vector<2x512xf32> to vector<2x128xf32>
    %528 = arith.addf %526, %527 : vector<2x128xf32>
    %529 = arith.negf %528 : vector<2x128xf32>
    %530 = math.exp %529 : vector<2x128xf32>
    %cst_101 = arith.constant 1.000000e+00 : f32
    %531 = vector.broadcast %cst_101 : f32 to vector<2x128xf32>
    %532 = arith.addf %531, %530 : vector<2x128xf32>
    %533 = arith.divf %531, %532 : vector<2x128xf32>
    %534 = math.tanh %528 : vector<2x128xf32>
    %535 = arith.select %16, %534, %533 : vector<2x128xi1>, vector<2x128xf32>
    %536 = vector.extract_strided_slice %535 {offsets = [0, 0], sizes = [2, 32], strides = [1, 1]} : vector<2x128xf32> to vector<2x32xf32>
    %537 = vector.extract_strided_slice %535 {offsets = [0, 32], sizes = [2, 32], strides = [1, 1]} : vector<2x128xf32> to vector<2x32xf32>
    %538 = vector.extract_strided_slice %535 {offsets = [0, 64], sizes = [2, 32], strides = [1, 1]} : vector<2x128xf32> to vector<2x32xf32>
    %539 = vector.extract_strided_slice %535 {offsets = [0, 96], sizes = [2, 32], strides = [1, 1]} : vector<2x128xf32> to vector<2x32xf32>
    %540 = arith.mulf %537, %461 : vector<2x32xf32>
    %541 = arith.mulf %536, %538 : vector<2x32xf32>
    %542 = arith.addf %540, %541 : vector<2x32xf32>
    %543 = math.tanh %542 : vector<2x32xf32>
    %544 = arith.mulf %539, %543 : vector<2x32xf32>
    %cst_102 = arith.constant dense<0.000000e+00> : vector<2x128xf32>
    %545 = tpu.matmul %544, %2, %cst_102 {dimension_numbers = #tpu.dot_dimension_numbers<[1], [0], [0], [1], [0, 0, 1, 1], [], []>} : vector<2x32xf32>, vector<32x128xf32>, vector<2x128xf32> -> vector<2x128xf32>
    %546 = vector.extract_strided_slice %525 {offsets = [0, 128], sizes = [2, 128], strides = [1, 1]} : vector<2x512xf32> to vector<2x128xf32>
    %547 = arith.addf %545, %546 : vector<2x128xf32>
    %548 = arith.negf %547 : vector<2x128xf32>
    %549 = math.exp %548 : vector<2x128xf32>
    %cst_103 = arith.constant 1.000000e+00 : f32
    %550 = vector.broadcast %cst_103 : f32 to vector<2x128xf32>
    %551 = arith.addf %550, %549 : vector<2x128xf32>
    %552 = arith.divf %550, %551 : vector<2x128xf32>
    %553 = math.tanh %547 : vector<2x128xf32>
    %554 = arith.select %16, %553, %552 : vector<2x128xi1>, vector<2x128xf32>
    %555 = vector.extract_strided_slice %554 {offsets = [0, 0], sizes = [2, 32], strides = [1, 1]} : vector<2x128xf32> to vector<2x32xf32>
    %556 = vector.extract_strided_slice %554 {offsets = [0, 32], sizes = [2, 32], strides = [1, 1]} : vector<2x128xf32> to vector<2x32xf32>
    %557 = vector.extract_strided_slice %554 {offsets = [0, 64], sizes = [2, 32], strides = [1, 1]} : vector<2x128xf32> to vector<2x32xf32>
    %558 = vector.extract_strided_slice %554 {offsets = [0, 96], sizes = [2, 32], strides = [1, 1]} : vector<2x128xf32> to vector<2x32xf32>
    %559 = arith.mulf %556, %480 : vector<2x32xf32>
    %560 = arith.mulf %555, %557 : vector<2x32xf32>
    %561 = arith.addf %559, %560 : vector<2x32xf32>
    %562 = math.tanh %561 : vector<2x32xf32>
    %563 = arith.mulf %558, %562 : vector<2x32xf32>
    %cst_104 = arith.constant dense<0.000000e+00> : vector<2x128xf32>
    %564 = tpu.matmul %563, %3, %cst_104 {dimension_numbers = #tpu.dot_dimension_numbers<[1], [0], [0], [1], [0, 0, 1, 1], [], []>} : vector<2x32xf32>, vector<32x128xf32>, vector<2x128xf32> -> vector<2x128xf32>
    %565 = vector.extract_strided_slice %525 {offsets = [0, 256], sizes = [2, 128], strides = [1, 1]} : vector<2x512xf32> to vector<2x128xf32>
    %566 = arith.addf %564, %565 : vector<2x128xf32>
    %567 = arith.negf %566 : vector<2x128xf32>
    %568 = math.exp %567 : vector<2x128xf32>
    %cst_105 = arith.constant 1.000000e+00 : f32
    %569 = vector.broadcast %cst_105 : f32 to vector<2x128xf32>
    %570 = arith.addf %569, %568 : vector<2x128xf32>
    %571 = arith.divf %569, %570 : vector<2x128xf32>
    %572 = math.tanh %566 : vector<2x128xf32>
    %573 = arith.select %16, %572, %571 : vector<2x128xi1>, vector<2x128xf32>
    %574 = vector.extract_strided_slice %573 {offsets = [0, 0], sizes = [2, 32], strides = [1, 1]} : vector<2x128xf32> to vector<2x32xf32>
    %575 = vector.extract_strided_slice %573 {offsets = [0, 32], sizes = [2, 32], strides = [1, 1]} : vector<2x128xf32> to vector<2x32xf32>
    %576 = vector.extract_strided_slice %573 {offsets = [0, 64], sizes = [2, 32], strides = [1, 1]} : vector<2x128xf32> to vector<2x32xf32>
    %577 = vector.extract_strided_slice %573 {offsets = [0, 96], sizes = [2, 32], strides = [1, 1]} : vector<2x128xf32> to vector<2x32xf32>
    %578 = arith.mulf %575, %499 : vector<2x32xf32>
    %579 = arith.mulf %574, %576 : vector<2x32xf32>
    %580 = arith.addf %578, %579 : vector<2x32xf32>
    %581 = math.tanh %580 : vector<2x32xf32>
    %582 = arith.mulf %577, %581 : vector<2x32xf32>
    %cst_106 = arith.constant dense<0.000000e+00> : vector<2x128xf32>
    %583 = tpu.matmul %582, %4, %cst_106 {dimension_numbers = #tpu.dot_dimension_numbers<[1], [0], [0], [1], [0, 0, 1, 1], [], []>} : vector<2x32xf32>, vector<32x128xf32>, vector<2x128xf32> -> vector<2x128xf32>
    %584 = vector.extract_strided_slice %525 {offsets = [0, 384], sizes = [2, 128], strides = [1, 1]} : vector<2x512xf32> to vector<2x128xf32>
    %585 = arith.addf %583, %584 : vector<2x128xf32>
    %586 = arith.negf %585 : vector<2x128xf32>
    %587 = math.exp %586 : vector<2x128xf32>
    %cst_107 = arith.constant 1.000000e+00 : f32
    %588 = vector.broadcast %cst_107 : f32 to vector<2x128xf32>
    %589 = arith.addf %588, %587 : vector<2x128xf32>
    %590 = arith.divf %588, %589 : vector<2x128xf32>
    %591 = math.tanh %585 : vector<2x128xf32>
    %592 = arith.select %16, %591, %590 : vector<2x128xi1>, vector<2x128xf32>
    %593 = vector.extract_strided_slice %592 {offsets = [0, 0], sizes = [2, 32], strides = [1, 1]} : vector<2x128xf32> to vector<2x32xf32>
    %594 = vector.extract_strided_slice %592 {offsets = [0, 32], sizes = [2, 32], strides = [1, 1]} : vector<2x128xf32> to vector<2x32xf32>
    %595 = vector.extract_strided_slice %592 {offsets = [0, 64], sizes = [2, 32], strides = [1, 1]} : vector<2x128xf32> to vector<2x32xf32>
    %596 = vector.extract_strided_slice %592 {offsets = [0, 96], sizes = [2, 32], strides = [1, 1]} : vector<2x128xf32> to vector<2x32xf32>
    %597 = arith.mulf %594, %518 : vector<2x32xf32>
    %598 = arith.mulf %593, %595 : vector<2x32xf32>
    %599 = arith.addf %597, %598 : vector<2x32xf32>
    %600 = math.tanh %599 : vector<2x32xf32>
    %601 = arith.mulf %596, %600 : vector<2x32xf32>
    %602 = tpu.concatenate %544, %563, %582, %601 in 1 : vector<2x32xf32>, vector<2x32xf32>, vector<2x32xf32>, vector<2x32xf32> -> vector<2x128xf32>
    %c0_108 = arith.constant 0 : index
    %c0_109 = arith.constant 0 : index
    %603 = vector.load %arg2[%c0_108, %c0_109] : memref<129x512xf32, #tpu.memory_space<vmem>>, vector<128x512xf32>
    %cst_110 = arith.constant dense<0.000000e+00> : vector<2x512xf32>
    %604 = tpu.matmul %602, %603, %cst_110 {dimension_numbers = #tpu.dot_dimension_numbers<[1], [0], [0], [1], [0, 0, 1, 1], [], []>} : vector<2x128xf32>, vector<128x512xf32>, vector<2x512xf32> -> vector<2x512xf32>
    %605 = vector.broadcast %0 : vector<1x512xf32> to vector<2x512xf32>
    %606 = arith.addf %604, %605 : vector<2x512xf32>
    %607 = vector.extract_strided_slice %18 {offsets = [14, 0], sizes = [2, 128], strides = [1, 1]} : vector<16x128xf32> to vector<2x128xf32>
    %608 = vector.extract_strided_slice %606 {offsets = [0, 0], sizes = [2, 128], strides = [1, 1]} : vector<2x512xf32> to vector<2x128xf32>
    %609 = arith.addf %607, %608 : vector<2x128xf32>
    %610 = arith.negf %609 : vector<2x128xf32>
    %611 = math.exp %610 : vector<2x128xf32>
    %cst_111 = arith.constant 1.000000e+00 : f32
    %612 = vector.broadcast %cst_111 : f32 to vector<2x128xf32>
    %613 = arith.addf %612, %611 : vector<2x128xf32>
    %614 = arith.divf %612, %613 : vector<2x128xf32>
    %615 = math.tanh %609 : vector<2x128xf32>
    %616 = arith.select %16, %615, %614 : vector<2x128xi1>, vector<2x128xf32>
    %617 = vector.extract_strided_slice %616 {offsets = [0, 0], sizes = [2, 32], strides = [1, 1]} : vector<2x128xf32> to vector<2x32xf32>
    %618 = vector.extract_strided_slice %616 {offsets = [0, 32], sizes = [2, 32], strides = [1, 1]} : vector<2x128xf32> to vector<2x32xf32>
    %619 = vector.extract_strided_slice %616 {offsets = [0, 64], sizes = [2, 32], strides = [1, 1]} : vector<2x128xf32> to vector<2x32xf32>
    %620 = vector.extract_strided_slice %616 {offsets = [0, 96], sizes = [2, 32], strides = [1, 1]} : vector<2x128xf32> to vector<2x32xf32>
    %621 = arith.mulf %618, %542 : vector<2x32xf32>
    %622 = arith.mulf %617, %619 : vector<2x32xf32>
    %623 = arith.addf %621, %622 : vector<2x32xf32>
    %624 = math.tanh %623 : vector<2x32xf32>
    %625 = arith.mulf %620, %624 : vector<2x32xf32>
    %cst_112 = arith.constant dense<0.000000e+00> : vector<2x128xf32>
    %626 = tpu.matmul %625, %2, %cst_112 {dimension_numbers = #tpu.dot_dimension_numbers<[1], [0], [0], [1], [0, 0, 1, 1], [], []>} : vector<2x32xf32>, vector<32x128xf32>, vector<2x128xf32> -> vector<2x128xf32>
    %627 = vector.extract_strided_slice %606 {offsets = [0, 128], sizes = [2, 128], strides = [1, 1]} : vector<2x512xf32> to vector<2x128xf32>
    %628 = arith.addf %626, %627 : vector<2x128xf32>
    %629 = arith.negf %628 : vector<2x128xf32>
    %630 = math.exp %629 : vector<2x128xf32>
    %cst_113 = arith.constant 1.000000e+00 : f32
    %631 = vector.broadcast %cst_113 : f32 to vector<2x128xf32>
    %632 = arith.addf %631, %630 : vector<2x128xf32>
    %633 = arith.divf %631, %632 : vector<2x128xf32>
    %634 = math.tanh %628 : vector<2x128xf32>
    %635 = arith.select %16, %634, %633 : vector<2x128xi1>, vector<2x128xf32>
    %636 = vector.extract_strided_slice %635 {offsets = [0, 0], sizes = [2, 32], strides = [1, 1]} : vector<2x128xf32> to vector<2x32xf32>
    %637 = vector.extract_strided_slice %635 {offsets = [0, 32], sizes = [2, 32], strides = [1, 1]} : vector<2x128xf32> to vector<2x32xf32>
    %638 = vector.extract_strided_slice %635 {offsets = [0, 64], sizes = [2, 32], strides = [1, 1]} : vector<2x128xf32> to vector<2x32xf32>
    %639 = vector.extract_strided_slice %635 {offsets = [0, 96], sizes = [2, 32], strides = [1, 1]} : vector<2x128xf32> to vector<2x32xf32>
    %640 = arith.mulf %637, %561 : vector<2x32xf32>
    %641 = arith.mulf %636, %638 : vector<2x32xf32>
    %642 = arith.addf %640, %641 : vector<2x32xf32>
    %643 = math.tanh %642 : vector<2x32xf32>
    %644 = arith.mulf %639, %643 : vector<2x32xf32>
    %cst_114 = arith.constant dense<0.000000e+00> : vector<2x128xf32>
    %645 = tpu.matmul %644, %3, %cst_114 {dimension_numbers = #tpu.dot_dimension_numbers<[1], [0], [0], [1], [0, 0, 1, 1], [], []>} : vector<2x32xf32>, vector<32x128xf32>, vector<2x128xf32> -> vector<2x128xf32>
    %646 = vector.extract_strided_slice %606 {offsets = [0, 256], sizes = [2, 128], strides = [1, 1]} : vector<2x512xf32> to vector<2x128xf32>
    %647 = arith.addf %645, %646 : vector<2x128xf32>
    %648 = arith.negf %647 : vector<2x128xf32>
    %649 = math.exp %648 : vector<2x128xf32>
    %cst_115 = arith.constant 1.000000e+00 : f32
    %650 = vector.broadcast %cst_115 : f32 to vector<2x128xf32>
    %651 = arith.addf %650, %649 : vector<2x128xf32>
    %652 = arith.divf %650, %651 : vector<2x128xf32>
    %653 = math.tanh %647 : vector<2x128xf32>
    %654 = arith.select %16, %653, %652 : vector<2x128xi1>, vector<2x128xf32>
    %655 = vector.extract_strided_slice %654 {offsets = [0, 0], sizes = [2, 32], strides = [1, 1]} : vector<2x128xf32> to vector<2x32xf32>
    %656 = vector.extract_strided_slice %654 {offsets = [0, 32], sizes = [2, 32], strides = [1, 1]} : vector<2x128xf32> to vector<2x32xf32>
    %657 = vector.extract_strided_slice %654 {offsets = [0, 64], sizes = [2, 32], strides = [1, 1]} : vector<2x128xf32> to vector<2x32xf32>
    %658 = vector.extract_strided_slice %654 {offsets = [0, 96], sizes = [2, 32], strides = [1, 1]} : vector<2x128xf32> to vector<2x32xf32>
    %659 = arith.mulf %656, %580 : vector<2x32xf32>
    %660 = arith.mulf %655, %657 : vector<2x32xf32>
    %661 = arith.addf %659, %660 : vector<2x32xf32>
    %662 = math.tanh %661 : vector<2x32xf32>
    %663 = arith.mulf %658, %662 : vector<2x32xf32>
    %cst_116 = arith.constant dense<0.000000e+00> : vector<2x128xf32>
    %664 = tpu.matmul %663, %4, %cst_116 {dimension_numbers = #tpu.dot_dimension_numbers<[1], [0], [0], [1], [0, 0, 1, 1], [], []>} : vector<2x32xf32>, vector<32x128xf32>, vector<2x128xf32> -> vector<2x128xf32>
    %665 = vector.extract_strided_slice %606 {offsets = [0, 384], sizes = [2, 128], strides = [1, 1]} : vector<2x512xf32> to vector<2x128xf32>
    %666 = arith.addf %664, %665 : vector<2x128xf32>
    %667 = arith.negf %666 : vector<2x128xf32>
    %668 = math.exp %667 : vector<2x128xf32>
    %cst_117 = arith.constant 1.000000e+00 : f32
    %669 = vector.broadcast %cst_117 : f32 to vector<2x128xf32>
    %670 = arith.addf %669, %668 : vector<2x128xf32>
    %671 = arith.divf %669, %670 : vector<2x128xf32>
    %672 = math.tanh %666 : vector<2x128xf32>
    %673 = arith.select %16, %672, %671 : vector<2x128xi1>, vector<2x128xf32>
    %674 = vector.extract_strided_slice %673 {offsets = [0, 0], sizes = [2, 32], strides = [1, 1]} : vector<2x128xf32> to vector<2x32xf32>
    %675 = vector.extract_strided_slice %673 {offsets = [0, 32], sizes = [2, 32], strides = [1, 1]} : vector<2x128xf32> to vector<2x32xf32>
    %676 = vector.extract_strided_slice %673 {offsets = [0, 64], sizes = [2, 32], strides = [1, 1]} : vector<2x128xf32> to vector<2x32xf32>
    %677 = vector.extract_strided_slice %673 {offsets = [0, 96], sizes = [2, 32], strides = [1, 1]} : vector<2x128xf32> to vector<2x32xf32>
    %678 = arith.mulf %675, %599 : vector<2x32xf32>
    %679 = arith.mulf %674, %676 : vector<2x32xf32>
    %680 = arith.addf %678, %679 : vector<2x32xf32>
    %681 = math.tanh %680 : vector<2x32xf32>
    %682 = arith.mulf %677, %681 : vector<2x32xf32>
    %cst_118 = arith.constant 0.000000e+00 : f32
    %683 = vector.broadcast %cst_118 : f32 to vector<2x32xf32>
    %684 = arith.maximumf %682, %683 : vector<2x32xf32>
    %cst_119 = arith.constant dense<0.000000e+00> : vector<2x32xf32>
    %685 = tpu.matmul %684, %6, %cst_119 {dimension_numbers = #tpu.dot_dimension_numbers<[1], [0], [0], [1], [0, 0, 1, 1], [], []>} : vector<2x32xf32>, vector<32x32xf32>, vector<2x32xf32> -> vector<2x32xf32>
    %686 = vector.broadcast %8 : vector<1x32xf32> to vector<2x32xf32>
    %687 = arith.addf %685, %686 : vector<2x32xf32>
    %688 = math.tanh %687 : vector<2x32xf32>
    %689 = vector.broadcast %9 : vector<1x32xf32> to vector<2x32xf32>
    %690 = arith.mulf %688, %689 : vector<2x32xf32>
    %cst_120 = arith.constant dense<0.000000e+00> : vector<2xf32>
    %691 = vector.multi_reduction <add>, %690, %cst_120 [1] : vector<2x32xf32> to vector<2xf32>
    %692 = vector.shape_cast %691 : vector<2xf32> to vector<2x1xf32>
    %693 = vector.broadcast %10 : vector<1x1xf32> to vector<2x1xf32>
    %694 = arith.addf %692, %693 : vector<2x1xf32>
    %c0_121 = arith.constant 0 : index
    %c0_122 = arith.constant 0 : index
    %695 = vector.load %arg4[%c0_121, %c0_122] : memref<2x1xf32, #tpu.memory_space<vmem>>, vector<2x1xf32>
    tpu.vector_store %arg4[%c0_121, %c0_122], %694 {strides = array<i32>} : memref<2x1xf32, #tpu.memory_space<vmem>>, vector<2x1xf32>,
    return
  }
}

</mosaic_0001>

<llo_original>
// kernel: lstm_model_forward.1
$region0: #{lstm_model_forward.1}
  #allocation0 [shape = 'u32[]', space=smem, size = 0x4, offset = 0x4, fixed_abs, tag = 'smem constant byte address 0x4 - core index']
  #allocation1 [shape = 'u32[72,128]{1,0:T(1,128)}', space=vmem, size = 0x9000, scoped, tag = 'internal scratch']
  %s0 = inlined_call_operand.vmem [shape: f32[16,16], index: 0, kind: input, shape index: {}]
  %s1 = inlined_call_operand.vmem [shape: f32[2,4,2,32], index: 1, kind: input, shape index: {}]
  %s2 = inlined_call_operand.hbm [shape: f32[129,512], index: 2, kind: input, shape index: {}]
  %s3 = inlined_call_operand.hbm [shape: f32[145,128], index: 3, kind: input, shape index: {}]
  %s4 = inlined_call_operand.vmem [shape: f32[2,1], index: 4, kind: output, shape index: {}]
  %s5 = sld [smem:[#allocation0]]
  $region34: #{lstm_model_forward.1} parent=0
    _
  %s7 = ssub.s32 1, %s5
  %s8 = scalar_select 0, %s7, %s5
  $region1: #{lstm_model_forward.1} parent=0
    #allocation2 [shape = 'u8[278528]{0}', space=vmem, size = 0x44000, scoped, tag = 'input window, operand 2, single buffered']
    #allocation3 [shape = 's32[1]{0}', space=sflag, size = 0x4, scoped, tag = 'scoped memory for lstm_model_forward.1']
    #allocation4 [shape = 'u8[77824]{0}', space=vmem, size = 0x13000, scoped, tag = 'input window, operand 3, single buffered']
    #allocation5 [shape = 's32[1]{0}', space=sflag, size = 0x4, scoped, tag = 'scoped memory for lstm_model_forward.1']
    %9 = vsyncpa [#allocation3], 0
    %10 = vsyncpa [#allocation5], 0
    // Predicated region
    $region2: #{lstm_model_forward.1} parent=1 // pred_check
      _
    $region3: #{lstm_model_forward.1} parent=1 // pred_check_branch
      %12 = sbr.rel (0) target = $region5
    $region4: #{lstm_model_forward.1} parent=1 // pred_region
      _
    $region5: #{lstm_model_forward.1} parent=1 // pred_fallthru
      _
    // Predicated region
    $region6: #{lstm_model_forward.1} parent=1 // pred_check
      _
    $region7: #{lstm_model_forward.1} parent=1 // pred_check_branch
      %14 = sbr.rel (0) target = $region9
    $region8: #{lstm_model_forward.1} parent=1 // pred_region
      _
    $region9: #{lstm_model_forward.1} parent=1 // pred_fallthru
      _
    // Predicated region
    $region10: #{lstm_model_forward.1} parent=1 // pred_check
      _
    $region11: #{lstm_model_forward.1} parent=1 // pred_check_branch
      %16 = sbr.rel (0) target = $region13
    $region12: #{lstm_model_forward.1} parent=1 // pred_region
      %18 = vsyncadd [#allocation3], 0
      %s19 = sshll.u32 %s2, 4
      %s20 = int_to_ptr.hbm [resolvable:$true] %s19
      %s21 = sshll.u32 [#allocation2], 4
      %s22 = int_to_ptr.vmem [resolvable:$true] %s21
      %27 = dma.hbm_to_vmem [thread:$0]  %s20, 8704, %s22, [#allocation3], 512, 512, 32
    $region13: #{lstm_model_forward.1} parent=1 // pred_fallthru
      _
    // Predicated region
    $region14: #{lstm_model_forward.1} parent=1 // pred_check
      _
    $region15: #{lstm_model_forward.1} parent=1 // pred_check_branch
      %29 = sbr.rel (0) target = $region17
    $region16: #{lstm_model_forward.1} parent=1 // pred_region
      %31 = vsyncadd [#allocation5], 0
      %s32 = sshll.u32 %s3, 4
      %s33 = int_to_ptr.hbm [resolvable:$true] %s32
      %s34 = sshll.u32 [#allocation4], 4
      %s35 = int_to_ptr.vmem [resolvable:$true] %s34
      %40 = dma.hbm_to_vmem [thread:$0]  %s33, 2432, %s35, [#allocation5], 128, 128, 8
    $region17: #{lstm_model_forward.1} parent=1 // pred_fallthru
      _
    // Predicated region
    $region18: #{lstm_model_forward.1} parent=1 // pred_check
      _
    $region19: #{lstm_model_forward.1} parent=1 // pred_check_branch
      %42 = sbr.rel (0) target = $region21
    $region20: #{lstm_model_forward.1} parent=1 // pred_region
      %44 = dma.done [#allocation3], 8704
    $region21: #{lstm_model_forward.1} parent=1 // pred_fallthru
      _
    // Predicated region
    $region22: #{lstm_model_forward.1} parent=1 // pred_check
      _
    $region23: #{lstm_model_forward.1} parent=1 // pred_check_branch
      %46 = sbr.rel (0) target = $region25
    $region24: #{lstm_model_forward.1} parent=1 // pred_region
      %48 = dma.done [#allocation5], 2432
    $region25: #{lstm_model_forward.1} parent=1 // pred_fallthru
      _
    %s49 = scalar_lea.vmem [#allocation2], 512
    %v50 = vld [vmem:[%s49] ss:$8 sm:$0xf]
    %v51 = vld [vmem:[#allocation4] sm:$0xff]
    %v52 = vld [vmem:[#allocation4 + $0x8] sm:$0xff]
    %v53 = vld [vmem:[#allocation4 + $0x10] sm:$0xff]
    %v54 = vld [vmem:[#allocation4 + $0x18] sm:$0xff]
    %v55 = vld [vmem:[#allocation4 + $0x20] sm:$0xff]
    %v56 = vld [vmem:[#allocation4 + $0x28] sm:$0xff]
    %v57 = vld [vmem:[#allocation4 + $0x30] sm:$0xff]
    %v58 = vld [vmem:[#allocation4 + $0x38] sm:$0xff]
    %v59 = vld [vmem:[#allocation4 + $0x40] sm:$0xff]
    %v60 = vld [vmem:[#allocation4 + $0x48] sm:$0xff]
    %v61 = vld [vmem:[#allocation4 + $0x50] sm:$0xff]
    %v62 = vld [vmem:[#allocation4 + $0x58] sm:$0xff]
    %v63 = vld [vmem:[#allocation4 + $0x60] sm:$0xff]
    %v64 = vld [vmem:[#allocation4 + $0x68] sm:$0xff]
    %v65 = vld [vmem:[#allocation4 + $0x70] sm:$0xff]
    %v66 = vld [vmem:[#allocation4 + $0x78] sm:$0xff]
    %v67 = vld [vmem:[#allocation4 + $0x80] sm:$0xff]
    %v68 = vld [vmem:[#allocation4 + $0x88] sm:$0xff]
    %v69 = vld [vmem:[#allocation4 + $0x90] sm:$0x1]
    %v70 = vlaneseq
    %v71 = vand.u32 %v70, 127
    %vm72 = vcmp.ge.s32.totalorder %v71, 64
    %vm73 = vcmp.lt.s32.totalorder %v71, 96
    %vm74 = vmand %vm72, %vm73
    %v75 = vld [vmem:[%s0] sm:$0xff]
    %v76 = vld [vmem:[%s0 + $0x8] sm:$0xff]
    %vm77 = vcmask 130048
    %v79 = vsel %vm77, %v75, 0
    %v82 = vsel %vm77, %v76, 0
    %84 = vmatpush.msra.mxu0 0.0
    %85 = vmatpush.msra.mxu0 0.0
    %86 = vmatpush.msra.mxu0 0.0
    %87 = vmatpush.msra.mxu0 0.0
    %88 = vmatpush.msra.mxu0 0.0
    %89 = vmatpush.msra.mxu0 0.0
    %90 = vmatpush.msra.mxu0 0.0
    %91 = vmatpush.msra.mxu0 0.0
    %92 = vmatpush.msra.mxu0 0.0
    %93 = vmatpush.msra.mxu0 0.0
    %94 = vmatpush.msra.mxu0 0.0
    %95 = vmatpush.msra.mxu0 0.0
    %96 = vmatpush.msra.mxu0 0.0
    %97 = vmatpush.msra.mxu0 0.0
    %98 = vmatpush.msra.mxu0 %v52
    %99 = vmatpush.msra.mxu0 %v51
    %100 = vmatmul.f32.gmra.mxu0 %v79
    %v101 = vpop.f32.mrf.mxu0
    %v102 = vadd.f32 0.0, %v101
    %103 = vmatmul.f32.gmra.mxu0 %v82
    %v104 = vpop.f32.mrf.mxu0
    %v105 = vadd.f32 0.0, %v104
    %106 = vdwg.mxu0
    %v107 = vld [vmem:[%s1] sm:$0x3]
    %s108 = scalar_lea.vmem %s1, 2
    %v109 = vld [vmem:[%s108] sm:$0x3]
    %s110 = scalar_lea.vmem %s1, 4
    %v111 = vld [vmem:[%s110] sm:$0x3]
    %s112 = scalar_lea.vmem %s1, 6
    %v113 = vld [vmem:[%s112] sm:$0x3]
    %s114 = scalar_lea.vmem %s1, 8
    %v115 = vld [vmem:[%s114] sm:$0x3]
    %s116 = scalar_lea.vmem %s1, 10
    %v117 = vld [vmem:[%s116] sm:$0x3]
    %s118 = scalar_lea.vmem %s1, 12
    %v119 = vld [vmem:[%s118] sm:$0x3]
    %s120 = scalar_lea.vmem %s1, 14
    %v121 = vld [vmem:[%s120] sm:$0x3]
    %123 = vrot.lane.b32.xlu0 %v109, 32
    %v124 = vpop.permute.xlu0 %123
    %127 = vrot.lane.b32.xlu0 %v111, 64
    %v128 = vpop.permute.xlu0 %127
    %131 = vrot.lane.b32.xlu0 %v113, 96
    %v132 = vpop.permute.xlu0 %131
    %vm134 = vcmask 261120
    %v135 = vsel %vm134, %v107, %v124
    %vm136 = vcmask 523264
    %v137 = vsel %vm136, %v135, %v128
    %vm138 = vcmask 785408
    %v139 = vsel %vm138, %v137, %v132
    %v140 = vld [vmem:[#allocation2] sm:$0xff]
    %v141 = vld [vmem:[#allocation2 + $0x8] sm:$0xff]
    %v142 = vld [vmem:[#allocation2 + $0x10] sm:$0xff]
    %v143 = vld [vmem:[#allocation2 + $0x18] sm:$0xff]
    %v144 = vld [vmem:[#allocation2 + $0x20] sm:$0xff]
    %v145 = vld [vmem:[#allocation2 + $0x28] sm:$0xff]
    %v146 = vld [vmem:[#allocation2 + $0x30] sm:$0xff]
    %v147 = vld [vmem:[#allocation2 + $0x38] sm:$0xff]
    %v148 = vld [vmem:[#allocation2 + $0x40] sm:$0xff]
    %v149 = vld [vmem:[#allocation2 + $0x48] sm:$0xff]
    %v150 = vld [vmem:[#allocation2 + $0x50] sm:$0xff]
    %v151 = vld [vmem:[#allocation2 + $0x58] sm:$0xff]
    %v152 = vld [vmem:[#allocation2 + $0x60] sm:$0xff]
    %v153 = vld [vmem:[#allocation2 + $0x68] sm:$0xff]
    %v154 = vld [vmem:[#allocation2 + $0x70] sm:$0xff]
    %v155 = vld [vmem:[#allocation2 + $0x78] sm:$0xff]
    %v156 = vld [vmem:[#allocation2 + $0x80] sm:$0xff]
    %v157 = vld [vmem:[#allocation2 + $0x88] sm:$0xff]
    %v158 = vld [vmem:[#allocation2 + $0x90] sm:$0xff]
    %v159 = vld [vmem:[#allocation2 + $0x98] sm:$0xff]
    %v160 = vld [vmem:[#allocation2 + $0xa0] sm:$0xff]
    %v161 = vld [vmem:[#allocation2 + $0xa8] sm:$0xff]
    %v162 = vld [vmem:[#allocation2 + $0xb0] sm:$0xff]
    %v163 = vld [vmem:[#allocation2 + $0xb8] sm:$0xff]
    %v164 = vld [vmem:[#allocation2 + $0xc0] sm:$0xff]
    %v165 = vld [vmem:[#allocation2 + $0xc8] sm:$0xff]
    %v166 = vld [vmem:[#allocation2 + $0xd0] sm:$0xff]
    %v167 = vld [vmem:[#allocation2 + $0xd8] sm:$0xff]
    %v168 = vld [vmem:[#allocation2 + $0xe0] sm:$0xff]
    %v169 = vld [vmem:[#allocation2 + $0xe8] sm:$0xff]
    %v170 = vld [vmem:[#allocation2 + $0xf0] sm:$0xff]
    %v171 = vld [vmem:[#allocation2 + $0xf8] sm:$0xff]
    %v172 = vld [vmem:[#allocation2 + $0x100] sm:$0xff]
    %v173 = vld [vmem:[#allocation2 + $0x108] sm:$0xff]
    %v174 = vld [vmem:[#allocation2 + $0x110] sm:$0xff]
    %v175 = vld [vmem:[#allocation2 + $0x118] sm:$0xff]
    %v176 = vld [vmem:[#allocation2 + $0x120] sm:$0xff]
    %v177 = vld [vmem:[#allocation2 + $0x128] sm:$0xff]
    %v178 = vld [vmem:[#allocation2 + $0x130] sm:$0xff]
    %v179 = vld [vmem:[#allocation2 + $0x138] sm:$0xff]
    %v180 = vld [vmem:[#allocation2 + $0x140] sm:$0xff]
    %v181 = vld [vmem:[#allocation2 + $0x148] sm:$0xff]
    %v182 = vld [vmem:[#allocation2 + $0x150] sm:$0xff]
    %v183 = vld [vmem:[#allocation2 + $0x158] sm:$0xff]
    %v184 = vld [vmem:[#allocation2 + $0x160] sm:$0xff]
    %v185 = vld [vmem:[#allocation2 + $0x168] sm:$0xff]
    %v186 = vld [vmem:[#allocation2 + $0x170] sm:$0xff]
    %v187 = vld [vmem:[#allocation2 + $0x178] sm:$0xff]
    %v188 = vld [vmem:[#allocation2 + $0x180] sm:$0xff]
    %v189 = vld [vmem:[#allocation2 + $0x188] sm:$0xff]
    %v190 = vld [vmem:[#allocation2 + $0x190] sm:$0xff]
    %v191 = vld [vmem:[#allocation2 + $0x198] sm:$0xff]
    %v192 = vld [vmem:[#allocation2 + $0x1a0] sm:$0xff]
    %v193 = vld [vmem:[#allocation2 + $0x1a8] sm:$0xff]
    %v194 = vld [vmem:[#allocation2 + $0x1b0] sm:$0xff]
    %v195 = vld [vmem:[#allocation2 + $0x1b8] sm:$0xff]
    %v196 = vld [vmem:[#allocation2 + $0x1c0] sm:$0xff]
    %v197 = vld [vmem:[#allocation2 + $0x1c8] sm:$0xff]
    %v198 = vld [vmem:[#allocation2 + $0x1d0] sm:$0xff]
    %v199 = vld [vmem:[#allocation2 + $0x1d8] sm:$0xff]
    %v200 = vld [vmem:[#allocation2 + $0x1e0] sm:$0xff]
    %v201 = vld [vmem:[#allocation2 + $0x1e8] sm:$0xff]
    %v202 = vld [vmem:[#allocation2 + $0x1f0] sm:$0xff]
    %v203 = vld [vmem:[#allocation2 + $0x1f8] sm:$0xff]
    %v205 = vperm.slane %v50, 0
    %v206 = vperm.slane %v50, 1
    %v207 = vperm.slane %v50, 2
    %v208 = vperm.slane %v50, 3
    %213 = vmatpush.msra.mxu0 %v200
    %214 = vmatpush.msra.mxu0 %v196
    %215 = vmatpush.msra.mxu0 %v192
    %216 = vmatpush.msra.mxu0 %v188
    %217 = vmatpush.msra.mxu0 %v184
    %218 = vmatpush.msra.mxu0 %v180
    %219 = vmatpush.msra.mxu0 %v176
    %220 = vmatpush.msra.mxu0 %v172
    %221 = vmatpush.msra.mxu0 %v168
    %222 = vmatpush.msra.mxu0 %v164
    %223 = vmatpush.msra.mxu0 %v160
    %224 = vmatpush.msra.mxu0 %v156
    %225 = vmatpush.msra.mxu0 %v152
    %226 = vmatpush.msra.mxu0 %v148
    %227 = vmatpush.msra.mxu0 %v144
    %228 = vmatpush.msra.mxu0 %v140
    %229 = vmatmul.f32.gmra.mxu0 %v139
    %v230 = vpop.f32.mrf.mxu0
    %v231 = vadd.f32 %v205, %v230
    %232 = vdwg.mxu0
    %233 = vmatpush.msra.mxu0 %v201
    %234 = vmatpush.msra.mxu0 %v197
    %235 = vmatpush.msra.mxu0 %v193
    %236 = vmatpush.msra.mxu0 %v189
    %237 = vmatpush.msra.mxu0 %v185
    %238 = vmatpush.msra.mxu0 %v181
    %239 = vmatpush.msra.mxu0 %v177
    %240 = vmatpush.msra.mxu0 %v173
    %241 = vmatpush.msra.mxu0 %v169
    %242 = vmatpush.msra.mxu0 %v165
    %243 = vmatpush.msra.mxu0 %v161
    %244 = vmatpush.msra.mxu0 %v157
    %245 = vmatpush.msra.mxu0 %v153
    %246 = vmatpush.msra.mxu0 %v149
    %247 = vmatpush.msra.mxu0 %v145
    %248 = vmatpush.msra.mxu0 %v141
    %249 = vmatmul.f32.gmra.mxu0 %v139
    %v250 = vpop.f32.mrf.mxu0
    %v251 = vadd.f32 %v206, %v250
    %252 = vdwg.mxu0
    %253 = vmatpush.msra.mxu0 %v202
    %254 = vmatpush.msra.mxu0 %v198
    %255 = vmatpush.msra.mxu0 %v194
    %256 = vmatpush.msra.mxu0 %v190
    %257 = vmatpush.msra.mxu0 %v186
    %258 = vmatpush.msra.mxu0 %v182
    %259 = vmatpush.msra.mxu0 %v178
    %260 = vmatpush.msra.mxu0 %v174
    %261 = vmatpush.msra.mxu0 %v170
    %262 = vmatpush.msra.mxu0 %v166
    %263 = vmatpush.msra.mxu0 %v162
    %264 = vmatpush.msra.mxu0 %v158
    %265 = vmatpush.msra.mxu0 %v154
    %266 = vmatpush.msra.mxu0 %v150
    %267 = vmatpush.msra.mxu0 %v146
    %268 = vmatpush.msra.mxu0 %v142
    %269 = vmatmul.f32.gmra.mxu0 %v139
    %v270 = vpop.f32.mrf.mxu0
    %v271 = vadd.f32 %v207, %v270
    %272 = vdwg.mxu0
    %273 = vmatpush.msra.mxu0 %v203
    %274 = vmatpush.msra.mxu0 %v199
    %275 = vmatpush.msra.mxu0 %v195
    %276 = vmatpush.msra.mxu0 %v191
    %277 = vmatpush.msra.mxu0 %v187
    %278 = vmatpush.msra.mxu0 %v183
    %279 = vmatpush.msra.mxu0 %v179
    %280 = vmatpush.msra.mxu0 %v175
    %281 = vmatpush.msra.mxu0 %v171
    %282 = vmatpush.msra.mxu0 %v167
    %283 = vmatpush.msra.mxu0 %v163
    %284 = vmatpush.msra.mxu0 %v159
    %285 = vmatpush.msra.mxu0 %v155
    %286 = vmatpush.msra.mxu0 %v151
    %287 = vmatpush.msra.mxu0 %v147
    %288 = vmatpush.msra.mxu0 %v143
    %289 = vmatmul.f32.gmra.mxu0 %v139
    %v290 = vpop.f32.mrf.mxu0
    %v291 = vadd.f32 %v208, %v290
    %292 = vdwg.mxu0
    %v293 = vadd.f32 %v102, %v231
    %v294 = vxor.u32 %v293, 2147483648
    %v295 = vmul.f32 %v294, 1.442695
    %v296 = vpow.pop %v295
    %v297 = vadd.f32 %v296, 1.0
    %v298 = vrcp.pop %v297
    %v299 = vmul.f32 %v297, %v298
    %v300 = vsub.f32 1.0, %v299
    %v301 = vmul.f32 %v298, %v300
    %v302 = vadd.f32 %v298, %v301
    %vm303 = vweird.f32 %v297
    %vm304 = vweird.f32 %v298
    %vm305 = vmor %vm303, %vm304
    %v306 = vsel %vm305, %v298, %v302
    %v307 = vand.u32 2147483647, %v297
    %vm308 = vcmp.eq.f32.partialorder %v307, 8.507059e+37
    %v309 = vand.u32 %v297, 2147483648
    %v310 = vor.u32 1.1754944e-38, %v309
    %v311 = vsel %vm308, %v310, %v306
    %v312 = vmul.f32 1.0, %v311
    %v313 = vtanh.pop %v293
    %v314 = vsel %vm74, %v313, %v312
    %316 = vrot.lane.b32.xlu0 %v115, 32
    %v317 = vpop.permute.xlu0 %316
    %v319 = vmul.f32 %v314, %v317
    %321 = vrot.lane.b32.xlu0 %v314, 64
    %v322 = vpop.permute.xlu0 %321
    %v324 = vmul.f32 %v314, %v322
    %326 = vrot.lane.b32.xlu0 %v324, 32
    %v327 = vpop.permute.xlu0 %326
    %v329 = vadd.f32 %v319, %v327
    %v330 = vtanh.pop %v329
    %332 = vrot.lane.b32.xlu0 %v330, 64
    %v333 = vpop.permute.xlu0 %332
    %v335 = vmul.f32 %v314, %v333
    %337 = vrot.lane.b32.xlu0 %v335, 32
    %v338 = vpop.permute.xlu0 %337
    %v339 = vsel %vm134, %v338, 0
    %341 = vmatpush.msra.mxu0 0.0
    %342 = vmatpush.msra.mxu0 0.0
    %343 = vmatpush.msra.mxu0 0.0
    %344 = vmatpush.msra.mxu0 0.0
    %345 = vmatpush.msra.mxu0 0.0
    %346 = vmatpush.msra.mxu0 0.0
    %347 = vmatpush.msra.mxu0 0.0
    %348 = vmatpush.msra.mxu0 0.0
    %349 = vmatpush.msra.mxu0 0.0
    %350 = vmatpush.msra.mxu0 0.0
    %351 = vmatpush.msra.mxu0 0.0
    %352 = vmatpush.msra.mxu0 0.0
    %353 = vmatpush.msra.mxu0 %v56
    %354 = vmatpush.msra.mxu0 %v55
    %355 = vmatpush.msra.mxu0 %v54
    %356 = vmatpush.msra.mxu0 %v53
    %357 = vmatmul.f32.gmra.mxu0 %v339
    %v358 = vpop.f32.mrf.mxu0
    %v359 = vadd.f32 %v251, %v358
    %360 = vdwg.mxu0
    %v361 = vxor.u32 %v359, 2147483648
    %v362 = vmul.f32 %v361, 1.442695
    %v363 = vpow.pop %v362
    %v364 = vadd.f32 %v363, 1.0
    %v365 = vrcp.pop %v364
    %v366 = vmul.f32 %v364, %v365
    %v367 = vsub.f32 1.0, %v366
    %v368 = vmul.f32 %v365, %v367
    %v369 = vadd.f32 %v365, %v368
    %vm370 = vweird.f32 %v364
    %vm371 = vweird.f32 %v365
    %vm372 = vmor %vm370, %vm371
    %v373 = vsel %vm372, %v365, %v369
    %v374 = vand.u32 2147483647, %v364
    %vm375 = vcmp.eq.f32.partialorder %v374, 8.507059e+37
    %v376 = vand.u32 %v364, 2147483648
    %v377 = vor.u32 1.1754944e-38, %v376
    %v378 = vsel %vm375, %v377, %v373
    %v379 = vmul.f32 1.0, %v378
    %v380 = vtanh.pop %v359
    %v381 = vsel %vm74, %v380, %v379
    %383 = vrot.lane.b32.xlu0 %v117, 32
    %v384 = vpop.permute.xlu0 %383
    %v386 = vmul.f32 %v381, %v384
    %388 = vrot.lane.b32.xlu0 %v381, 64
    %v389 = vpop.permute.xlu0 %388
    %v391 = vmul.f32 %v381, %v389
    %393 = vrot.lane.b32.xlu0 %v391, 32
    %v394 = vpop.permute.xlu0 %393
    %v396 = vadd.f32 %v386, %v394
    %v397 = vtanh.pop %v396
    %399 = vrot.lane.b32.xlu0 %v397, 64
    %v400 = vpop.permute.xlu0 %399
    %v402 = vmul.f32 %v381, %v400
    %404 = vrot.lane.b32.xlu0 %v402, 32
    %v405 = vpop.permute.xlu0 %404
    %v406 = vsel %vm134, %v405, 0
    %408 = vmatpush.msra.mxu0 0.0
    %409 = vmatpush.msra.mxu0 0.0
    %410 = vmatpush.msra.mxu0 0.0
    %411 = vmatpush.msra.mxu0 0.0
    %412 = vmatpush.msra.mxu0 0.0
    %413 = vmatpush.msra.mxu0 0.0
    %414 = vmatpush.msra.mxu0 0.0
    %415 = vmatpush.msra.mxu0 0.0
    %416 = vmatpush.msra.mxu0 0.0
    %417 = vmatpush.msra.mxu0 0.0
    %418 = vmatpush.msra.mxu0 0.0
    %419 = vmatpush.msra.mxu0 0.0
    %420 = vmatpush.msra.mxu0 %v60
    %421 = vmatpush.msra.mxu0 %v59
    %422 = vmatpush.msra.mxu0 %v58
    %423 = vmatpush.msra.mxu0 %v57
    %424 = vmatmul.f32.gmra.mxu0 %v406
    %v425 = vpop.f32.mrf.mxu0
    %v426 = vadd.f32 %v271, %v425
    %427 = vdwg.mxu0
    %v428 = vxor.u32 %v426, 2147483648
    %v429 = vmul.f32 %v428, 1.442695
    %v430 = vpow.pop %v429
    %v431 = vadd.f32 %v430, 1.0
    %v432 = vrcp.pop %v431
    %v433 = vmul.f32 %v431, %v432
    %v434 = vsub.f32 1.0, %v433
    %v435 = vmul.f32 %v432, %v434
    %v436 = vadd.f32 %v432, %v435
    %vm437 = vweird.f32 %v431
    %vm438 = vweird.f32 %v432
    %vm439 = vmor %vm437, %vm438
    %v440 = vsel %vm439, %v432, %v436
    %v441 = vand.u32 2147483647, %v431
    %vm442 = vcmp.eq.f32.partialorder %v441, 8.507059e+37
    %v443 = vand.u32 %v431, 2147483648
    %v444 = vor.u32 1.1754944e-38, %v443
    %v445 = vsel %vm442, %v444, %v440
    %v446 = vmul.f32 1.0, %v445
    %v447 = vtanh.pop %v426
    %v448 = vsel %vm74, %v447, %v446
    %450 = vrot.lane.b32.xlu0 %v119, 32
    %v451 = vpop.permute.xlu0 %450
    %v453 = vmul.f32 %v448, %v451
    %455 = vrot.lane.b32.xlu0 %v448, 64
    %v456 = vpop.permute.xlu0 %455
    %v458 = vmul.f32 %v448, %v456
    %460 = vrot.lane.b32.xlu0 %v458, 32
    %v461 = vpop.permute.xlu0 %460
    %v463 = vadd.f32 %v453, %v461
    %v464 = vtanh.pop %v463
    %466 = vrot.lane.b32.xlu0 %v464, 64
    %v467 = vpop.permute.xlu0 %466
    %v469 = vmul.f32 %v448, %v467
    %471 = vrot.lane.b32.xlu0 %v469, 32
    %v472 = vpop.permute.xlu0 %471
    %v473 = vsel %vm134, %v472, 0
    %475 = vmatpush.msra.mxu0 0.0
    %476 = vmatpush.msra.mxu0 0.0
    %477 = vmatpush.msra.mxu0 0.0
    %478 = vmatpush.msra.mxu0 0.0
    %479 = vmatpush.msra.mxu0 0.0
    %480 = vmatpush.msra.mxu0 0.0
    %481 = vmatpush.msra.mxu0 0.0
    %482 = vmatpush.msra.mxu0 0.0
    %483 = vmatpush.msra.mxu0 0.0
    %484 = vmatpush.msra.mxu0 0.0
    %485 = vmatpush.msra.mxu0 0.0
    %486 = vmatpush.msra.mxu0 0.0
    %487 = vmatpush.msra.mxu0 %v64
    %488 = vmatpush.msra.mxu0 %v63
    %489 = vmatpush.msra.mxu0 %v62
    %490 = vmatpush.msra.mxu0 %v61
    %491 = vmatmul.f32.gmra.mxu0 %v473
    %v492 = vpop.f32.mrf.mxu0
    %v493 = vadd.f32 %v291, %v492
    %494 = vdwg.mxu0
    %v495 = vxor.u32 %v493, 2147483648
    %v496 = vmul.f32 %v495, 1.442695
    %v497 = vpow.pop %v496
    %v498 = vadd.f32 %v497, 1.0
    %v499 = vrcp.pop %v498
    %v500 = vmul.f32 %v498, %v499
    %v501 = vsub.f32 1.0, %v500
    %v502 = vmul.f32 %v499, %v501
    %v503 = vadd.f32 %v499, %v502
    %vm504 = vweird.f32 %v498
    %vm505 = vweird.f32 %v499
    %vm506 = vmor %vm504, %vm505
    %v507 = vsel %vm506, %v499, %v503
    %v508 = vand.u32 2147483647, %v498
    %vm509 = vcmp.eq.f32.partialorder %v508, 8.507059e+37
    %v510 = vand.u32 %v498, 2147483648
    %v511 = vor.u32 1.1754944e-38, %v510
    %v512 = vsel %vm509, %v511, %v507
    %v513 = vmul.f32 1.0, %v512
    %v514 = vtanh.pop %v493
    %v515 = vsel %vm74, %v514, %v513
    %517 = vrot.lane.b32.xlu0 %v121, 32
    %v518 = vpop.permute.xlu0 %517
    %v520 = vmul.f32 %v515, %v518
    %522 = vrot.lane.b32.xlu0 %v515, 64
    %v523 = vpop.permute.xlu0 %522
    %v525 = vmul.f32 %v515, %v523
    %527 = vrot.lane.b32.xlu0 %v525, 32
    %v528 = vpop.permute.xlu0 %527
    %v530 = vadd.f32 %v520, %v528
    %v531 = vtanh.pop %v530
    %533 = vrot.lane.b32.xlu0 %v531, 64
    %v534 = vpop.permute.xlu0 %533
    %v536 = vmul.f32 %v515, %v534
    %538 = vrot.lane.b32.xlu0 %v402, 64
    %v539 = vpop.permute.xlu0 %538
    %541 = vrot.lane.b32.xlu0 %v469, 96
    %v542 = vpop.permute.xlu0 %541
    %v544 = vsel %vm134, %v338, %v539
    %v545 = vsel %vm136, %v544, %v542
    %v546 = vsel %vm138, %v545, %v536
    %547 = vmatpush.msra.mxu0 %v200
    %548 = vmatpush.msra.mxu0 %v196
    %549 = vmatpush.msra.mxu0 %v192
    %550 = vmatpush.msra.mxu0 %v188
    %551 = vmatpush.msra.mxu0 %v184
    %552 = vmatpush.msra.mxu0 %v180
    %553 = vmatpush.msra.mxu0 %v176
    %554 = vmatpush.msra.mxu0 %v172
    %555 = vmatpush.msra.mxu0 %v168
    %556 = vmatpush.msra.mxu0 %v164
    %557 = vmatpush.msra.mxu0 %v160
    %558 = vmatpush.msra.mxu0 %v156
    %559 = vmatpush.msra.mxu0 %v152
    %560 = vmatpush.msra.mxu0 %v148
    %561 = vmatpush.msra.mxu0 %v144
    %562 = vmatpush.msra.mxu0 %v140
    %563 = vmatmul.f32.gmra.mxu0 %v546
    %v564 = vpop.f32.mrf.mxu0
    %v565 = vadd.f32 %v205, %v564
    %566 = vdwg.mxu0
    %567 = vmatpush.msra.mxu0 %v201
    %568 = vmatpush.msra.mxu0 %v197
    %569 = vmatpush.msra.mxu0 %v193
    %570 = vmatpush.msra.mxu0 %v189
    %571 = vmatpush.msra.mxu0 %v185
    %572 = vmatpush.msra.mxu0 %v181
    %573 = vmatpush.msra.mxu0 %v177
    %574 = vmatpush.msra.mxu0 %v173
    %575 = vmatpush.msra.mxu0 %v169
    %576 = vmatpush.msra.mxu0 %v165
    %577 = vmatpush.msra.mxu0 %v161
    %578 = vmatpush.msra.mxu0 %v157
    %579 = vmatpush.msra.mxu0 %v153
    %580 = vmatpush.msra.mxu0 %v149
    %581 = vmatpush.msra.mxu0 %v145
    %582 = vmatpush.msra.mxu0 %v141
    %583 = vmatmul.f32.gmra.mxu0 %v546
    %v584 = vpop.f32.mrf.mxu0
    %v585 = vadd.f32 %v206, %v584
    %586 = vdwg.mxu0
    %587 = vmatpush.msra.mxu0 %v202
    %588 = vmatpush.msra.mxu0 %v198
    %589 = vmatpush.msra.mxu0 %v194
    %590 = vmatpush.msra.mxu0 %v190
    %591 = vmatpush.msra.mxu0 %v186
    %592 = vmatpush.msra.mxu0 %v182
    %593 = vmatpush.msra.mxu0 %v178
    %594 = vmatpush.msra.mxu0 %v174
    %595 = vmatpush.msra.mxu0 %v170
    %596 = vmatpush.msra.mxu0 %v166
    %597 = vmatpush.msra.mxu0 %v162
    %598 = vmatpush.msra.mxu0 %v158
    %599 = vmatpush.msra.mxu0 %v154
    %600 = vmatpush.msra.mxu0 %v150
    %601 = vmatpush.msra.mxu0 %v146
    %602 = vmatpush.msra.mxu0 %v142
    %603 = vmatmul.f32.gmra.mxu0 %v546
    %v604 = vpop.f32.mrf.mxu0
    %v605 = vadd.f32 %v207, %v604
    %606 = vdwg.mxu0
    %607 = vmatpush.msra.mxu0 %v203
    %608 = vmatpush.msra.mxu0 %v199
    %609 = vmatpush.msra.mxu0 %v195
    %610 = vmatpush.msra.mxu0 %v191
    %611 = vmatpush.msra.mxu0 %v187
    %612 = vmatpush.msra.mxu0 %v183
    %613 = vmatpush.msra.mxu0 %v179
    %614 = vmatpush.msra.mxu0 %v175
    %615 = vmatpush.msra.mxu0 %v171
    %616 = vmatpush.msra.mxu0 %v167
    %617 = vmatpush.msra.mxu0 %v163
    %618 = vmatpush.msra.mxu0 %v159
    %619 = vmatpush.msra.mxu0 %v155
    %620 = vmatpush.msra.mxu0 %v151
    %621 = vmatpush.msra.mxu0 %v147
    %622 = vmatpush.msra.mxu0 %v143
    %623 = vmatmul.f32.gmra.mxu0 %v546
    %v624 = vpop.f32.mrf.mxu0
    %v625 = vadd.f32 %v208, %v624
    %626 = vdwg.mxu0
    %v628 = vrot.slane %v565, 6
    %v630 = vadd.f32 %v102, %v628
    %v631 = vxor.u32 %v630, 2147483648
    %v632 = vmul.f32 %v631, 1.442695
    %v633 = vpow.pop %v632
    %v634 = vadd.f32 %v633, 1.0
    %v635 = vrcp.pop %v634
    %v636 = vmul.f32 %v634, %v635
    %v637 = vsub.f32 1.0, %v636
    %v638 = vmul.f32 %v635, %v637
    %v639 = vadd.f32 %v635, %v638
    %vm640 = vweird.f32 %v634
    %vm641 = vweird.f32 %v635
    %vm642 = vmor %vm640, %vm641
    %v643 = vsel %vm642, %v635, %v639
    %v644 = vand.u32 2147483647, %v634
    %vm645 = vcmp.eq.f32.partialorder %v644, 8.507059e+37
    %v646 = vand.u32 %v634, 2147483648
    %v647 = vor.u32 1.1754944e-38, %v646
    %v648 = vsel %vm645, %v647, %v643
    %v649 = vmul.f32 1.0, %v648
    %v650 = vtanh.pop %v630
    %v651 = vsel %vm74, %v650, %v649
    %v653 = vrot.slane %v329, 6
    %v655 = vmul.f32 %v651, %v653
    %657 = vrot.lane.b32.xlu0 %v651, 64
    %v658 = vpop.permute.xlu0 %657
    %v660 = vmul.f32 %v651, %v658
    %662 = vrot.lane.b32.xlu0 %v660, 32
    %v663 = vpop.permute.xlu0 %662
    %v665 = vadd.f32 %v655, %v663
    %v666 = vtanh.pop %v665
    %668 = vrot.lane.b32.xlu0 %v666, 64
    %v669 = vpop.permute.xlu0 %668
    %v671 = vmul.f32 %v651, %v669
    %v673 = vrot.slane %v671, 2
    %674 = vrot.lane.b32.xlu0 %v673, 32
    %v675 = vpop.permute.xlu0 %674
    %v676 = vsel %vm134, %v675, 0
    %678 = vmatpush.msra.mxu0 0.0
    %679 = vmatpush.msra.mxu0 0.0
    %680 = vmatpush.msra.mxu0 0.0
    %681 = vmatpush.msra.mxu0 0.0
    %682 = vmatpush.msra.mxu0 0.0
    %683 = vmatpush.msra.mxu0 0.0
    %684 = vmatpush.msra.mxu0 0.0
    %685 = vmatpush.msra.mxu0 0.0
    %686 = vmatpush.msra.mxu0 0.0
    %687 = vmatpush.msra.mxu0 0.0
    %688 = vmatpush.msra.mxu0 0.0
    %689 = vmatpush.msra.mxu0 0.0
    %690 = vmatpush.msra.mxu0 %v56
    %691 = vmatpush.msra.mxu0 %v55
    %692 = vmatpush.msra.mxu0 %v54
    %693 = vmatpush.msra.mxu0 %v53
    %694 = vmatmul.f32.gmra.mxu0 %v676
    %v695 = vpop.f32.mrf.mxu0
    %v696 = vadd.f32 %v585, %v695
    %697 = vdwg.mxu0
    %v698 = vxor.u32 %v696, 2147483648
    %v699 = vmul.f32 %v698, 1.442695
    %v700 = vpow.pop %v699
    %v701 = vadd.f32 %v700, 1.0
    %v702 = vrcp.pop %v701
    %v703 = vmul.f32 %v701, %v702
    %v704 = vsub.f32 1.0, %v703
    %v705 = vmul.f32 %v702, %v704
    %v706 = vadd.f32 %v702, %v705
    %vm707 = vweird.f32 %v701
    %vm708 = vweird.f32 %v702
    %vm709 = vmor %vm707, %vm708
    %v710 = vsel %vm709, %v702, %v706
    %v711 = vand.u32 2147483647, %v701
    %vm712 = vcmp.eq.f32.partialorder %v711, 8.507059e+37
    %v713 = vand.u32 %v701, 2147483648
    %v714 = vor.u32 1.1754944e-38, %v713
    %v715 = vsel %vm712, %v714, %v710
    %v716 = vmul.f32 1.0, %v715
    %v717 = vtanh.pop %v696
    %v718 = vsel %vm74, %v717, %v716
    %v719 = vmul.f32 %v718, %v396
    %721 = vrot.lane.b32.xlu0 %v718, 64
    %v722 = vpop.permute.xlu0 %721
    %v724 = vmul.f32 %v718, %v722
    %726 = vrot.lane.b32.xlu0 %v724, 32
    %v727 = vpop.permute.xlu0 %726
    %v729 = vadd.f32 %v719, %v727
    %v730 = vtanh.pop %v729
    %732 = vrot.lane.b32.xlu0 %v730, 64
    %v733 = vpop.permute.xlu0 %732
    %v735 = vmul.f32 %v718, %v733
    %737 = vrot.lane.b32.xlu0 %v735, 32
    %v738 = vpop.permute.xlu0 %737
    %v739 = vsel %vm134, %v738, 0
    %741 = vmatpush.msra.mxu0 0.0
    %742 = vmatpush.msra.mxu0 0.0
    %743 = vmatpush.msra.mxu0 0.0
    %744 = vmatpush.msra.mxu0 0.0
    %745 = vmatpush.msra.mxu0 0.0
    %746 = vmatpush.msra.mxu0 0.0
    %747 = vmatpush.msra.mxu0 0.0
    %748 = vmatpush.msra.mxu0 0.0
    %749 = vmatpush.msra.mxu0 0.0
    %750 = vmatpush.msra.mxu0 0.0
    %751 = vmatpush.msra.mxu0 0.0
    %752 = vmatpush.msra.mxu0 0.0
    %753 = vmatpush.msra.mxu0 %v60
    %754 = vmatpush.msra.mxu0 %v59
    %755 = vmatpush.msra.mxu0 %v58
    %756 = vmatpush.msra.mxu0 %v57
    %757 = vmatmul.f32.gmra.mxu0 %v739
    %v758 = vpop.f32.mrf.mxu0
    %v759 = vadd.f32 %v605, %v758
    %760 = vdwg.mxu0
    %v761 = vxor.u32 %v759, 2147483648
    %v762 = vmul.f32 %v761, 1.442695
    %v763 = vpow.pop %v762
    %v764 = vadd.f32 %v763, 1.0
    %v765 = vrcp.pop %v764
    %v766 = vmul.f32 %v764, %v765
    %v767 = vsub.f32 1.0, %v766
    %v768 = vmul.f32 %v765, %v767
    %v769 = vadd.f32 %v765, %v768
    %vm770 = vweird.f32 %v764
    %vm771 = vweird.f32 %v765
    %vm772 = vmor %vm770, %vm771
    %v773 = vsel %vm772, %v765, %v769
    %v774 = vand.u32 2147483647, %v764
    %vm775 = vcmp.eq.f32.partialorder %v774, 8.507059e+37
    %v776 = vand.u32 %v764, 2147483648
    %v777 = vor.u32 1.1754944e-38, %v776
    %v778 = vsel %vm775, %v777, %v773
    %v779 = vmul.f32 1.0, %v778
    %v780 = vtanh.pop %v759
    %v781 = vsel %vm74, %v780, %v779
    %v782 = vmul.f32 %v781, %v463
    %784 = vrot.lane.b32.xlu0 %v781, 64
    %v785 = vpop.permute.xlu0 %784
    %v787 = vmul.f32 %v781, %v785
    %789 = vrot.lane.b32.xlu0 %v787, 32
    %v790 = vpop.permute.xlu0 %789
    %v792 = vadd.f32 %v782, %v790
    %v793 = vtanh.pop %v792
    %795 = vrot.lane.b32.xlu0 %v793, 64
    %v796 = vpop.permute.xlu0 %795
    %v798 = vmul.f32 %v781, %v796
    %800 = vrot.lane.b32.xlu0 %v798, 32
    %v801 = vpop.permute.xlu0 %800
    %v802 = vsel %vm134, %v801, 0
    %804 = vmatpush.msra.mxu0 0.0
    %805 = vmatpush.msra.mxu0 0.0
    %806 = vmatpush.msra.mxu0 0.0
    %807 = vmatpush.msra.mxu0 0.0
    %808 = vmatpush.msra.mxu0 0.0
    %809 = vmatpush.msra.mxu0 0.0
    %810 = vmatpush.msra.mxu0 0.0
    %811 = vmatpush.msra.mxu0 0.0
    %812 = vmatpush.msra.mxu0 0.0
    %813 = vmatpush.msra.mxu0 0.0
    %814 = vmatpush.msra.mxu0 0.0
    %815 = vmatpush.msra.mxu0 0.0
    %816 = vmatpush.msra.mxu0 %v64
    %817 = vmatpush.msra.mxu0 %v63
    %818 = vmatpush.msra.mxu0 %v62
    %819 = vmatpush.msra.mxu0 %v61
    %820 = vmatmul.f32.gmra.mxu0 %v802
    %v821 = vpop.f32.mrf.mxu0
    %v822 = vadd.f32 %v625, %v821
    %823 = vdwg.mxu0
    %v824 = vxor.u32 %v822, 2147483648
    %v825 = vmul.f32 %v824, 1.442695
    %v826 = vpow.pop %v825
    %v827 = vadd.f32 %v826, 1.0
    %v828 = vrcp.pop %v827
    %v829 = vmul.f32 %v827, %v828
    %v830 = vsub.f32 1.0, %v829
    %v831 = vmul.f32 %v828, %v830
    %v832 = vadd.f32 %v828, %v831
    %vm833 = vweird.f32 %v827
    %vm834 = vweird.f32 %v828
    %vm835 = vmor %vm833, %vm834
    %v836 = vsel %vm835, %v828, %v832
    %v837 = vand.u32 2147483647, %v827
    %vm838 = vcmp.eq.f32.partialorder %v837, 8.507059e+37
    %v839 = vand.u32 %v827, 2147483648
    %v840 = vor.u32 1.1754944e-38, %v839
    %v841 = vsel %vm838, %v840, %v836
    %v842 = vmul.f32 1.0, %v841
    %v843 = vtanh.pop %v822
    %v844 = vsel %vm74, %v843, %v842
    %v845 = vmul.f32 %v844, %v530
    %847 = vrot.lane.b32.xlu0 %v844, 64
    %v848 = vpop.permute.xlu0 %847
    %v850 = vmul.f32 %v844, %v848
    %852 = vrot.lane.b32.xlu0 %v850, 32
    %v853 = vpop.permute.xlu0 %852
    %v855 = vadd.f32 %v845, %v853
    %v856 = vtanh.pop %v855
    %858 = vrot.lane.b32.xlu0 %v856, 64
    %v859 = vpop.permute.xlu0 %858
    %v861 = vmul.f32 %v844, %v859
    %862 = vrot.lane.b32.xlu0 %v671, 32
    %v863 = vpop.permute.xlu0 %862
    %v865 = vrot.slane %v735, 6
    %866 = vrot.lane.b32.xlu0 %v865, 64
    %v867 = vpop.permute.xlu0 %866
    %v869 = vrot.slane %v798, 6
    %870 = vrot.lane.b32.xlu0 %v869, 96
    %v871 = vpop.permute.xlu0 %870
    %v874 = vrot.slane %v861, 6
    %v876 = vsel %vm134, %v863, %v867
    %v877 = vsel %vm136, %v876, %v871
    %v878 = vsel %vm138, %v877, %v874
    %v880 = vrot.slane %v878, 2
    %882 = vmatpush.msra.mxu0 %v200
    %883 = vmatpush.msra.mxu0 %v196
    %884 = vmatpush.msra.mxu0 %v192
    %885 = vmatpush.msra.mxu0 %v188
    %886 = vmatpush.msra.mxu0 %v184
    %887 = vmatpush.msra.mxu0 %v180
    %888 = vmatpush.msra.mxu0 %v176
    %889 = vmatpush.msra.mxu0 %v172
    %890 = vmatpush.msra.mxu0 %v168
    %891 = vmatpush.msra.mxu0 %v164
    %892 = vmatpush.msra.mxu0 %v160
    %893 = vmatpush.msra.mxu0 %v156
    %894 = vmatpush.msra.mxu0 %v152
    %895 = vmatpush.msra.mxu0 %v148
    %896 = vmatpush.msra.mxu0 %v144
    %897 = vmatpush.msra.mxu0 %v140
    %898 = vmatmul.f32.gmra.mxu0 %v880
    %v899 = vpop.f32.mrf.mxu0
    %v900 = vadd.f32 %v205, %v899
    %901 = vdwg.mxu0
    %902 = vmatpush.msra.mxu0 %v201
    %903 = vmatpush.msra.mxu0 %v197
    %904 = vmatpush.msra.mxu0 %v193
    %905 = vmatpush.msra.mxu0 %v189
    %906 = vmatpush.msra.mxu0 %v185
    %907 = vmatpush.msra.mxu0 %v181
    %908 = vmatpush.msra.mxu0 %v177
    %909 = vmatpush.msra.mxu0 %v173
    %910 = vmatpush.msra.mxu0 %v169
    %911 = vmatpush.msra.mxu0 %v165
    %912 = vmatpush.msra.mxu0 %v161
    %913 = vmatpush.msra.mxu0 %v157
    %914 = vmatpush.msra.mxu0 %v153
    %915 = vmatpush.msra.mxu0 %v149
    %916 = vmatpush.msra.mxu0 %v145
    %917 = vmatpush.msra.mxu0 %v141
    %918 = vmatmul.f32.gmra.mxu0 %v880
    %v919 = vpop.f32.mrf.mxu0
    %v920 = vadd.f32 %v206, %v919
    %921 = vdwg.mxu0
    %922 = vmatpush.msra.mxu0 %v202
    %923 = vmatpush.msra.mxu0 %v198
    %924 = vmatpush.msra.mxu0 %v194
    %925 = vmatpush.msra.mxu0 %v190
    %926 = vmatpush.msra.mxu0 %v186
    %927 = vmatpush.msra.mxu0 %v182
    %928 = vmatpush.msra.mxu0 %v178
    %929 = vmatpush.msra.mxu0 %v174
    %930 = vmatpush.msra.mxu0 %v170
    %931 = vmatpush.msra.mxu0 %v166
    %932 = vmatpush.msra.mxu0 %v162
    %933 = vmatpush.msra.mxu0 %v158
    %934 = vmatpush.msra.mxu0 %v154
    %935 = vmatpush.msra.mxu0 %v150
    %936 = vmatpush.msra.mxu0 %v146
    %937 = vmatpush.msra.mxu0 %v142
    %938 = vmatmul.f32.gmra.mxu0 %v880
    %v939 = vpop.f32.mrf.mxu0
    %v940 = vadd.f32 %v207, %v939
    %941 = vdwg.mxu0
    %942 = vmatpush.msra.mxu0 %v203
    %943 = vmatpush.msra.mxu0 %v199
    %944 = vmatpush.msra.mxu0 %v195
    %945 = vmatpush.msra.mxu0 %v191
    %946 = vmatpush.msra.mxu0 %v187
    %947 = vmatpush.msra.mxu0 %v183
    %948 = vmatpush.msra.mxu0 %v179
    %949 = vmatpush.msra.mxu0 %v175
    %950 = vmatpush.msra.mxu0 %v171
    %951 = vmatpush.msra.mxu0 %v167
    %952 = vmatpush.msra.mxu0 %v163
    %953 = vmatpush.msra.mxu0 %v159
    %954 = vmatpush.msra.mxu0 %v155
    %955 = vmatpush.msra.mxu0 %v151
    %956 = vmatpush.msra.mxu0 %v147
    %957 = vmatpush.msra.mxu0 %v143
    %958 = vmatmul.f32.gmra.mxu0 %v880
    %v959 = vpop.f32.mrf.mxu0
    %v960 = vadd.f32 %v208, %v959
    %961 = vdwg.mxu0
    %v963 = vrot.slane %v900, 4
    %v965 = vadd.f32 %v102, %v963
    %v966 = vxor.u32 %v965, 2147483648
    %v967 = vmul.f32 %v966, 1.442695
    %v968 = vpow.pop %v967
    %v969 = vadd.f32 %v968, 1.0
    %v970 = vrcp.pop %v969
    %v971 = vmul.f32 %v969, %v970
    %v972 = vsub.f32 1.0, %v971
    %v973 = vmul.f32 %v970, %v972
    %v974 = vadd.f32 %v970, %v973
    %vm975 = vweird.f32 %v969
    %vm976 = vweird.f32 %v970
    %vm977 = vmor %vm975, %vm976
    %v978 = vsel %vm977, %v970, %v974
    %v979 = vand.u32 2147483647, %v969
    %vm980 = vcmp.eq.f32.partialorder %v979, 8.507059e+37
    %v981 = vand.u32 %v969, 2147483648
    %v982 = vor.u32 1.1754944e-38, %v981
    %v983 = vsel %vm980, %v982, %v978
    %v984 = vmul.f32 1.0, %v983
    %v985 = vtanh.pop %v965
    %v986 = vsel %vm74, %v985, %v984
    %v988 = vrot.slane %v665, 6
    %v990 = vmul.f32 %v986, %v988
    %992 = vrot.lane.b32.xlu0 %v986, 64
    %v993 = vpop.permute.xlu0 %992
    %v995 = vmul.f32 %v986, %v993
    %997 = vrot.lane.b32.xlu0 %v995, 32
    %v998 = vpop.permute.xlu0 %997
    %v1000 = vadd.f32 %v990, %v998
    %v1001 = vtanh.pop %v1000
    %1003 = vrot.lane.b32.xlu0 %v1001, 64
    %v1004 = vpop.permute.xlu0 %1003
    %v1006 = vmul.f32 %v986, %v1004
    %v1008 = vrot.slane %v1006, 4
    %1009 = vrot.lane.b32.xlu0 %v1008, 32
    %v1010 = vpop.permute.xlu0 %1009
    %v1011 = vsel %vm134, %v1010, 0
    %1013 = vmatpush.msra.mxu0 0.0
    %1014 = vmatpush.msra.mxu0 0.0
    %1015 = vmatpush.msra.mxu0 0.0
    %1016 = vmatpush.msra.mxu0 0.0
    %1017 = vmatpush.msra.mxu0 0.0
    %1018 = vmatpush.msra.mxu0 0.0
    %1019 = vmatpush.msra.mxu0 0.0
    %1020 = vmatpush.msra.mxu0 0.0
    %1021 = vmatpush.msra.mxu0 0.0
    %1022 = vmatpush.msra.mxu0 0.0
    %1023 = vmatpush.msra.mxu0 0.0
    %1024 = vmatpush.msra.mxu0 0.0
    %1025 = vmatpush.msra.mxu0 %v56
    %1026 = vmatpush.msra.mxu0 %v55
    %1027 = vmatpush.msra.mxu0 %v54
    %1028 = vmatpush.msra.mxu0 %v53
    %1029 = vmatmul.f32.gmra.mxu0 %v1011
    %v1030 = vpop.f32.mrf.mxu0
    %v1031 = vadd.f32 %v920, %v1030
    %1032 = vdwg.mxu0
    %v1033 = vxor.u32 %v1031, 2147483648
    %v1034 = vmul.f32 %v1033, 1.442695
    %v1035 = vpow.pop %v1034
    %v1036 = vadd.f32 %v1035, 1.0
    %v1037 = vrcp.pop %v1036
    %v1038 = vmul.f32 %v1036, %v1037
    %v1039 = vsub.f32 1.0, %v1038
    %v1040 = vmul.f32 %v1037, %v1039
    %v1041 = vadd.f32 %v1037, %v1040
    %vm1042 = vweird.f32 %v1036
    %vm1043 = vweird.f32 %v1037
    %vm1044 = vmor %vm1042, %vm1043
    %v1045 = vsel %vm1044, %v1037, %v1041
    %v1046 = vand.u32 2147483647, %v1036
    %vm1047 = vcmp.eq.f32.partialorder %v1046, 8.507059e+37
    %v1048 = vand.u32 %v1036, 2147483648
    %v1049 = vor.u32 1.1754944e-38, %v1048
    %v1050 = vsel %vm1047, %v1049, %v1045
    %v1051 = vmul.f32 1.0, %v1050
    %v1052 = vtanh.pop %v1031
    %v1053 = vsel %vm74, %v1052, %v1051
    %v1054 = vmul.f32 %v1053, %v729
    %1056 = vrot.lane.b32.xlu0 %v1053, 64
    %v1057 = vpop.permute.xlu0 %1056
    %v1059 = vmul.f32 %v1053, %v1057
    %1061 = vrot.lane.b32.xlu0 %v1059, 32
    %v1062 = vpop.permute.xlu0 %1061
    %v1064 = vadd.f32 %v1054, %v1062
    %v1065 = vtanh.pop %v1064
    %1067 = vrot.lane.b32.xlu0 %v1065, 64
    %v1068 = vpop.permute.xlu0 %1067
    %v1070 = vmul.f32 %v1053, %v1068
    %1072 = vrot.lane.b32.xlu0 %v1070, 32
    %v1073 = vpop.permute.xlu0 %1072
    %v1074 = vsel %vm134, %v1073, 0
    %1076 = vmatpush.msra.mxu0 0.0
    %1077 = vmatpush.msra.mxu0 0.0
    %1078 = vmatpush.msra.mxu0 0.0
    %1079 = vmatpush.msra.mxu0 0.0
    %1080 = vmatpush.msra.mxu0 0.0
    %1081 = vmatpush.msra.mxu0 0.0
    %1082 = vmatpush.msra.mxu0 0.0
    %1083 = vmatpush.msra.mxu0 0.0
    %1084 = vmatpush.msra.mxu0 0.0
    %1085 = vmatpush.msra.mxu0 0.0
    %1086 = vmatpush.msra.mxu0 0.0
    %1087 = vmatpush.msra.mxu0 0.0
    %1088 = vmatpush.msra.mxu0 %v60
    %1089 = vmatpush.msra.mxu0 %v59
    %1090 = vmatpush.msra.mxu0 %v58
    %1091 = vmatpush.msra.mxu0 %v57
    %1092 = vmatmul.f32.gmra.mxu0 %v1074
    %v1093 = vpop.f32.mrf.mxu0
    %v1094 = vadd.f32 %v940, %v1093
    %1095 = vdwg.mxu0
    %v1096 = vxor.u32 %v1094, 2147483648
    %v1097 = vmul.f32 %v1096, 1.442695
    %v1098 = vpow.pop %v1097
    %v1099 = vadd.f32 %v1098, 1.0
    %v1100 = vrcp.pop %v1099
    %v1101 = vmul.f32 %v1099, %v1100
    %v1102 = vsub.f32 1.0, %v1101
    %v1103 = vmul.f32 %v1100, %v1102
    %v1104 = vadd.f32 %v1100, %v1103
    %vm1105 = vweird.f32 %v1099
    %vm1106 = vweird.f32 %v1100
    %vm1107 = vmor %vm1105, %vm1106
    %v1108 = vsel %vm1107, %v1100, %v1104
    %v1109 = vand.u32 2147483647, %v1099
    %vm1110 = vcmp.eq.f32.partialorder %v1109, 8.507059e+37
    %v1111 = vand.u32 %v1099, 2147483648
    %v1112 = vor.u32 1.1754944e-38, %v1111
    %v1113 = vsel %vm1110, %v1112, %v1108
    %v1114 = vmul.f32 1.0, %v1113
    %v1115 = vtanh.pop %v1094
    %v1116 = vsel %vm74, %v1115, %v1114
    %v1117 = vmul.f32 %v1116, %v792
    %1119 = vrot.lane.b32.xlu0 %v1116, 64
    %v1120 = vpop.permute.xlu0 %1119
    %v1122 = vmul.f32 %v1116, %v1120
    %1124 = vrot.lane.b32.xlu0 %v1122, 32
    %v1125 = vpop.permute.xlu0 %1124
    %v1127 = vadd.f32 %v1117, %v1125
    %v1128 = vtanh.pop %v1127
    %1130 = vrot.lane.b32.xlu0 %v1128, 64
    %v1131 = vpop.permute.xlu0 %1130
    %v1133 = vmul.f32 %v1116, %v1131
    %1135 = vrot.lane.b32.xlu0 %v1133, 32
    %v1136 = vpop.permute.xlu0 %1135
    %v1137 = vsel %vm134, %v1136, 0
    %1139 = vmatpush.msra.mxu0 0.0
    %1140 = vmatpush.msra.mxu0 0.0
    %1141 = vmatpush.msra.mxu0 0.0
    %1142 = vmatpush.msra.mxu0 0.0
    %1143 = vmatpush.msra.mxu0 0.0
    %1144 = vmatpush.msra.mxu0 0.0
    %1145 = vmatpush.msra.mxu0 0.0
    %1146 = vmatpush.msra.mxu0 0.0
    %1147 = vmatpush.msra.mxu0 0.0
    %1148 = vmatpush.msra.mxu0 0.0
    %1149 = vmatpush.msra.mxu0 0.0
    %1150 = vmatpush.msra.mxu0 0.0
    %1151 = vmatpush.msra.mxu0 %v64
    %1152 = vmatpush.msra.mxu0 %v63
    %1153 = vmatpush.msra.mxu0 %v62
    %1154 = vmatpush.msra.mxu0 %v61
    %1155 = vmatmul.f32.gmra.mxu0 %v1137
    %v1156 = vpop.f32.mrf.mxu0
    %v1157 = vadd.f32 %v960, %v1156
    %1158 = vdwg.mxu0
    %v1159 = vxor.u32 %v1157, 2147483648
    %v1160 = vmul.f32 %v1159, 1.442695
    %v1161 = vpow.pop %v1160
    %v1162 = vadd.f32 %v1161, 1.0
    %v1163 = vrcp.pop %v1162
    %v1164 = vmul.f32 %v1162, %v1163
    %v1165 = vsub.f32 1.0, %v1164
    %v1166 = vmul.f32 %v1163, %v1165
    %v1167 = vadd.f32 %v1163, %v1166
    %vm1168 = vweird.f32 %v1162
    %vm1169 = vweird.f32 %v1163
    %vm1170 = vmor %vm1168, %vm1169
    %v1171 = vsel %vm1170, %v1163, %v1167
    %v1172 = vand.u32 2147483647, %v1162
    %vm1173 = vcmp.eq.f32.partialorder %v1172, 8.507059e+37
    %v1174 = vand.u32 %v1162, 2147483648
    %v1175 = vor.u32 1.1754944e-38, %v1174
    %v1176 = vsel %vm1173, %v1175, %v1171
    %v1177 = vmul.f32 1.0, %v1176
    %v1178 = vtanh.pop %v1157
    %v1179 = vsel %vm74, %v1178, %v1177
    %v1180 = vmul.f32 %v1179, %v855
    %1182 = vrot.lane.b32.xlu0 %v1179, 64
    %v1183 = vpop.permute.xlu0 %1182
    %v1185 = vmul.f32 %v1179, %v1183
    %1187 = vrot.lane.b32.xlu0 %v1185, 32
    %v1188 = vpop.permute.xlu0 %1187
    %v1190 = vadd.f32 %v1180, %v1188
    %v1191 = vtanh.pop %v1190
    %1193 = vrot.lane.b32.xlu0 %v1191, 64
    %v1194 = vpop.permute.xlu0 %1193
    %v1196 = vmul.f32 %v1179, %v1194
    %1197 = vrot.lane.b32.xlu0 %v1006, 32
    %v1198 = vpop.permute.xlu0 %1197
    %v1200 = vrot.slane %v1070, 4
    %1201 = vrot.lane.b32.xlu0 %v1200, 64
    %v1202 = vpop.permute.xlu0 %1201
    %v1204 = vrot.slane %v1133, 4
    %1205 = vrot.lane.b32.xlu0 %v1204, 96
    %v1206 = vpop.permute.xlu0 %1205
    %v1209 = vrot.slane %v1196, 4
    %v1211 = vsel %vm134, %v1198, %v1202
    %v1212 = vsel %vm136, %v1211, %v1206
    %v1213 = vsel %vm138, %v1212, %v1209
    %v1215 = vrot.slane %v1213, 4
    %1217 = vmatpush.msra.mxu0 %v200
    %1218 = vmatpush.msra.mxu0 %v196
    %1219 = vmatpush.msra.mxu0 %v192
    %1220 = vmatpush.msra.mxu0 %v188
    %1221 = vmatpush.msra.mxu0 %v184
    %1222 = vmatpush.msra.mxu0 %v180
    %1223 = vmatpush.msra.mxu0 %v176
    %1224 = vmatpush.msra.mxu0 %v172
    %1225 = vmatpush.msra.mxu0 %v168
    %1226 = vmatpush.msra.mxu0 %v164
    %1227 = vmatpush.msra.mxu0 %v160
    %1228 = vmatpush.msra.mxu0 %v156
    %1229 = vmatpush.msra.mxu0 %v152
    %1230 = vmatpush.msra.mxu0 %v148
    %1231 = vmatpush.msra.mxu0 %v144
    %1232 = vmatpush.msra.mxu0 %v140
    %1233 = vmatmul.f32.gmra.mxu0 %v1215
    %v1234 = vpop.f32.mrf.mxu0
    %v1235 = vadd.f32 %v205, %v1234
    %1236 = vdwg.mxu0
    %1237 = vmatpush.msra.mxu0 %v201
    %1238 = vmatpush.msra.mxu0 %v197
    %1239 = vmatpush.msra.mxu0 %v193
    %1240 = vmatpush.msra.mxu0 %v189
    %1241 = vmatpush.msra.mxu0 %v185
    %1242 = vmatpush.msra.mxu0 %v181
    %1243 = vmatpush.msra.mxu0 %v177
    %1244 = vmatpush.msra.mxu0 %v173
    %1245 = vmatpush.msra.mxu0 %v169
    %1246 = vmatpush.msra.mxu0 %v165
    %1247 = vmatpush.msra.mxu0 %v161
    %1248 = vmatpush.msra.mxu0 %v157
    %1249 = vmatpush.msra.mxu0 %v153
    %1250 = vmatpush.msra.mxu0 %v149
    %1251 = vmatpush.msra.mxu0 %v145
    %1252 = vmatpush.msra.mxu0 %v141
    %1253 = vmatmul.f32.gmra.mxu0 %v1215
    %v1254 = vpop.f32.mrf.mxu0
    %v1255 = vadd.f32 %v206, %v1254
    %1256 = vdwg.mxu0
    %1257 = vmatpush.msra.mxu0 %v202
    %1258 = vmatpush.msra.mxu0 %v198
    %1259 = vmatpush.msra.mxu0 %v194
    %1260 = vmatpush.msra.mxu0 %v190
    %1261 = vmatpush.msra.mxu0 %v186
    %1262 = vmatpush.msra.mxu0 %v182
    %1263 = vmatpush.msra.mxu0 %v178
    %1264 = vmatpush.msra.mxu0 %v174
    %1265 = vmatpush.msra.mxu0 %v170
    %1266 = vmatpush.msra.mxu0 %v166
    %1267 = vmatpush.msra.mxu0 %v162
    %1268 = vmatpush.msra.mxu0 %v158
    %1269 = vmatpush.msra.mxu0 %v154
    %1270 = vmatpush.msra.mxu0 %v150
    %1271 = vmatpush.msra.mxu0 %v146
    %1272 = vmatpush.msra.mxu0 %v142
    %1273 = vmatmul.f32.gmra.mxu0 %v1215
    %v1274 = vpop.f32.mrf.mxu0
    %v1275 = vadd.f32 %v207, %v1274
    %1276 = vdwg.mxu0
    %1277 = vmatpush.msra.mxu0 %v203
    %1278 = vmatpush.msra.mxu0 %v199
    %1279 = vmatpush.msra.mxu0 %v195
    %1280 = vmatpush.msra.mxu0 %v191
    %1281 = vmatpush.msra.mxu0 %v187
    %1282 = vmatpush.msra.mxu0 %v183
    %1283 = vmatpush.msra.mxu0 %v179
    %1284 = vmatpush.msra.mxu0 %v175
    %1285 = vmatpush.msra.mxu0 %v171
    %1286 = vmatpush.msra.mxu0 %v167
    %1287 = vmatpush.msra.mxu0 %v163
    %1288 = vmatpush.msra.mxu0 %v159
    %1289 = vmatpush.msra.mxu0 %v155
    %1290 = vmatpush.msra.mxu0 %v151
    %1291 = vmatpush.msra.mxu0 %v147
    %1292 = vmatpush.msra.mxu0 %v143
    %1293 = vmatmul.f32.gmra.mxu0 %v1215
    %v1294 = vpop.f32.mrf.mxu0
    %v1295 = vadd.f32 %v208, %v1294
    %1296 = vdwg.mxu0
    %v1298 = vrot.slane %v1235, 2
    %v1300 = vadd.f32 %v102, %v1298
    %v1301 = vxor.u32 %v1300, 2147483648
    %v1302 = vmul.f32 %v1301, 1.442695
    %v1303 = vpow.pop %v1302
    %v1304 = vadd.f32 %v1303, 1.0
    %v1305 = vrcp.pop %v1304
    %v1306 = vmul.f32 %v1304, %v1305
    %v1307 = vsub.f32 1.0, %v1306
    %v1308 = vmul.f32 %v1305, %v1307
    %v1309 = vadd.f32 %v1305, %v1308
    %vm1310 = vweird.f32 %v1304
    %vm1311 = vweird.f32 %v1305
    %vm1312 = vmor %vm1310, %vm1311
    %v1313 = vsel %vm1312, %v1305, %v1309
    %v1314 = vand.u32 2147483647, %v1304
    %vm1315 = vcmp.eq.f32.partialorder %v1314, 8.507059e+37
    %v1316 = vand.u32 %v1304, 2147483648
    %v1317 = vor.u32 1.1754944e-38, %v1316
    %v1318 = vsel %vm1315, %v1317, %v1313
    %v1319 = vmul.f32 1.0, %v1318
    %v1320 = vtanh.pop %v1300
    %v1321 = vsel %vm74, %v1320, %v1319
    %v1323 = vrot.slane %v1000, 6
    %v1325 = vmul.f32 %v1321, %v1323
    %1327 = vrot.lane.b32.xlu0 %v1321, 64
    %v1328 = vpop.permute.xlu0 %1327
    %v1330 = vmul.f32 %v1321, %v1328
    %1332 = vrot.lane.b32.xlu0 %v1330, 32
    %v1333 = vpop.permute.xlu0 %1332
    %v1335 = vadd.f32 %v1325, %v1333
    %v1336 = vtanh.pop %v1335
    %1338 = vrot.lane.b32.xlu0 %v1336, 64
    %v1339 = vpop.permute.xlu0 %1338
    %v1341 = vmul.f32 %v1321, %v1339
    %v1343 = vrot.slane %v1341, 6
    %1344 = vrot.lane.b32.xlu0 %v1343, 32
    %v1345 = vpop.permute.xlu0 %1344
    %v1346 = vsel %vm134, %v1345, 0
    %1348 = vmatpush.msra.mxu0 0.0
    %1349 = vmatpush.msra.mxu0 0.0
    %1350 = vmatpush.msra.mxu0 0.0
    %1351 = vmatpush.msra.mxu0 0.0
    %1352 = vmatpush.msra.mxu0 0.0
    %1353 = vmatpush.msra.mxu0 0.0
    %1354 = vmatpush.msra.mxu0 0.0
    %1355 = vmatpush.msra.mxu0 0.0
    %1356 = vmatpush.msra.mxu0 0.0
    %1357 = vmatpush.msra.mxu0 0.0
    %1358 = vmatpush.msra.mxu0 0.0
    %1359 = vmatpush.msra.mxu0 0.0
    %1360 = vmatpush.msra.mxu0 %v56
    %1361 = vmatpush.msra.mxu0 %v55
    %1362 = vmatpush.msra.mxu0 %v54
    %1363 = vmatpush.msra.mxu0 %v53
    %1364 = vmatmul.f32.gmra.mxu0 %v1346
    %v1365 = vpop.f32.mrf.mxu0
    %v1366 = vadd.f32 %v1255, %v1365
    %1367 = vdwg.mxu0
    %v1368 = vxor.u32 %v1366, 2147483648
    %v1369 = vmul.f32 %v1368, 1.442695
    %v1370 = vpow.pop %v1369
    %v1371 = vadd.f32 %v1370, 1.0
    %v1372 = vrcp.pop %v1371
    %v1373 = vmul.f32 %v1371, %v1372
    %v1374 = vsub.f32 1.0, %v1373
    %v1375 = vmul.f32 %v1372, %v1374
    %v1376 = vadd.f32 %v1372, %v1375
    %vm1377 = vweird.f32 %v1371
    %vm1378 = vweird.f32 %v1372
    %vm1379 = vmor %vm1377, %vm1378
    %v1380 = vsel %vm1379, %v1372, %v1376
    %v1381 = vand.u32 2147483647, %v1371
    %vm1382 = vcmp.eq.f32.partialorder %v1381, 8.507059e+37
    %v1383 = vand.u32 %v1371, 2147483648
    %v1384 = vor.u32 1.1754944e-38, %v1383
    %v1385 = vsel %vm1382, %v1384, %v1380
    %v1386 = vmul.f32 1.0, %v1385
    %v1387 = vtanh.pop %v1366
    %v1388 = vsel %vm74, %v1387, %v1386
    %v1389 = vmul.f32 %v1388, %v1064
    %1391 = vrot.lane.b32.xlu0 %v1388, 64
    %v1392 = vpop.permute.xlu0 %1391
    %v1394 = vmul.f32 %v1388, %v1392
    %1396 = vrot.lane.b32.xlu0 %v1394, 32
    %v1397 = vpop.permute.xlu0 %1396
    %v1399 = vadd.f32 %v1389, %v1397
    %v1400 = vtanh.pop %v1399
    %1402 = vrot.lane.b32.xlu0 %v1400, 64
    %v1403 = vpop.permute.xlu0 %1402
    %v1405 = vmul.f32 %v1388, %v1403
    %1407 = vrot.lane.b32.xlu0 %v1405, 32
    %v1408 = vpop.permute.xlu0 %1407
    %v1409 = vsel %vm134, %v1408, 0
    %1411 = vmatpush.msra.mxu0 0.0
    %1412 = vmatpush.msra.mxu0 0.0
    %1413 = vmatpush.msra.mxu0 0.0
    %1414 = vmatpush.msra.mxu0 0.0
    %1415 = vmatpush.msra.mxu0 0.0
    %1416 = vmatpush.msra.mxu0 0.0
    %1417 = vmatpush.msra.mxu0 0.0
    %1418 = vmatpush.msra.mxu0 0.0
    %1419 = vmatpush.msra.mxu0 0.0
    %1420 = vmatpush.msra.mxu0 0.0
    %1421 = vmatpush.msra.mxu0 0.0
    %1422 = vmatpush.msra.mxu0 0.0
    %1423 = vmatpush.msra.mxu0 %v60
    %1424 = vmatpush.msra.mxu0 %v59
    %1425 = vmatpush.msra.mxu0 %v58
    %1426 = vmatpush.msra.mxu0 %v57
    %1427 = vmatmul.f32.gmra.mxu0 %v1409
    %v1428 = vpop.f32.mrf.mxu0
    %v1429 = vadd.f32 %v1275, %v1428
    %1430 = vdwg.mxu0
    %v1431 = vxor.u32 %v1429, 2147483648
    %v1432 = vmul.f32 %v1431, 1.442695
    %v1433 = vpow.pop %v1432
    %v1434 = vadd.f32 %v1433, 1.0
    %v1435 = vrcp.pop %v1434
    %v1436 = vmul.f32 %v1434, %v1435
    %v1437 = vsub.f32 1.0, %v1436
    %v1438 = vmul.f32 %v1435, %v1437
    %v1439 = vadd.f32 %v1435, %v1438
    %vm1440 = vweird.f32 %v1434
    %vm1441 = vweird.f32 %v1435
    %vm1442 = vmor %vm1440, %vm1441
    %v1443 = vsel %vm1442, %v1435, %v1439
    %v1444 = vand.u32 2147483647, %v1434
    %vm1445 = vcmp.eq.f32.partialorder %v1444, 8.507059e+37
    %v1446 = vand.u32 %v1434, 2147483648
    %v1447 = vor.u32 1.1754944e-38, %v1446
    %v1448 = vsel %vm1445, %v1447, %v1443
    %v1449 = vmul.f32 1.0, %v1448
    %v1450 = vtanh.pop %v1429
    %v1451 = vsel %vm74, %v1450, %v1449
    %v1452 = vmul.f32 %v1451, %v1127
    %1454 = vrot.lane.b32.xlu0 %v1451, 64
    %v1455 = vpop.permute.xlu0 %1454
    %v1457 = vmul.f32 %v1451, %v1455
    %1459 = vrot.lane.b32.xlu0 %v1457, 32
    %v1460 = vpop.permute.xlu0 %1459
    %v1462 = vadd.f32 %v1452, %v1460
    %v1463 = vtanh.pop %v1462
    %1465 = vrot.lane.b32.xlu0 %v1463, 64
    %v1466 = vpop.permute.xlu0 %1465
    %v1468 = vmul.f32 %v1451, %v1466
    %1470 = vrot.lane.b32.xlu0 %v1468, 32
    %v1471 = vpop.permute.xlu0 %1470
    %v1472 = vsel %vm134, %v1471, 0
    %1474 = vmatpush.msra.mxu0 0.0
    %1475 = vmatpush.msra.mxu0 0.0
    %1476 = vmatpush.msra.mxu0 0.0
    %1477 = vmatpush.msra.mxu0 0.0
    %1478 = vmatpush.msra.mxu0 0.0
    %1479 = vmatpush.msra.mxu0 0.0
    %1480 = vmatpush.msra.mxu0 0.0
    %1481 = vmatpush.msra.mxu0 0.0
    %1482 = vmatpush.msra.mxu0 0.0
    %1483 = vmatpush.msra.mxu0 0.0
    %1484 = vmatpush.msra.mxu0 0.0
    %1485 = vmatpush.msra.mxu0 0.0
    %1486 = vmatpush.msra.mxu0 %v64
    %1487 = vmatpush.msra.mxu0 %v63
    %1488 = vmatpush.msra.mxu0 %v62
    %1489 = vmatpush.msra.mxu0 %v61
    %1490 = vmatmul.f32.gmra.mxu0 %v1472
    %v1491 = vpop.f32.mrf.mxu0
    %v1492 = vadd.f32 %v1295, %v1491
    %1493 = vdwg.mxu0
    %v1494 = vxor.u32 %v1492, 2147483648
    %v1495 = vmul.f32 %v1494, 1.442695
    %v1496 = vpow.pop %v1495
    %v1497 = vadd.f32 %v1496, 1.0
    %v1498 = vrcp.pop %v1497
    %v1499 = vmul.f32 %v1497, %v1498
    %v1500 = vsub.f32 1.0, %v1499
    %v1501 = vmul.f32 %v1498, %v1500
    %v1502 = vadd.f32 %v1498, %v1501
    %vm1503 = vweird.f32 %v1497
    %vm1504 = vweird.f32 %v1498
    %vm1505 = vmor %vm1503, %vm1504
    %v1506 = vsel %vm1505, %v1498, %v1502
    %v1507 = vand.u32 2147483647, %v1497
    %vm1508 = vcmp.eq.f32.partialorder %v1507, 8.507059e+37
    %v1509 = vand.u32 %v1497, 2147483648
    %v1510 = vor.u32 1.1754944e-38, %v1509
    %v1511 = vsel %vm1508, %v1510, %v1506
    %v1512 = vmul.f32 1.0, %v1511
    %v1513 = vtanh.pop %v1492
    %v1514 = vsel %vm74, %v1513, %v1512
    %v1515 = vmul.f32 %v1514, %v1190
    %1517 = vrot.lane.b32.xlu0 %v1514, 64
    %v1518 = vpop.permute.xlu0 %1517
    %v1520 = vmul.f32 %v1514, %v1518
    %1522 = vrot.lane.b32.xlu0 %v1520, 32
    %v1523 = vpop.permute.xlu0 %1522
    %v1525 = vadd.f32 %v1515, %v1523
    %v1526 = vtanh.pop %v1525
    %1528 = vrot.lane.b32.xlu0 %v1526, 64
    %v1529 = vpop.permute.xlu0 %1528
    %v1531 = vmul.f32 %v1514, %v1529
    %1532 = vrot.lane.b32.xlu0 %v1341, 32
    %v1533 = vpop.permute.xlu0 %1532
    %v1535 = vrot.slane %v1405, 2
    %1536 = vrot.lane.b32.xlu0 %v1535, 64
    %v1537 = vpop.permute.xlu0 %1536
    %v1539 = vrot.slane %v1468, 2
    %1540 = vrot.lane.b32.xlu0 %v1539, 96
    %v1541 = vpop.permute.xlu0 %1540
    %v1544 = vrot.slane %v1531, 2
    %v1546 = vsel %vm134, %v1533, %v1537
    %v1547 = vsel %vm136, %v1546, %v1541
    %v1548 = vsel %vm138, %v1547, %v1544
    %v1550 = vrot.slane %v1548, 6
    %1552 = vmatpush.msra.mxu0 %v200
    %1553 = vmatpush.msra.mxu0 %v196
    %1554 = vmatpush.msra.mxu0 %v192
    %1555 = vmatpush.msra.mxu0 %v188
    %1556 = vmatpush.msra.mxu0 %v184
    %1557 = vmatpush.msra.mxu0 %v180
    %1558 = vmatpush.msra.mxu0 %v176
    %1559 = vmatpush.msra.mxu0 %v172
    %1560 = vmatpush.msra.mxu0 %v168
    %1561 = vmatpush.msra.mxu0 %v164
    %1562 = vmatpush.msra.mxu0 %v160
    %1563 = vmatpush.msra.mxu0 %v156
    %1564 = vmatpush.msra.mxu0 %v152
    %1565 = vmatpush.msra.mxu0 %v148
    %1566 = vmatpush.msra.mxu0 %v144
    %1567 = vmatpush.msra.mxu0 %v140
    %1568 = vmatmul.f32.gmra.mxu0 %v1550
    %v1569 = vpop.f32.mrf.mxu0
    %v1570 = vadd.f32 %v205, %v1569
    %1571 = vdwg.mxu0
    %1572 = vmatpush.msra.mxu0 %v201
    %1573 = vmatpush.msra.mxu0 %v197
    %1574 = vmatpush.msra.mxu0 %v193
    %1575 = vmatpush.msra.mxu0 %v189
    %1576 = vmatpush.msra.mxu0 %v185
    %1577 = vmatpush.msra.mxu0 %v181
    %1578 = vmatpush.msra.mxu0 %v177
    %1579 = vmatpush.msra.mxu0 %v173
    %1580 = vmatpush.msra.mxu0 %v169
    %1581 = vmatpush.msra.mxu0 %v165
    %1582 = vmatpush.msra.mxu0 %v161
    %1583 = vmatpush.msra.mxu0 %v157
    %1584 = vmatpush.msra.mxu0 %v153
    %1585 = vmatpush.msra.mxu0 %v149
    %1586 = vmatpush.msra.mxu0 %v145
    %1587 = vmatpush.msra.mxu0 %v141
    %1588 = vmatmul.f32.gmra.mxu0 %v1550
    %v1589 = vpop.f32.mrf.mxu0
    %v1590 = vadd.f32 %v206, %v1589
    %1591 = vdwg.mxu0
    %1592 = vmatpush.msra.mxu0 %v202
    %1593 = vmatpush.msra.mxu0 %v198
    %1594 = vmatpush.msra.mxu0 %v194
    %1595 = vmatpush.msra.mxu0 %v190
    %1596 = vmatpush.msra.mxu0 %v186
    %1597 = vmatpush.msra.mxu0 %v182
    %1598 = vmatpush.msra.mxu0 %v178
    %1599 = vmatpush.msra.mxu0 %v174
    %1600 = vmatpush.msra.mxu0 %v170
    %1601 = vmatpush.msra.mxu0 %v166
    %1602 = vmatpush.msra.mxu0 %v162
    %1603 = vmatpush.msra.mxu0 %v158
    %1604 = vmatpush.msra.mxu0 %v154
    %1605 = vmatpush.msra.mxu0 %v150
    %1606 = vmatpush.msra.mxu0 %v146
    %1607 = vmatpush.msra.mxu0 %v142
    %1608 = vmatmul.f32.gmra.mxu0 %v1550
    %v1609 = vpop.f32.mrf.mxu0
    %v1610 = vadd.f32 %v207, %v1609
    %1611 = vdwg.mxu0
    %1612 = vmatpush.msra.mxu0 %v203
    %1613 = vmatpush.msra.mxu0 %v199
    %1614 = vmatpush.msra.mxu0 %v195
    %1615 = vmatpush.msra.mxu0 %v191
    %1616 = vmatpush.msra.mxu0 %v187
    %1617 = vmatpush.msra.mxu0 %v183
    %1618 = vmatpush.msra.mxu0 %v179
    %1619 = vmatpush.msra.mxu0 %v175
    %1620 = vmatpush.msra.mxu0 %v171
    %1621 = vmatpush.msra.mxu0 %v167
    %1622 = vmatpush.msra.mxu0 %v163
    %1623 = vmatpush.msra.mxu0 %v159
    %1624 = vmatpush.msra.mxu0 %v155
    %1625 = vmatpush.msra.mxu0 %v151
    %1626 = vmatpush.msra.mxu0 %v147
    %1627 = vmatpush.msra.mxu0 %v143
    %1628 = vmatmul.f32.gmra.mxu0 %v1550
    %v1629 = vpop.f32.mrf.mxu0
    %v1630 = vadd.f32 %v208, %v1629
    %1631 = vdwg.mxu0
    %v1632 = vadd.f32 %v105, %v1570
    %v1633 = vxor.u32 %v1632, 2147483648
    %v1634 = vmul.f32 %v1633, 1.442695
    %v1635 = vpow.pop %v1634
    %v1636 = vadd.f32 %v1635, 1.0
    %v1637 = vrcp.pop %v1636
    %v1638 = vmul.f32 %v1636, %v1637
    %v1639 = vsub.f32 1.0, %v1638
    %v1640 = vmul.f32 %v1637, %v1639
    %v1641 = vadd.f32 %v1637, %v1640
    %vm1642 = vweird.f32 %v1636
    %vm1643 = vweird.f32 %v1637
    %vm1644 = vmor %vm1642, %vm1643
    %v1645 = vsel %vm1644, %v1637, %v1641
    %v1646 = vand.u32 2147483647, %v1636
    %vm1647 = vcmp.eq.f32.partialorder %v1646, 8.507059e+37
    %v1648 = vand.u32 %v1636, 2147483648
    %v1649 = vor.u32 1.1754944e-38, %v1648
    %v1650 = vsel %vm1647, %v1649, %v1645
    %v1651 = vmul.f32 1.0, %v1650
    %v1652 = vtanh.pop %v1632
    %v1653 = vsel %vm74, %v1652, %v1651
    %v1655 = vrot.slane %v1335, 6
    %v1657 = vmul.f32 %v1653, %v1655
    %1659 = vrot.lane.b32.xlu0 %v1653, 64
    %v1660 = vpop.permute.xlu0 %1659
    %v1662 = vmul.f32 %v1653, %v1660
    %1664 = vrot.lane.b32.xlu0 %v1662, 32
    %v1665 = vpop.permute.xlu0 %1664
    %v1667 = vadd.f32 %v1657, %v1665
    %v1668 = vtanh.pop %v1667
    %1670 = vrot.lane.b32.xlu0 %v1668, 64
    %v1671 = vpop.permute.xlu0 %1670
    %v1673 = vmul.f32 %v1653, %v1671
    %1675 = vrot.lane.b32.xlu0 %v1673, 32
    %v1676 = vpop.permute.xlu0 %1675
    %v1677 = vsel %vm134, %v1676, 0
    %1679 = vmatpush.msra.mxu0 0.0
    %1680 = vmatpush.msra.mxu0 0.0
    %1681 = vmatpush.msra.mxu0 0.0
    %1682 = vmatpush.msra.mxu0 0.0
    %1683 = vmatpush.msra.mxu0 0.0
    %1684 = vmatpush.msra.mxu0 0.0
    %1685 = vmatpush.msra.mxu0 0.0
    %1686 = vmatpush.msra.mxu0 0.0
    %1687 = vmatpush.msra.mxu0 0.0
    %1688 = vmatpush.msra.mxu0 0.0
    %1689 = vmatpush.msra.mxu0 0.0
    %1690 = vmatpush.msra.mxu0 0.0
    %1691 = vmatpush.msra.mxu0 %v56
    %1692 = vmatpush.msra.mxu0 %v55
    %1693 = vmatpush.msra.mxu0 %v54
    %1694 = vmatpush.msra.mxu0 %v53
    %1695 = vmatmul.f32.gmra.mxu0 %v1677
    %v1696 = vpop.f32.mrf.mxu0
    %v1697 = vadd.f32 %v1590, %v1696
    %1698 = vdwg.mxu0
    %v1699 = vxor.u32 %v1697, 2147483648
    %v1700 = vmul.f32 %v1699, 1.442695
    %v1701 = vpow.pop %v1700
    %v1702 = vadd.f32 %v1701, 1.0
    %v1703 = vrcp.pop %v1702
    %v1704 = vmul.f32 %v1702, %v1703
    %v1705 = vsub.f32 1.0, %v1704
    %v1706 = vmul.f32 %v1703, %v1705
    %v1707 = vadd.f32 %v1703, %v1706
    %vm1708 = vweird.f32 %v1702
    %vm1709 = vweird.f32 %v1703
    %vm1710 = vmor %vm1708, %vm1709
    %v1711 = vsel %vm1710, %v1703, %v1707
    %v1712 = vand.u32 2147483647, %v1702
    %vm1713 = vcmp.eq.f32.partialorder %v1712, 8.507059e+37
    %v1714 = vand.u32 %v1702, 2147483648
    %v1715 = vor.u32 1.1754944e-38, %v1714
    %v1716 = vsel %vm1713, %v1715, %v1711
    %v1717 = vmul.f32 1.0, %v1716
    %v1718 = vtanh.pop %v1697
    %v1719 = vsel %vm74, %v1718, %v1717
    %v1720 = vmul.f32 %v1719, %v1399
    %1722 = vrot.lane.b32.xlu0 %v1719, 64
    %v1723 = vpop.permute.xlu0 %1722
    %v1725 = vmul.f32 %v1719, %v1723
    %1727 = vrot.lane.b32.xlu0 %v1725, 32
    %v1728 = vpop.permute.xlu0 %1727
    %v1730 = vadd.f32 %v1720, %v1728
    %v1731 = vtanh.pop %v1730
    %1733 = vrot.lane.b32.xlu0 %v1731, 64
    %v1734 = vpop.permute.xlu0 %1733
    %v1736 = vmul.f32 %v1719, %v1734
    %1738 = vrot.lane.b32.xlu0 %v1736, 32
    %v1739 = vpop.permute.xlu0 %1738
    %v1740 = vsel %vm134, %v1739, 0
    %1742 = vmatpush.msra.mxu0 0.0
    %1743 = vmatpush.msra.mxu0 0.0
    %1744 = vmatpush.msra.mxu0 0.0
    %1745 = vmatpush.msra.mxu0 0.0
    %1746 = vmatpush.msra.mxu0 0.0
    %1747 = vmatpush.msra.mxu0 0.0
    %1748 = vmatpush.msra.mxu0 0.0
    %1749 = vmatpush.msra.mxu0 0.0
    %1750 = vmatpush.msra.mxu0 0.0
    %1751 = vmatpush.msra.mxu0 0.0
    %1752 = vmatpush.msra.mxu0 0.0
    %1753 = vmatpush.msra.mxu0 0.0
    %1754 = vmatpush.msra.mxu0 %v60
    %1755 = vmatpush.msra.mxu0 %v59
    %1756 = vmatpush.msra.mxu0 %v58
    %1757 = vmatpush.msra.mxu0 %v57
    %1758 = vmatmul.f32.gmra.mxu0 %v1740
    %v1759 = vpop.f32.mrf.mxu0
    %v1760 = vadd.f32 %v1610, %v1759
    %1761 = vdwg.mxu0
    %v1762 = vxor.u32 %v1760, 2147483648
    %v1763 = vmul.f32 %v1762, 1.442695
    %v1764 = vpow.pop %v1763
    %v1765 = vadd.f32 %v1764, 1.0
    %v1766 = vrcp.pop %v1765
    %v1767 = vmul.f32 %v1765, %v1766
    %v1768 = vsub.f32 1.0, %v1767
    %v1769 = vmul.f32 %v1766, %v1768
    %v1770 = vadd.f32 %v1766, %v1769
    %vm1771 = vweird.f32 %v1765
    %vm1772 = vweird.f32 %v1766
    %vm1773 = vmor %vm1771, %vm1772
    %v1774 = vsel %vm1773, %v1766, %v1770
    %v1775 = vand.u32 2147483647, %v1765
    %vm1776 = vcmp.eq.f32.partialorder %v1775, 8.507059e+37
    %v1777 = vand.u32 %v1765, 2147483648
    %v1778 = vor.u32 1.1754944e-38, %v1777
    %v1779 = vsel %vm1776, %v1778, %v1774
    %v1780 = vmul.f32 1.0, %v1779
    %v1781 = vtanh.pop %v1760
    %v1782 = vsel %vm74, %v1781, %v1780
    %v1783 = vmul.f32 %v1782, %v1462
    %1785 = vrot.lane.b32.xlu0 %v1782, 64
    %v1786 = vpop.permute.xlu0 %1785
    %v1788 = vmul.f32 %v1782, %v1786
    %1790 = vrot.lane.b32.xlu0 %v1788, 32
    %v1791 = vpop.permute.xlu0 %1790
    %v1793 = vadd.f32 %v1783, %v1791
    %v1794 = vtanh.pop %v1793
    %1796 = vrot.lane.b32.xlu0 %v1794, 64
    %v1797 = vpop.permute.xlu0 %1796
    %v1799 = vmul.f32 %v1782, %v1797
    %1801 = vrot.lane.b32.xlu0 %v1799, 32
    %v1802 = vpop.permute.xlu0 %1801
    %v1803 = vsel %vm134, %v1802, 0
    %1805 = vmatpush.msra.mxu0 0.0
    %1806 = vmatpush.msra.mxu0 0.0
    %1807 = vmatpush.msra.mxu0 0.0
    %1808 = vmatpush.msra.mxu0 0.0
    %1809 = vmatpush.msra.mxu0 0.0
    %1810 = vmatpush.msra.mxu0 0.0
    %1811 = vmatpush.msra.mxu0 0.0
    %1812 = vmatpush.msra.mxu0 0.0
    %1813 = vmatpush.msra.mxu0 0.0
    %1814 = vmatpush.msra.mxu0 0.0
    %1815 = vmatpush.msra.mxu0 0.0
    %1816 = vmatpush.msra.mxu0 0.0
    %1817 = vmatpush.msra.mxu0 %v64
    %1818 = vmatpush.msra.mxu0 %v63
    %1819 = vmatpush.msra.mxu0 %v62
    %1820 = vmatpush.msra.mxu0 %v61
    %1821 = vmatmul.f32.gmra.mxu0 %v1803
    %v1822 = vpop.f32.mrf.mxu0
    %v1823 = vadd.f32 %v1630, %v1822
    %1824 = vdwg.mxu0
    %v1825 = vxor.u32 %v1823, 2147483648
    %v1826 = vmul.f32 %v1825, 1.442695
    %v1827 = vpow.pop %v1826
    %v1828 = vadd.f32 %v1827, 1.0
    %v1829 = vrcp.pop %v1828
    %v1830 = vmul.f32 %v1828, %v1829
    %v1831 = vsub.f32 1.0, %v1830
    %v1832 = vmul.f32 %v1829, %v1831
    %v1833 = vadd.f32 %v1829, %v1832
    %vm1834 = vweird.f32 %v1828
    %vm1835 = vweird.f32 %v1829
    %vm1836 = vmor %vm1834, %vm1835
    %v1837 = vsel %vm1836, %v1829, %v1833
    %v1838 = vand.u32 2147483647, %v1828
    %vm1839 = vcmp.eq.f32.partialorder %v1838, 8.507059e+37
    %v1840 = vand.u32 %v1828, 2147483648
    %v1841 = vor.u32 1.1754944e-38, %v1840
    %v1842 = vsel %vm1839, %v1841, %v1837
    %v1843 = vmul.f32 1.0, %v1842
    %v1844 = vtanh.pop %v1823
    %v1845 = vsel %vm74, %v1844, %v1843
    %v1846 = vmul.f32 %v1845, %v1525
    %1848 = vrot.lane.b32.xlu0 %v1845, 64
    %v1849 = vpop.permute.xlu0 %1848
    %v1851 = vmul.f32 %v1845, %v1849
    %1853 = vrot.lane.b32.xlu0 %v1851, 32
    %v1854 = vpop.permute.xlu0 %1853
    %v1856 = vadd.f32 %v1846, %v1854
    %v1857 = vtanh.pop %v1856
    %1859 = vrot.lane.b32.xlu0 %v1857, 64
    %v1860 = vpop.permute.xlu0 %1859
    %v1862 = vmul.f32 %v1845, %v1860
    %1864 = vrot.lane.b32.xlu0 %v1736, 64
    %v1865 = vpop.permute.xlu0 %1864
    %1867 = vrot.lane.b32.xlu0 %v1799, 96
    %v1868 = vpop.permute.xlu0 %1867
    %v1870 = vsel %vm134, %v1676, %v1865
    %v1871 = vsel %vm136, %v1870, %v1868
    %v1872 = vsel %vm138, %v1871, %v1862
    %1873 = vmatpush.msra.mxu0 %v200
    %1874 = vmatpush.msra.mxu0 %v196
    %1875 = vmatpush.msra.mxu0 %v192
    %1876 = vmatpush.msra.mxu0 %v188
    %1877 = vmatpush.msra.mxu0 %v184
    %1878 = vmatpush.msra.mxu0 %v180
    %1879 = vmatpush.msra.mxu0 %v176
    %1880 = vmatpush.msra.mxu0 %v172
    %1881 = vmatpush.msra.mxu0 %v168
    %1882 = vmatpush.msra.mxu0 %v164
    %1883 = vmatpush.msra.mxu0 %v160
    %1884 = vmatpush.msra.mxu0 %v156
    %1885 = vmatpush.msra.mxu0 %v152
    %1886 = vmatpush.msra.mxu0 %v148
    %1887 = vmatpush.msra.mxu0 %v144
    %1888 = vmatpush.msra.mxu0 %v140
    %1889 = vmatmul.f32.gmra.mxu0 %v1872
    %v1890 = vpop.f32.mrf.mxu0
    %v1891 = vadd.f32 %v205, %v1890
    %1892 = vdwg.mxu0
    %1893 = vmatpush.msra.mxu0 %v201
    %1894 = vmatpush.msra.mxu0 %v197
    %1895 = vmatpush.msra.mxu0 %v193
    %1896 = vmatpush.msra.mxu0 %v189
    %1897 = vmatpush.msra.mxu0 %v185
    %1898 = vmatpush.msra.mxu0 %v181
    %1899 = vmatpush.msra.mxu0 %v177
    %1900 = vmatpush.msra.mxu0 %v173
    %1901 = vmatpush.msra.mxu0 %v169
    %1902 = vmatpush.msra.mxu0 %v165
    %1903 = vmatpush.msra.mxu0 %v161
    %1904 = vmatpush.msra.mxu0 %v157
    %1905 = vmatpush.msra.mxu0 %v153
    %1906 = vmatpush.msra.mxu0 %v149
    %1907 = vmatpush.msra.mxu0 %v145
    %1908 = vmatpush.msra.mxu0 %v141
    %1909 = vmatmul.f32.gmra.mxu0 %v1872
    %v1910 = vpop.f32.mrf.mxu0
    %v1911 = vadd.f32 %v206, %v1910
    %1912 = vdwg.mxu0
    %1913 = vmatpush.msra.mxu0 %v202
    %1914 = vmatpush.msra.mxu0 %v198
    %1915 = vmatpush.msra.mxu0 %v194
    %1916 = vmatpush.msra.mxu0 %v190
    %1917 = vmatpush.msra.mxu0 %v186
    %1918 = vmatpush.msra.mxu0 %v182
    %1919 = vmatpush.msra.mxu0 %v178
    %1920 = vmatpush.msra.mxu0 %v174
    %1921 = vmatpush.msra.mxu0 %v170
    %1922 = vmatpush.msra.mxu0 %v166
    %1923 = vmatpush.msra.mxu0 %v162
    %1924 = vmatpush.msra.mxu0 %v158
    %1925 = vmatpush.msra.mxu0 %v154
    %1926 = vmatpush.msra.mxu0 %v150
    %1927 = vmatpush.msra.mxu0 %v146
    %1928 = vmatpush.msra.mxu0 %v142
    %1929 = vmatmul.f32.gmra.mxu0 %v1872
    %v1930 = vpop.f32.mrf.mxu0
    %v1931 = vadd.f32 %v207, %v1930
    %1932 = vdwg.mxu0
    %1933 = vmatpush.msra.mxu0 %v203
    %1934 = vmatpush.msra.mxu0 %v199
    %1935 = vmatpush.msra.mxu0 %v195
    %1936 = vmatpush.msra.mxu0 %v191
    %1937 = vmatpush.msra.mxu0 %v187
    %1938 = vmatpush.msra.mxu0 %v183
    %1939 = vmatpush.msra.mxu0 %v179
    %1940 = vmatpush.msra.mxu0 %v175
    %1941 = vmatpush.msra.mxu0 %v171
    %1942 = vmatpush.msra.mxu0 %v167
    %1943 = vmatpush.msra.mxu0 %v163
    %1944 = vmatpush.msra.mxu0 %v159
    %1945 = vmatpush.msra.mxu0 %v155
    %1946 = vmatpush.msra.mxu0 %v151
    %1947 = vmatpush.msra.mxu0 %v147
    %1948 = vmatpush.msra.mxu0 %v143
    %1949 = vmatmul.f32.gmra.mxu0 %v1872
    %v1950 = vpop.f32.mrf.mxu0
    %v1951 = vadd.f32 %v208, %v1950
    %1952 = vdwg.mxu0
    %v1954 = vrot.slane %v1891, 6
    %v1956 = vadd.f32 %v105, %v1954
    %v1957 = vxor.u32 %v1956, 2147483648
    %v1958 = vmul.f32 %v1957, 1.442695
    %v1959 = vpow.pop %v1958
    %v1960 = vadd.f32 %v1959, 1.0
    %v1961 = vrcp.pop %v1960
    %v1962 = vmul.f32 %v1960, %v1961
    %v1963 = vsub.f32 1.0, %v1962
    %v1964 = vmul.f32 %v1961, %v1963
    %v1965 = vadd.f32 %v1961, %v1964
    %vm1966 = vweird.f32 %v1960
    %vm1967 = vweird.f32 %v1961
    %vm1968 = vmor %vm1966, %vm1967
    %v1969 = vsel %vm1968, %v1961, %v1965
    %v1970 = vand.u32 2147483647, %v1960
    %vm1971 = vcmp.eq.f32.partialorder %v1970, 8.507059e+37
    %v1972 = vand.u32 %v1960, 2147483648
    %v1973 = vor.u32 1.1754944e-38, %v1972
    %v1974 = vsel %vm1971, %v1973, %v1969
    %v1975 = vmul.f32 1.0, %v1974
    %v1976 = vtanh.pop %v1956
    %v1977 = vsel %vm74, %v1976, %v1975
    %v1979 = vrot.slane %v1667, 6
    %v1981 = vmul.f32 %v1977, %v1979
    %1983 = vrot.lane.b32.xlu0 %v1977, 64
    %v1984 = vpop.permute.xlu0 %1983
    %v1986 = vmul.f32 %v1977, %v1984
    %1988 = vrot.lane.b32.xlu0 %v1986, 32
    %v1989 = vpop.permute.xlu0 %1988
    %v1991 = vadd.f32 %v1981, %v1989
    %v1992 = vtanh.pop %v1991
    %1994 = vrot.lane.b32.xlu0 %v1992, 64
    %v1995 = vpop.permute.xlu0 %1994
    %v1997 = vmul.f32 %v1977, %v1995
    %v1999 = vrot.slane %v1997, 2
    %2000 = vrot.lane.b32.xlu0 %v1999, 32
    %v2001 = vpop.permute.xlu0 %2000
    %v2002 = vsel %vm134, %v2001, 0
    %2004 = vmatpush.msra.mxu0 0.0
    %2005 = vmatpush.msra.mxu0 0.0
    %2006 = vmatpush.msra.mxu0 0.0
    %2007 = vmatpush.msra.mxu0 0.0
    %2008 = vmatpush.msra.mxu0 0.0
    %2009 = vmatpush.msra.mxu0 0.0
    %2010 = vmatpush.msra.mxu0 0.0
    %2011 = vmatpush.msra.mxu0 0.0
    %2012 = vmatpush.msra.mxu0 0.0
    %2013 = vmatpush.msra.mxu0 0.0
    %2014 = vmatpush.msra.mxu0 0.0
    %2015 = vmatpush.msra.mxu0 0.0
    %2016 = vmatpush.msra.mxu0 %v56
    %2017 = vmatpush.msra.mxu0 %v55
    %2018 = vmatpush.msra.mxu0 %v54
    %2019 = vmatpush.msra.mxu0 %v53
    %2020 = vmatmul.f32.gmra.mxu0 %v2002
    %v2021 = vpop.f32.mrf.mxu0
    %v2022 = vadd.f32 %v1911, %v2021
    %2023 = vdwg.mxu0
    %v2024 = vxor.u32 %v2022, 2147483648
    %v2025 = vmul.f32 %v2024, 1.442695
    %v2026 = vpow.pop %v2025
    %v2027 = vadd.f32 %v2026, 1.0
    %v2028 = vrcp.pop %v2027
    %v2029 = vmul.f32 %v2027, %v2028
    %v2030 = vsub.f32 1.0, %v2029
    %v2031 = vmul.f32 %v2028, %v2030
    %v2032 = vadd.f32 %v2028, %v2031
    %vm2033 = vweird.f32 %v2027
    %vm2034 = vweird.f32 %v2028
    %vm2035 = vmor %vm2033, %vm2034
    %v2036 = vsel %vm2035, %v2028, %v2032
    %v2037 = vand.u32 2147483647, %v2027
    %vm2038 = vcmp.eq.f32.partialorder %v2037, 8.507059e+37
    %v2039 = vand.u32 %v2027, 2147483648
    %v2040 = vor.u32 1.1754944e-38, %v2039
    %v2041 = vsel %vm2038, %v2040, %v2036
    %v2042 = vmul.f32 1.0, %v2041
    %v2043 = vtanh.pop %v2022
    %v2044 = vsel %vm74, %v2043, %v2042
    %v2045 = vmul.f32 %v2044, %v1730
    %2047 = vrot.lane.b32.xlu0 %v2044, 64
    %v2048 = vpop.permute.xlu0 %2047
    %v2050 = vmul.f32 %v2044, %v2048
    %2052 = vrot.lane.b32.xlu0 %v2050, 32
    %v2053 = vpop.permute.xlu0 %2052
    %v2055 = vadd.f32 %v2045, %v2053
    %v2056 = vtanh.pop %v2055
    %2058 = vrot.lane.b32.xlu0 %v2056, 64
    %v2059 = vpop.permute.xlu0 %2058
    %v2061 = vmul.f32 %v2044, %v2059
    %2063 = vrot.lane.b32.xlu0 %v2061, 32
    %v2064 = vpop.permute.xlu0 %2063
    %v2065 = vsel %vm134, %v2064, 0
    %2067 = vmatpush.msra.mxu0 0.0
    %2068 = vmatpush.msra.mxu0 0.0
    %2069 = vmatpush.msra.mxu0 0.0
    %2070 = vmatpush.msra.mxu0 0.0
    %2071 = vmatpush.msra.mxu0 0.0
    %2072 = vmatpush.msra.mxu0 0.0
    %2073 = vmatpush.msra.mxu0 0.0
    %2074 = vmatpush.msra.mxu0 0.0
    %2075 = vmatpush.msra.mxu0 0.0
    %2076 = vmatpush.msra.mxu0 0.0
    %2077 = vmatpush.msra.mxu0 0.0
    %2078 = vmatpush.msra.mxu0 0.0
    %2079 = vmatpush.msra.mxu0 %v60
    %2080 = vmatpush.msra.mxu0 %v59
    %2081 = vmatpush.msra.mxu0 %v58
    %2082 = vmatpush.msra.mxu0 %v57
    %2083 = vmatmul.f32.gmra.mxu0 %v2065
    %v2084 = vpop.f32.mrf.mxu0
    %v2085 = vadd.f32 %v1931, %v2084
    %2086 = vdwg.mxu0
    %v2087 = vxor.u32 %v2085, 2147483648
    %v2088 = vmul.f32 %v2087, 1.442695
    %v2089 = vpow.pop %v2088
    %v2090 = vadd.f32 %v2089, 1.0
    %v2091 = vrcp.pop %v2090
    %v2092 = vmul.f32 %v2090, %v2091
    %v2093 = vsub.f32 1.0, %v2092
    %v2094 = vmul.f32 %v2091, %v2093
    %v2095 = vadd.f32 %v2091, %v2094
    %vm2096 = vweird.f32 %v2090
    %vm2097 = vweird.f32 %v2091
    %vm2098 = vmor %vm2096, %vm2097
    %v2099 = vsel %vm2098, %v2091, %v2095
    %v2100 = vand.u32 2147483647, %v2090
    %vm2101 = vcmp.eq.f32.partialorder %v2100, 8.507059e+37
    %v2102 = vand.u32 %v2090, 2147483648
    %v2103 = vor.u32 1.1754944e-38, %v2102
    %v2104 = vsel %vm2101, %v2103, %v2099
    %v2105 = vmul.f32 1.0, %v2104
    %v2106 = vtanh.pop %v2085
    %v2107 = vsel %vm74, %v2106, %v2105
    %v2108 = vmul.f32 %v2107, %v1793
    %2110 = vrot.lane.b32.xlu0 %v2107, 64
    %v2111 = vpop.permute.xlu0 %2110
    %v2113 = vmul.f32 %v2107, %v2111
    %2115 = vrot.lane.b32.xlu0 %v2113, 32
    %v2116 = vpop.permute.xlu0 %2115
    %v2118 = vadd.f32 %v2108, %v2116
    %v2119 = vtanh.pop %v2118
    %2121 = vrot.lane.b32.xlu0 %v2119, 64
    %v2122 = vpop.permute.xlu0 %2121
    %v2124 = vmul.f32 %v2107, %v2122
    %2126 = vrot.lane.b32.xlu0 %v2124, 32
    %v2127 = vpop.permute.xlu0 %2126
    %v2128 = vsel %vm134, %v2127, 0
    %2130 = vmatpush.msra.mxu0 0.0
    %2131 = vmatpush.msra.mxu0 0.0
    %2132 = vmatpush.msra.mxu0 0.0
    %2133 = vmatpush.msra.mxu0 0.0
    %2134 = vmatpush.msra.mxu0 0.0
    %2135 = vmatpush.msra.mxu0 0.0
    %2136 = vmatpush.msra.mxu0 0.0
    %2137 = vmatpush.msra.mxu0 0.0
    %2138 = vmatpush.msra.mxu0 0.0
    %2139 = vmatpush.msra.mxu0 0.0
    %2140 = vmatpush.msra.mxu0 0.0
    %2141 = vmatpush.msra.mxu0 0.0
    %2142 = vmatpush.msra.mxu0 %v64
    %2143 = vmatpush.msra.mxu0 %v63
    %2144 = vmatpush.msra.mxu0 %v62
    %2145 = vmatpush.msra.mxu0 %v61
    %2146 = vmatmul.f32.gmra.mxu0 %v2128
    %v2147 = vpop.f32.mrf.mxu0
    %v2148 = vadd.f32 %v1951, %v2147
    %2149 = vdwg.mxu0
    %v2150 = vxor.u32 %v2148, 2147483648
    %v2151 = vmul.f32 %v2150, 1.442695
    %v2152 = vpow.pop %v2151
    %v2153 = vadd.f32 %v2152, 1.0
    %v2154 = vrcp.pop %v2153
    %v2155 = vmul.f32 %v2153, %v2154
    %v2156 = vsub.f32 1.0, %v2155
    %v2157 = vmul.f32 %v2154, %v2156
    %v2158 = vadd.f32 %v2154, %v2157
    %vm2159 = vweird.f32 %v2153
    %vm2160 = vweird.f32 %v2154
    %vm2161 = vmor %vm2159, %vm2160
    %v2162 = vsel %vm2161, %v2154, %v2158
    %v2163 = vand.u32 2147483647, %v2153
    %vm2164 = vcmp.eq.f32.partialorder %v2163, 8.507059e+37
    %v2165 = vand.u32 %v2153, 2147483648
    %v2166 = vor.u32 1.1754944e-38, %v2165
    %v2167 = vsel %vm2164, %v2166, %v2162
    %v2168 = vmul.f32 1.0, %v2167
    %v2169 = vtanh.pop %v2148
    %v2170 = vsel %vm74, %v2169, %v2168
    %v2171 = vmul.f32 %v2170, %v1856
    %2173 = vrot.lane.b32.xlu0 %v2170, 64
    %v2174 = vpop.permute.xlu0 %2173
    %v2176 = vmul.f32 %v2170, %v2174
    %2178 = vrot.lane.b32.xlu0 %v2176, 32
    %v2179 = vpop.permute.xlu0 %2178
    %v2181 = vadd.f32 %v2171, %v2179
    %v2182 = vtanh.pop %v2181
    %2184 = vrot.lane.b32.xlu0 %v2182, 64
    %v2185 = vpop.permute.xlu0 %2184
    %v2187 = vmul.f32 %v2170, %v2185
    %2188 = vrot.lane.b32.xlu0 %v1997, 32
    %v2189 = vpop.permute.xlu0 %2188
    %v2191 = vrot.slane %v2061, 6
    %2192 = vrot.lane.b32.xlu0 %v2191, 64
    %v2193 = vpop.permute.xlu0 %2192
    %v2195 = vrot.slane %v2124, 6
    %2196 = vrot.lane.b32.xlu0 %v2195, 96
    %v2197 = vpop.permute.xlu0 %2196
    %v2200 = vrot.slane %v2187, 6
    %v2202 = vsel %vm134, %v2189, %v2193
    %v2203 = vsel %vm136, %v2202, %v2197
    %v2204 = vsel %vm138, %v2203, %v2200
    %v2206 = vrot.slane %v2204, 2
    %2208 = vmatpush.msra.mxu0 %v200
    %2209 = vmatpush.msra.mxu0 %v196
    %2210 = vmatpush.msra.mxu0 %v192
    %2211 = vmatpush.msra.mxu0 %v188
    %2212 = vmatpush.msra.mxu0 %v184
    %2213 = vmatpush.msra.mxu0 %v180
    %2214 = vmatpush.msra.mxu0 %v176
    %2215 = vmatpush.msra.mxu0 %v172
    %2216 = vmatpush.msra.mxu0 %v168
    %2217 = vmatpush.msra.mxu0 %v164
    %2218 = vmatpush.msra.mxu0 %v160
    %2219 = vmatpush.msra.mxu0 %v156
    %2220 = vmatpush.msra.mxu0 %v152
    %2221 = vmatpush.msra.mxu0 %v148
    %2222 = vmatpush.msra.mxu0 %v144
    %2223 = vmatpush.msra.mxu0 %v140
    %2224 = vmatmul.f32.gmra.mxu0 %v2206
    %v2225 = vpop.f32.mrf.mxu0
    %v2226 = vadd.f32 %v205, %v2225
    %2227 = vdwg.mxu0
    %2228 = vmatpush.msra.mxu0 %v201
    %2229 = vmatpush.msra.mxu0 %v197
    %2230 = vmatpush.msra.mxu0 %v193
    %2231 = vmatpush.msra.mxu0 %v189
    %2232 = vmatpush.msra.mxu0 %v185
    %2233 = vmatpush.msra.mxu0 %v181
    %2234 = vmatpush.msra.mxu0 %v177
    %2235 = vmatpush.msra.mxu0 %v173
    %2236 = vmatpush.msra.mxu0 %v169
    %2237 = vmatpush.msra.mxu0 %v165
    %2238 = vmatpush.msra.mxu0 %v161
    %2239 = vmatpush.msra.mxu0 %v157
    %2240 = vmatpush.msra.mxu0 %v153
    %2241 = vmatpush.msra.mxu0 %v149
    %2242 = vmatpush.msra.mxu0 %v145
    %2243 = vmatpush.msra.mxu0 %v141
    %2244 = vmatmul.f32.gmra.mxu0 %v2206
    %v2245 = vpop.f32.mrf.mxu0
    %v2246 = vadd.f32 %v206, %v2245
    %2247 = vdwg.mxu0
    %2248 = vmatpush.msra.mxu0 %v202
    %2249 = vmatpush.msra.mxu0 %v198
    %2250 = vmatpush.msra.mxu0 %v194
    %2251 = vmatpush.msra.mxu0 %v190
    %2252 = vmatpush.msra.mxu0 %v186
    %2253 = vmatpush.msra.mxu0 %v182
    %2254 = vmatpush.msra.mxu0 %v178
    %2255 = vmatpush.msra.mxu0 %v174
    %2256 = vmatpush.msra.mxu0 %v170
    %2257 = vmatpush.msra.mxu0 %v166
    %2258 = vmatpush.msra.mxu0 %v162
    %2259 = vmatpush.msra.mxu0 %v158
    %2260 = vmatpush.msra.mxu0 %v154
    %2261 = vmatpush.msra.mxu0 %v150
    %2262 = vmatpush.msra.mxu0 %v146
    %2263 = vmatpush.msra.mxu0 %v142
    %2264 = vmatmul.f32.gmra.mxu0 %v2206
    %v2265 = vpop.f32.mrf.mxu0
    %v2266 = vadd.f32 %v207, %v2265
    %2267 = vdwg.mxu0
    %2268 = vmatpush.msra.mxu0 %v203
    %2269 = vmatpush.msra.mxu0 %v199
    %2270 = vmatpush.msra.mxu0 %v195
    %2271 = vmatpush.msra.mxu0 %v191
    %2272 = vmatpush.msra.mxu0 %v187
    %2273 = vmatpush.msra.mxu0 %v183
    %2274 = vmatpush.msra.mxu0 %v179
    %2275 = vmatpush.msra.mxu0 %v175
    %2276 = vmatpush.msra.mxu0 %v171
    %2277 = vmatpush.msra.mxu0 %v167
    %2278 = vmatpush.msra.mxu0 %v163
    %2279 = vmatpush.msra.mxu0 %v159
    %2280 = vmatpush.msra.mxu0 %v155
    %2281 = vmatpush.msra.mxu0 %v151
    %2282 = vmatpush.msra.mxu0 %v147
    %2283 = vmatpush.msra.mxu0 %v143
    %2284 = vmatmul.f32.gmra.mxu0 %v2206
    %v2285 = vpop.f32.mrf.mxu0
    %v2286 = vadd.f32 %v208, %v2285
    %2287 = vdwg.mxu0
    %v2289 = vrot.slane %v2226, 4
    %v2291 = vadd.f32 %v105, %v2289
    %v2292 = vxor.u32 %v2291, 2147483648
    %v2293 = vmul.f32 %v2292, 1.442695
    %v2294 = vpow.pop %v2293
    %v2295 = vadd.f32 %v2294, 1.0
    %v2296 = vrcp.pop %v2295
    %v2297 = vmul.f32 %v2295, %v2296
    %v2298 = vsub.f32 1.0, %v2297
    %v2299 = vmul.f32 %v2296, %v2298
    %v2300 = vadd.f32 %v2296, %v2299
    %vm2301 = vweird.f32 %v2295
    %vm2302 = vweird.f32 %v2296
    %vm2303 = vmor %vm2301, %vm2302
    %v2304 = vsel %vm2303, %v2296, %v2300
    %v2305 = vand.u32 2147483647, %v2295
    %vm2306 = vcmp.eq.f32.partialorder %v2305, 8.507059e+37
    %v2307 = vand.u32 %v2295, 2147483648
    %v2308 = vor.u32 1.1754944e-38, %v2307
    %v2309 = vsel %vm2306, %v2308, %v2304
    %v2310 = vmul.f32 1.0, %v2309
    %v2311 = vtanh.pop %v2291
    %v2312 = vsel %vm74, %v2311, %v2310
    %v2314 = vrot.slane %v1991, 6
    %v2316 = vmul.f32 %v2312, %v2314
    %2318 = vrot.lane.b32.xlu0 %v2312, 64
    %v2319 = vpop.permute.xlu0 %2318
    %v2321 = vmul.f32 %v2312, %v2319
    %2323 = vrot.lane.b32.xlu0 %v2321, 32
    %v2324 = vpop.permute.xlu0 %2323
    %v2326 = vadd.f32 %v2316, %v2324
    %v2327 = vtanh.pop %v2326
    %2329 = vrot.lane.b32.xlu0 %v2327, 64
    %v2330 = vpop.permute.xlu0 %2329
    %v2332 = vmul.f32 %v2312, %v2330
    %v2334 = vrot.slane %v2332, 4
    %2335 = vrot.lane.b32.xlu0 %v2334, 32
    %v2336 = vpop.permute.xlu0 %2335
    %v2337 = vsel %vm134, %v2336, 0
    %2339 = vmatpush.msra.mxu0 0.0
    %2340 = vmatpush.msra.mxu0 0.0
    %2341 = vmatpush.msra.mxu0 0.0
    %2342 = vmatpush.msra.mxu0 0.0
    %2343 = vmatpush.msra.mxu0 0.0
    %2344 = vmatpush.msra.mxu0 0.0
    %2345 = vmatpush.msra.mxu0 0.0
    %2346 = vmatpush.msra.mxu0 0.0
    %2347 = vmatpush.msra.mxu0 0.0
    %2348 = vmatpush.msra.mxu0 0.0
    %2349 = vmatpush.msra.mxu0 0.0
    %2350 = vmatpush.msra.mxu0 0.0
    %2351 = vmatpush.msra.mxu0 %v56
    %2352 = vmatpush.msra.mxu0 %v55
    %2353 = vmatpush.msra.mxu0 %v54
    %2354 = vmatpush.msra.mxu0 %v53
    %2355 = vmatmul.f32.gmra.mxu0 %v2337
    %v2356 = vpop.f32.mrf.mxu0
    %v2357 = vadd.f32 %v2246, %v2356
    %2358 = vdwg.mxu0
    %v2359 = vxor.u32 %v2357, 2147483648
    %v2360 = vmul.f32 %v2359, 1.442695
    %v2361 = vpow.pop %v2360
    %v2362 = vadd.f32 %v2361, 1.0
    %v2363 = vrcp.pop %v2362
    %v2364 = vmul.f32 %v2362, %v2363
    %v2365 = vsub.f32 1.0, %v2364
    %v2366 = vmul.f32 %v2363, %v2365
    %v2367 = vadd.f32 %v2363, %v2366
    %vm2368 = vweird.f32 %v2362
    %vm2369 = vweird.f32 %v2363
    %vm2370 = vmor %vm2368, %vm2369
    %v2371 = vsel %vm2370, %v2363, %v2367
    %v2372 = vand.u32 2147483647, %v2362
    %vm2373 = vcmp.eq.f32.partialorder %v2372, 8.507059e+37
    %v2374 = vand.u32 %v2362, 2147483648
    %v2375 = vor.u32 1.1754944e-38, %v2374
    %v2376 = vsel %vm2373, %v2375, %v2371
    %v2377 = vmul.f32 1.0, %v2376
    %v2378 = vtanh.pop %v2357
    %v2379 = vsel %vm74, %v2378, %v2377
    %v2380 = vmul.f32 %v2379, %v2055
    %2382 = vrot.lane.b32.xlu0 %v2379, 64
    %v2383 = vpop.permute.xlu0 %2382
    %v2385 = vmul.f32 %v2379, %v2383
    %2387 = vrot.lane.b32.xlu0 %v2385, 32
    %v2388 = vpop.permute.xlu0 %2387
    %v2390 = vadd.f32 %v2380, %v2388
    %v2391 = vtanh.pop %v2390
    %2393 = vrot.lane.b32.xlu0 %v2391, 64
    %v2394 = vpop.permute.xlu0 %2393
    %v2396 = vmul.f32 %v2379, %v2394
    %2398 = vrot.lane.b32.xlu0 %v2396, 32
    %v2399 = vpop.permute.xlu0 %2398
    %v2400 = vsel %vm134, %v2399, 0
    %2402 = vmatpush.msra.mxu0 0.0
    %2403 = vmatpush.msra.mxu0 0.0
    %2404 = vmatpush.msra.mxu0 0.0
    %2405 = vmatpush.msra.mxu0 0.0
    %2406 = vmatpush.msra.mxu0 0.0
    %2407 = vmatpush.msra.mxu0 0.0
    %2408 = vmatpush.msra.mxu0 0.0
    %2409 = vmatpush.msra.mxu0 0.0
    %2410 = vmatpush.msra.mxu0 0.0
    %2411 = vmatpush.msra.mxu0 0.0
    %2412 = vmatpush.msra.mxu0 0.0
    %2413 = vmatpush.msra.mxu0 0.0
    %2414 = vmatpush.msra.mxu0 %v60
    %2415 = vmatpush.msra.mxu0 %v59
    %2416 = vmatpush.msra.mxu0 %v58
    %2417 = vmatpush.msra.mxu0 %v57
    %2418 = vmatmul.f32.gmra.mxu0 %v2400
    %v2419 = vpop.f32.mrf.mxu0
    %v2420 = vadd.f32 %v2266, %v2419
    %2421 = vdwg.mxu0
    %v2422 = vxor.u32 %v2420, 2147483648
    %v2423 = vmul.f32 %v2422, 1.442695
    %v2424 = vpow.pop %v2423
    %v2425 = vadd.f32 %v2424, 1.0
    %v2426 = vrcp.pop %v2425
    %v2427 = vmul.f32 %v2425, %v2426
    %v2428 = vsub.f32 1.0, %v2427
    %v2429 = vmul.f32 %v2426, %v2428
    %v2430 = vadd.f32 %v2426, %v2429
    %vm2431 = vweird.f32 %v2425
    %vm2432 = vweird.f32 %v2426
    %vm2433 = vmor %vm2431, %vm2432
    %v2434 = vsel %vm2433, %v2426, %v2430
    %v2435 = vand.u32 2147483647, %v2425
    %vm2436 = vcmp.eq.f32.partialorder %v2435, 8.507059e+37
    %v2437 = vand.u32 %v2425, 2147483648
    %v2438 = vor.u32 1.1754944e-38, %v2437
    %v2439 = vsel %vm2436, %v2438, %v2434
    %v2440 = vmul.f32 1.0, %v2439
    %v2441 = vtanh.pop %v2420
    %v2442 = vsel %vm74, %v2441, %v2440
    %v2443 = vmul.f32 %v2442, %v2118
    %2445 = vrot.lane.b32.xlu0 %v2442, 64
    %v2446 = vpop.permute.xlu0 %2445
    %v2448 = vmul.f32 %v2442, %v2446
    %2450 = vrot.lane.b32.xlu0 %v2448, 32
    %v2451 = vpop.permute.xlu0 %2450
    %v2453 = vadd.f32 %v2443, %v2451
    %v2454 = vtanh.pop %v2453
    %2456 = vrot.lane.b32.xlu0 %v2454, 64
    %v2457 = vpop.permute.xlu0 %2456
    %v2459 = vmul.f32 %v2442, %v2457
    %2461 = vrot.lane.b32.xlu0 %v2459, 32
    %v2462 = vpop.permute.xlu0 %2461
    %v2463 = vsel %vm134, %v2462, 0
    %2465 = vmatpush.msra.mxu0 0.0
    %2466 = vmatpush.msra.mxu0 0.0
    %2467 = vmatpush.msra.mxu0 0.0
    %2468 = vmatpush.msra.mxu0 0.0
    %2469 = vmatpush.msra.mxu0 0.0
    %2470 = vmatpush.msra.mxu0 0.0
    %2471 = vmatpush.msra.mxu0 0.0
    %2472 = vmatpush.msra.mxu0 0.0
    %2473 = vmatpush.msra.mxu0 0.0
    %2474 = vmatpush.msra.mxu0 0.0
    %2475 = vmatpush.msra.mxu0 0.0
    %2476 = vmatpush.msra.mxu0 0.0
    %2477 = vmatpush.msra.mxu0 %v64
    %2478 = vmatpush.msra.mxu0 %v63
    %2479 = vmatpush.msra.mxu0 %v62
    %2480 = vmatpush.msra.mxu0 %v61
    %2481 = vmatmul.f32.gmra.mxu0 %v2463
    %v2482 = vpop.f32.mrf.mxu0
    %v2483 = vadd.f32 %v2286, %v2482
    %2484 = vdwg.mxu0
    %v2485 = vxor.u32 %v2483, 2147483648
    %v2486 = vmul.f32 %v2485, 1.442695
    %v2487 = vpow.pop %v2486
    %v2488 = vadd.f32 %v2487, 1.0
    %v2489 = vrcp.pop %v2488
    %v2490 = vmul.f32 %v2488, %v2489
    %v2491 = vsub.f32 1.0, %v2490
    %v2492 = vmul.f32 %v2489, %v2491
    %v2493 = vadd.f32 %v2489, %v2492
    %vm2494 = vweird.f32 %v2488
    %vm2495 = vweird.f32 %v2489
    %vm2496 = vmor %vm2494, %vm2495
    %v2497 = vsel %vm2496, %v2489, %v2493
    %v2498 = vand.u32 2147483647, %v2488
    %vm2499 = vcmp.eq.f32.partialorder %v2498, 8.507059e+37
    %v2500 = vand.u32 %v2488, 2147483648
    %v2501 = vor.u32 1.1754944e-38, %v2500
    %v2502 = vsel %vm2499, %v2501, %v2497
    %v2503 = vmul.f32 1.0, %v2502
    %v2504 = vtanh.pop %v2483
    %v2505 = vsel %vm74, %v2504, %v2503
    %v2506 = vmul.f32 %v2505, %v2181
    %2508 = vrot.lane.b32.xlu0 %v2505, 64
    %v2509 = vpop.permute.xlu0 %2508
    %v2511 = vmul.f32 %v2505, %v2509
    %2513 = vrot.lane.b32.xlu0 %v2511, 32
    %v2514 = vpop.permute.xlu0 %2513
    %v2516 = vadd.f32 %v2506, %v2514
    %v2517 = vtanh.pop %v2516
    %2519 = vrot.lane.b32.xlu0 %v2517, 64
    %v2520 = vpop.permute.xlu0 %2519
    %v2522 = vmul.f32 %v2505, %v2520
    %2523 = vrot.lane.b32.xlu0 %v2332, 32
    %v2524 = vpop.permute.xlu0 %2523
    %v2526 = vrot.slane %v2396, 4
    %2527 = vrot.lane.b32.xlu0 %v2526, 64
    %v2528 = vpop.permute.xlu0 %2527
    %v2530 = vrot.slane %v2459, 4
    %2531 = vrot.lane.b32.xlu0 %v2530, 96
    %v2532 = vpop.permute.xlu0 %2531
    %v2535 = vrot.slane %v2522, 4
    %v2537 = vsel %vm134, %v2524, %v2528
    %v2538 = vsel %vm136, %v2537, %v2532
    %v2539 = vsel %vm138, %v2538, %v2535
    %v2541 = vrot.slane %v2539, 4
    %2543 = vmatpush.msra.mxu0 %v200
    %2544 = vmatpush.msra.mxu0 %v196
    %2545 = vmatpush.msra.mxu0 %v192
    %2546 = vmatpush.msra.mxu0 %v188
    %2547 = vmatpush.msra.mxu0 %v184
    %2548 = vmatpush.msra.mxu0 %v180
    %2549 = vmatpush.msra.mxu0 %v176
    %2550 = vmatpush.msra.mxu0 %v172
    %2551 = vmatpush.msra.mxu0 %v168
    %2552 = vmatpush.msra.mxu0 %v164
    %2553 = vmatpush.msra.mxu0 %v160
    %2554 = vmatpush.msra.mxu0 %v156
    %2555 = vmatpush.msra.mxu0 %v152
    %2556 = vmatpush.msra.mxu0 %v148
    %2557 = vmatpush.msra.mxu0 %v144
    %2558 = vmatpush.msra.mxu0 %v140
    %2559 = vmatmul.f32.gmra.mxu0 %v2541
    %v2560 = vpop.f32.mrf.mxu0
    %v2561 = vadd.f32 %v205, %v2560
    %2562 = vdwg.mxu0
    %2563 = vmatpush.msra.mxu0 %v201
    %2564 = vmatpush.msra.mxu0 %v197
    %2565 = vmatpush.msra.mxu0 %v193
    %2566 = vmatpush.msra.mxu0 %v189
    %2567 = vmatpush.msra.mxu0 %v185
    %2568 = vmatpush.msra.mxu0 %v181
    %2569 = vmatpush.msra.mxu0 %v177
    %2570 = vmatpush.msra.mxu0 %v173
    %2571 = vmatpush.msra.mxu0 %v169
    %2572 = vmatpush.msra.mxu0 %v165
    %2573 = vmatpush.msra.mxu0 %v161
    %2574 = vmatpush.msra.mxu0 %v157
    %2575 = vmatpush.msra.mxu0 %v153
    %2576 = vmatpush.msra.mxu0 %v149
    %2577 = vmatpush.msra.mxu0 %v145
    %2578 = vmatpush.msra.mxu0 %v141
    %2579 = vmatmul.f32.gmra.mxu0 %v2541
    %v2580 = vpop.f32.mrf.mxu0
    %v2581 = vadd.f32 %v206, %v2580
    %2582 = vdwg.mxu0
    %2583 = vmatpush.msra.mxu0 %v202
    %2584 = vmatpush.msra.mxu0 %v198
    %2585 = vmatpush.msra.mxu0 %v194
    %2586 = vmatpush.msra.mxu0 %v190
    %2587 = vmatpush.msra.mxu0 %v186
    %2588 = vmatpush.msra.mxu0 %v182
    %2589 = vmatpush.msra.mxu0 %v178
    %2590 = vmatpush.msra.mxu0 %v174
    %2591 = vmatpush.msra.mxu0 %v170
    %2592 = vmatpush.msra.mxu0 %v166
    %2593 = vmatpush.msra.mxu0 %v162
    %2594 = vmatpush.msra.mxu0 %v158
    %2595 = vmatpush.msra.mxu0 %v154
    %2596 = vmatpush.msra.mxu0 %v150
    %2597 = vmatpush.msra.mxu0 %v146
    %2598 = vmatpush.msra.mxu0 %v142
    %2599 = vmatmul.f32.gmra.mxu0 %v2541
    %v2600 = vpop.f32.mrf.mxu0
    %v2601 = vadd.f32 %v207, %v2600
    %2602 = vdwg.mxu0
    %2603 = vmatpush.msra.mxu0 %v203
    %2604 = vmatpush.msra.mxu0 %v199
    %2605 = vmatpush.msra.mxu0 %v195
    %2606 = vmatpush.msra.mxu0 %v191
    %2607 = vmatpush.msra.mxu0 %v187
    %2608 = vmatpush.msra.mxu0 %v183
    %2609 = vmatpush.msra.mxu0 %v179
    %2610 = vmatpush.msra.mxu0 %v175
    %2611 = vmatpush.msra.mxu0 %v171
    %2612 = vmatpush.msra.mxu0 %v167
    %2613 = vmatpush.msra.mxu0 %v163
    %2614 = vmatpush.msra.mxu0 %v159
    %2615 = vmatpush.msra.mxu0 %v155
    %2616 = vmatpush.msra.mxu0 %v151
    %2617 = vmatpush.msra.mxu0 %v147
    %2618 = vmatpush.msra.mxu0 %v143
    %2619 = vmatmul.f32.gmra.mxu0 %v2541
    %v2620 = vpop.f32.mrf.mxu0
    %v2621 = vadd.f32 %v208, %v2620
    %2622 = vdwg.mxu0
    %v2624 = vrot.slane %v2561, 2
    %v2626 = vadd.f32 %v105, %v2624
    %v2627 = vxor.u32 %v2626, 2147483648
    %v2628 = vmul.f32 %v2627, 1.442695
    %v2629 = vpow.pop %v2628
    %v2630 = vadd.f32 %v2629, 1.0
    %v2631 = vrcp.pop %v2630
    %v2632 = vmul.f32 %v2630, %v2631
    %v2633 = vsub.f32 1.0, %v2632
    %v2634 = vmul.f32 %v2631, %v2633
    %v2635 = vadd.f32 %v2631, %v2634
    %vm2636 = vweird.f32 %v2630
    %vm2637 = vweird.f32 %v2631
    %vm2638 = vmor %vm2636, %vm2637
    %v2639 = vsel %vm2638, %v2631, %v2635
    %v2640 = vand.u32 2147483647, %v2630
    %vm2641 = vcmp.eq.f32.partialorder %v2640, 8.507059e+37
    %v2642 = vand.u32 %v2630, 2147483648
    %v2643 = vor.u32 1.1754944e-38, %v2642
    %v2644 = vsel %vm2641, %v2643, %v2639
    %v2645 = vmul.f32 1.0, %v2644
    %v2646 = vtanh.pop %v2626
    %v2647 = vsel %vm74, %v2646, %v2645
    %v2649 = vrot.slane %v2326, 6
    %v2651 = vmul.f32 %v2647, %v2649
    %2653 = vrot.lane.b32.xlu0 %v2647, 64
    %v2654 = vpop.permute.xlu0 %2653
    %v2656 = vmul.f32 %v2647, %v2654
    %2658 = vrot.lane.b32.xlu0 %v2656, 32
    %v2659 = vpop.permute.xlu0 %2658
    %v2661 = vadd.f32 %v2651, %v2659
    %v2662 = vtanh.pop %v2661
    %2664 = vrot.lane.b32.xlu0 %v2662, 64
    %v2665 = vpop.permute.xlu0 %2664
    %v2667 = vmul.f32 %v2647, %v2665
    %v2669 = vrot.slane %v2667, 6
    %2670 = vrot.lane.b32.xlu0 %v2669, 32
    %v2671 = vpop.permute.xlu0 %2670
    %v2672 = vsel %vm134, %v2671, 0
    %2674 = vmatpush.msra.mxu0 0.0
    %2675 = vmatpush.msra.mxu0 0.0
    %2676 = vmatpush.msra.mxu0 0.0
    %2677 = vmatpush.msra.mxu0 0.0
    %2678 = vmatpush.msra.mxu0 0.0
    %2679 = vmatpush.msra.mxu0 0.0
    %2680 = vmatpush.msra.mxu0 0.0
    %2681 = vmatpush.msra.mxu0 0.0
    %2682 = vmatpush.msra.mxu0 0.0
    %2683 = vmatpush.msra.mxu0 0.0
    %2684 = vmatpush.msra.mxu0 0.0
    %2685 = vmatpush.msra.mxu0 0.0
    %2686 = vmatpush.msra.mxu0 %v56
    %2687 = vmatpush.msra.mxu0 %v55
    %2688 = vmatpush.msra.mxu0 %v54
    %2689 = vmatpush.msra.mxu0 %v53
    %2690 = vmatmul.f32.gmra.mxu0 %v2672
    %v2691 = vpop.f32.mrf.mxu0
    %v2692 = vadd.f32 %v2581, %v2691
    %2693 = vdwg.mxu0
    %v2694 = vxor.u32 %v2692, 2147483648
    %v2695 = vmul.f32 %v2694, 1.442695
    %v2696 = vpow.pop %v2695
    %v2697 = vadd.f32 %v2696, 1.0
    %v2698 = vrcp.pop %v2697
    %v2699 = vmul.f32 %v2697, %v2698
    %v2700 = vsub.f32 1.0, %v2699
    %v2701 = vmul.f32 %v2698, %v2700
    %v2702 = vadd.f32 %v2698, %v2701
    %vm2703 = vweird.f32 %v2697
    %vm2704 = vweird.f32 %v2698
    %vm2705 = vmor %vm2703, %vm2704
    %v2706 = vsel %vm2705, %v2698, %v2702
    %v2707 = vand.u32 2147483647, %v2697
    %vm2708 = vcmp.eq.f32.partialorder %v2707, 8.507059e+37
    %v2709 = vand.u32 %v2697, 2147483648
    %v2710 = vor.u32 1.1754944e-38, %v2709
    %v2711 = vsel %vm2708, %v2710, %v2706
    %v2712 = vmul.f32 1.0, %v2711
    %v2713 = vtanh.pop %v2692
    %v2714 = vsel %vm74, %v2713, %v2712
    %v2715 = vmul.f32 %v2714, %v2390
    %2717 = vrot.lane.b32.xlu0 %v2714, 64
    %v2718 = vpop.permute.xlu0 %2717
    %v2720 = vmul.f32 %v2714, %v2718
    %2722 = vrot.lane.b32.xlu0 %v2720, 32
    %v2723 = vpop.permute.xlu0 %2722
    %v2725 = vadd.f32 %v2715, %v2723
    %v2726 = vtanh.pop %v2725
    %2728 = vrot.lane.b32.xlu0 %v2726, 64
    %v2729 = vpop.permute.xlu0 %2728
    %v2731 = vmul.f32 %v2714, %v2729
    %2733 = vrot.lane.b32.xlu0 %v2731, 32
    %v2734 = vpop.permute.xlu0 %2733
    %v2735 = vsel %vm134, %v2734, 0
    %2737 = vmatpush.msra.mxu0 0.0
    %2738 = vmatpush.msra.mxu0 0.0
    %2739 = vmatpush.msra.mxu0 0.0
    %2740 = vmatpush.msra.mxu0 0.0
    %2741 = vmatpush.msra.mxu0 0.0
    %2742 = vmatpush.msra.mxu0 0.0
    %2743 = vmatpush.msra.mxu0 0.0
    %2744 = vmatpush.msra.mxu0 0.0
    %2745 = vmatpush.msra.mxu0 0.0
    %2746 = vmatpush.msra.mxu0 0.0
    %2747 = vmatpush.msra.mxu0 0.0
    %2748 = vmatpush.msra.mxu0 0.0
    %2749 = vmatpush.msra.mxu0 %v60
    %2750 = vmatpush.msra.mxu0 %v59
    %2751 = vmatpush.msra.mxu0 %v58
    %2752 = vmatpush.msra.mxu0 %v57
    %2753 = vmatmul.f32.gmra.mxu0 %v2735
    %v2754 = vpop.f32.mrf.mxu0
    %v2755 = vadd.f32 %v2601, %v2754
    %2756 = vdwg.mxu0
    %v2757 = vxor.u32 %v2755, 2147483648
    %v2758 = vmul.f32 %v2757, 1.442695
    %v2759 = vpow.pop %v2758
    %v2760 = vadd.f32 %v2759, 1.0
    %v2761 = vrcp.pop %v2760
    %v2762 = vmul.f32 %v2760, %v2761
    %v2763 = vsub.f32 1.0, %v2762
    %v2764 = vmul.f32 %v2761, %v2763
    %v2765 = vadd.f32 %v2761, %v2764
    %vm2766 = vweird.f32 %v2760
    %vm2767 = vweird.f32 %v2761
    %vm2768 = vmor %vm2766, %vm2767
    %v2769 = vsel %vm2768, %v2761, %v2765
    %v2770 = vand.u32 2147483647, %v2760
    %vm2771 = vcmp.eq.f32.partialorder %v2770, 8.507059e+37
    %v2772 = vand.u32 %v2760, 2147483648
    %v2773 = vor.u32 1.1754944e-38, %v2772
    %v2774 = vsel %vm2771, %v2773, %v2769
    %v2775 = vmul.f32 1.0, %v2774
    %v2776 = vtanh.pop %v2755
    %v2777 = vsel %vm74, %v2776, %v2775
    %v2778 = vmul.f32 %v2777, %v2453
    %2780 = vrot.lane.b32.xlu0 %v2777, 64
    %v2781 = vpop.permute.xlu0 %2780
    %v2783 = vmul.f32 %v2777, %v2781
    %2785 = vrot.lane.b32.xlu0 %v2783, 32
    %v2786 = vpop.permute.xlu0 %2785
    %v2788 = vadd.f32 %v2778, %v2786
    %v2789 = vtanh.pop %v2788
    %2791 = vrot.lane.b32.xlu0 %v2789, 64
    %v2792 = vpop.permute.xlu0 %2791
    %v2794 = vmul.f32 %v2777, %v2792
    %2796 = vrot.lane.b32.xlu0 %v2794, 32
    %v2797 = vpop.permute.xlu0 %2796
    %v2798 = vsel %vm134, %v2797, 0
    %2800 = vmatpush.msra.mxu0 0.0
    %2801 = vmatpush.msra.mxu0 0.0
    %2802 = vmatpush.msra.mxu0 0.0
    %2803 = vmatpush.msra.mxu0 0.0
    %2804 = vmatpush.msra.mxu0 0.0
    %2805 = vmatpush.msra.mxu0 0.0
    %2806 = vmatpush.msra.mxu0 0.0
    %2807 = vmatpush.msra.mxu0 0.0
    %2808 = vmatpush.msra.mxu0 0.0
    %2809 = vmatpush.msra.mxu0 0.0
    %2810 = vmatpush.msra.mxu0 0.0
    %2811 = vmatpush.msra.mxu0 0.0
    %2812 = vmatpush.msra.mxu0 %v64
    %2813 = vmatpush.msra.mxu0 %v63
    %2814 = vmatpush.msra.mxu0 %v62
    %2815 = vmatpush.msra.mxu0 %v61
    %2816 = vmatmul.f32.gmra.mxu0 %v2798
    %v2817 = vpop.f32.mrf.mxu0
    %v2818 = vadd.f32 %v2621, %v2817
    %2819 = vdwg.mxu0
    %v2820 = vxor.u32 %v2818, 2147483648
    %v2821 = vmul.f32 %v2820, 1.442695
    %v2822 = vpow.pop %v2821
    %v2823 = vadd.f32 %v2822, 1.0
    %v2824 = vrcp.pop %v2823
    %v2825 = vmul.f32 %v2823, %v2824
    %v2826 = vsub.f32 1.0, %v2825
    %v2827 = vmul.f32 %v2824, %v2826
    %v2828 = vadd.f32 %v2824, %v2827
    %vm2829 = vweird.f32 %v2823
    %vm2830 = vweird.f32 %v2824
    %vm2831 = vmor %vm2829, %vm2830
    %v2832 = vsel %vm2831, %v2824, %v2828
    %v2833 = vand.u32 2147483647, %v2823
    %vm2834 = vcmp.eq.f32.partialorder %v2833, 8.507059e+37
    %v2835 = vand.u32 %v2823, 2147483648
    %v2836 = vor.u32 1.1754944e-38, %v2835
    %v2837 = vsel %vm2834, %v2836, %v2832
    %v2838 = vmul.f32 1.0, %v2837
    %v2839 = vtanh.pop %v2818
    %v2840 = vsel %vm74, %v2839, %v2838
    %v2841 = vmul.f32 %v2840, %v2516
    %2843 = vrot.lane.b32.xlu0 %v2840, 64
    %v2844 = vpop.permute.xlu0 %2843
    %v2846 = vmul.f32 %v2840, %v2844
    %2848 = vrot.lane.b32.xlu0 %v2846, 32
    %v2849 = vpop.permute.xlu0 %2848
    %v2851 = vadd.f32 %v2841, %v2849
    %v2852 = vtanh.pop %v2851
    %2854 = vrot.lane.b32.xlu0 %v2852, 64
    %v2855 = vpop.permute.xlu0 %2854
    %v2857 = vmul.f32 %v2840, %v2855
    %v2858 = vmax.f32 %v2857, 0.0
    %v2859 = vperm.slane %v69, 0
    %2861 = vrot.lane.b32.xlu0 %v2858, 32
    %v2862 = vpop.permute.xlu0 %2861
    %v2863 = vsel %vm134, %v2862, 0
    %2865 = vmatpush.msra.mxu0 0.0
    %2866 = vmatpush.msra.mxu0 0.0
    %2867 = vmatpush.msra.mxu0 0.0
    %2868 = vmatpush.msra.mxu0 0.0
    %2869 = vmatpush.msra.mxu0 0.0
    %2870 = vmatpush.msra.mxu0 0.0
    %2871 = vmatpush.msra.mxu0 0.0
    %2872 = vmatpush.msra.mxu0 0.0
    %2873 = vmatpush.msra.mxu0 0.0
    %2874 = vmatpush.msra.mxu0 0.0
    %2875 = vmatpush.msra.mxu0 0.0
    %2876 = vmatpush.msra.mxu0 0.0
    %2877 = vmatpush.msra.mxu0 %v68
    %2878 = vmatpush.msra.mxu0 %v67
    %2879 = vmatpush.msra.mxu0 %v66
    %2880 = vmatpush.msra.mxu0 %v65
    %2881 = vmatmul.f32.gmra.mxu0 %v2863
    %v2882 = vpop.f32.mrf.mxu0
    %v2883 = vadd.f32 %v2859, %v2882
    %2884 = vdwg.mxu0
    %v2885 = vtanh.pop %v2883
    %2887 = vrot.lane.b32.xlu0 %v2859, 96
    %v2888 = vpop.permute.xlu0 %2887
    %v2890 = vmul.f32 %v2885, %v2888
    %vm2891 = vcmask 254976
    %v2892 = vsel %vm2891, %v2890, 0.0
    %2893 = vadd.xlane.f32.xlu0 %v2892
    %v2894 = vpop.xlane.xlu0 %2893
    %v2895 = vadd.f32 %v2894, %v2859
    %2897 = vrot.lane.b32.xlu0 %v2895, 64
    %v2898 = vpop.permute.xlu0 %2897
    %vm2900 = vcmask 1024
    %2901 = vst.msk [vmem:[%s4] sm:$0x3] %vm2900, %v2898
    // Predicated region
    $region26: #{lstm_model_forward.1} parent=1 // pred_check
      _
    $region27: #{lstm_model_forward.1} parent=1 // pred_check_branch
      %2903 = sbr.rel (0) target = $region29
    $region28: #{lstm_model_forward.1} parent=1 // pred_region
      _
    $region29: #{lstm_model_forward.1} parent=1 // pred_fallthru
      _
    // Predicated region
    $region30: #{lstm_model_forward.1} parent=1 // pred_check
      _
    $region31: #{lstm_model_forward.1} parent=1 // pred_check_branch
      %2905 = sbr.rel (0) target = $region33
    $region32: #{lstm_model_forward.1} parent=1 // pred_region
      _
    $region33: #{lstm_model_forward.1} parent=1 // pred_fallthru
      _
    %2906 = vsyncpa [#allocation3], 1
    %2907 = vsyncpa [#allocation5], 1

</llo_original>
